<compile_context>
chip_gen: v6e
topology: v6e:2x2x1
jax: 0.10.0
libtpu: 0.0.40
codegen_flags: <defaults>
</compile_context>

<pallas_src>
import functools

import jax
import jax.numpy as jnp
from jax.experimental import pallas as pl
from jax.experimental.pallas import tpu as pltpu

INPUT_SIZE = 6
HIDDEN = 32          # 4*H == 128 -> gate matmuls exactly fill the 128-lane dim
NUM_LAYERS = 2
SEQ = 8
BATCH = 2
SUBLANE = 8          # f32 sublane width; batch padded up to a multiple of this
FP = 8               # input features padded 6 -> 8 (zero rows in W_ih match)
LANES = 128


# ----------------------------------------------------------------------------
# Static parameter-slab layout (row offsets into the packed (rows, 128) slab).
# ----------------------------------------------------------------------------
def _param_layout(hidden, fpad):
    rows = {}
    off = 0

    def blk(name, n):
        nonlocal off
        rows[name] = (off, n)
        off += n

    H = hidden
    blk("wih0_f", fpad); blk("wih0_b", fpad)        # layer-0 W_ih^T   (F, 4H)
    blk("whh0_f", H);    blk("whh0_b", H)           # layer-0 W_hh^T   (H, 4H)
    blk("wih1_ff", H);   blk("wih1_fb", H)          # layer-1 fwd dir, fwd/bwd input half
    blk("wih1_bf", H);   blk("wih1_bb", H)          # layer-1 bwd dir, fwd/bwd input half
    blk("whh1_f", H);    blk("whh1_b", H)           # layer-1 W_hh^T
    blk("wa_f", H);      blk("wa_b", H)             # attention W^T halves (H, H) -> 128 lanes
    for name in ("b0_f", "b0_b", "b1_f", "b1_b",    # combined b_ih + b_hh rows
                 "ba", "v", "wfc_f", "wfc_b", "bfc"):
        blk(name, 1)
    total = ((off + SUBLANE - 1) // SUBLANE) * SUBLANE
    return rows, total


_LAYOUT, _SLAB_ROWS = _param_layout(HIDDEN, FP)


# ----------------------------------------------------------------------------
# Fused forward kernel (no grid: one invocation computes the whole model).
# ----------------------------------------------------------------------------
def _fused_kernel(T, Bp, H, L,
                  x_ref, w_ref, y_ref,
                  xpf_scr, xpb_scr, hf_scr, hb_scr):
    """Operands (VMEM resident):
      x_ref   (T*Bp, FP) f32   time-major input, batch & features padded
      w_ref   (rows, 128) f32  packed parameter slab (layout L)
      y_ref   (Bp, 1)    f32   output
      xpf/xpb (T*Bp, 4H) f32   staged input projections (bias included)
      hf/hb   (T*Bp, H)  f32   per-timestep hidden-state history
    """
    f32 = jnp.float32
    bf16 = jnp.bfloat16

    def wmat(name):                      # bf16 MXU operand (rows, 128)
        off, nrows = L[name]
        return w_ref[off:off + nrows, :].astype(bf16)

    def wrow(name):                      # f32 (1, 128) row
        off, _ = L[name]
        return w_ref[off:off + 1, :]

    def cell(gates, c_prev):
        # Two full-width (Bp, 4H) transcendentals, then lane-range slices.
        sig = jax.nn.sigmoid(gates)
        tnh = jnp.tanh(gates)
        i = sig[:, 0 * H:1 * H]
        f = sig[:, 1 * H:2 * H]
        g = tnh[:, 2 * H:3 * H]
        o = sig[:, 3 * H:4 * H]
        c = f * c_prev + i * g
        h = o * jnp.tanh(c)
        return h, c

    def run_layer(whh_f_name, whh_b_name):
        # Only h @ W_hh is on the sequential dependency chain; input
        # projections (bias included) are already staged in xpf/xpb scratch.
        whh_f = wmat(whh_f_name)
        whh_b = wmat(whh_b_name)
        zeros = jnp.zeros((Bp, H), f32)
        h_f, c_f, h_b, c_b = zeros, zeros, zeros, zeros
        for t in range(T):                              # fully unrolled, T = 8
            tb = T - 1 - t
            g_f = xpf_scr[t * Bp:(t + 1) * Bp, :] + jnp.dot(
                h_f.astype(bf16), whh_f, preferred_element_type=f32)
            h_f, c_f = cell(g_f, c_f)
            hf_scr[t * Bp:(t + 1) * Bp, :] = h_f
            g_b = xpb_scr[tb * Bp:(tb + 1) * Bp, :] + jnp.dot(
                h_b.astype(bf16), whh_b, preferred_element_type=f32)
            h_b, c_b = cell(g_b, c_b)
            hb_scr[tb * Bp:(tb + 1) * Bp, :] = h_b

    # ---------------- layer 0: hoisted, time-batched input projection -------
    x = x_ref[...].astype(bf16)                                    # (T*Bp, FP)
    xpf_scr[...] = (jnp.dot(x, wmat("wih0_f"), preferred_element_type=f32)
                    + wrow("b0_f"))
    xpb_scr[...] = (jnp.dot(x, wmat("wih0_b"), preferred_element_type=f32)
                    + wrow("b0_b"))
    run_layer("whh0_f", "whh0_b")

    # ---------------- layer 1: time-batched input projection ----------------
    h0f = hf_scr[...].astype(bf16)                                 # (T*Bp, H)
    h0b = hb_scr[...].astype(bf16)
    xpf_scr[...] = (jnp.dot(h0f, wmat("wih1_ff"), preferred_element_type=f32)
                    + jnp.dot(h0b, wmat("wih1_fb"), preferred_element_type=f32)
                    + wrow("b1_f"))
    xpb_scr[...] = (jnp.dot(h0f, wmat("wih1_bf"), preferred_element_type=f32)
                    + jnp.dot(h0b, wmat("wih1_bb"), preferred_element_type=f32)
                    + wrow("b1_b"))
    # TODO(synk): nn.LSTM inter-layer dropout (p=0.3) is train-mode only;
    # eval-mode semantics (no dropout) are implemented here.
    run_layer("whh1_f", "whh1_b")

    # ---------------------- attention (softmax over time) -------------------
    h1f = hf_scr[...]                                              # (T*Bp, H) f32
    h1b = hb_scr[...]
    # wa_* / ba / v are zero-padded to 128 lanes -> lanes >= H contribute
    # exactly 0 to the lane reduction below.
    e = jnp.tanh(
        jnp.dot(h1f.astype(bf16), wmat("wa_f"), preferred_element_type=f32)
        + jnp.dot(h1b.astype(bf16), wmat("wa_b"), preferred_element_type=f32)
        + wrow("ba"))                                              # (T*Bp, 128)
    score = jnp.sum(e * wrow("v"), axis=-1, keepdims=True)         # (T*Bp, 1)

    sc = [score[t * Bp:(t + 1) * Bp, :] for t in range(T)]         # (Bp, 1) each
    m = sc[0]
    for t in range(1, T):
        m = jnp.maximum(m, sc[t])
    es = [jnp.exp(sc[t] - m) for t in range(T)]
    denom = es[0]
    for t in range(1, T):
        denom = denom + es[t]
    inv = 1.0 / denom                                              # (Bp, 1)

    ctx_f = es[0] * h1f[0:Bp, :]
    ctx_b = es[0] * h1b[0:Bp, :]
    for t in range(1, T):
        ctx_f = ctx_f + es[t] * h1f[t * Bp:(t + 1) * Bp, :]
        ctx_b = ctx_b + es[t] * h1b[t * Bp:(t + 1) * Bp, :]
    ctx_f = ctx_f * inv
    ctx_b = ctx_b * inv

    # ---------------- FC head: VPU multiply + lane reduction ----------------
    wfc_f = wrow("wfc_f")[:, :H]                                   # (1, H)
    wfc_b = wrow("wfc_b")[:, :H]
    y = jnp.sum(ctx_f * wfc_f + ctx_b * wfc_b, axis=-1, keepdims=True)
    y_ref[...] = y + wrow("bfc")[:, :1]


# ----------------------------------------------------------------------------
# Parameter init (deterministic, PyTorch-like shapes/ranges) + slab packing.
# ----------------------------------------------------------------------------
def init_params(key, input_size=INPUT_SIZE, hidden=HIDDEN, num_layers=NUM_LAYERS):
    assert num_layers == 2 and hidden == HIDDEN and input_size == INPUT_SIZE, \
        "kernel is specialized to the module's small configuration"
    keys = iter(jax.random.split(key, 64))
    H = hidden
    k = 1.0 / (H ** 0.5)

    def unif(shape, lo, hi):
        return jax.random.uniform(next(keys), shape, jnp.float32, lo, hi)

    pieces = {}
    for layer in range(num_layers):
        din = input_size if layer == 0 else 2 * H
        for dname in ("f", "b"):                     # fwd, bwd direction
            wih = unif((4 * H, din), -k, k)          # PyTorch layout (4H, Din), gates i,f,g,o
            whh = unif((4 * H, H), -k, k)
            bih = unif((4 * H,), -k, k)
            bhh = unif((4 * H,), -k, k)
            wihT = wih.T                             # (Din, 4H)
            if layer == 0:
                pieces[f"wih0_{dname}"] = wihT                      # (F, 4H)
            else:
                pieces[f"wih1_{dname}f"] = wihT[:H]                 # from fwd input half
                pieces[f"wih1_{dname}b"] = wihT[H:]                 # from bwd input half
            pieces[f"whh{layer}_{dname}"] = whh.T                   # (H, 4H)
            pieces[f"b{layer}_{dname}"] = bih + bhh                 # (4H,)

    ka = 1.0 / ((2 * H) ** 0.5)
    wa = unif((H, 2 * H), -ka, ka)       # attention nn.Linear weight
    ba = unif((H,), -ka, ka)
    v = unif((H,), 0.0, 1.0)             # torch.rand
    wfc = unif((1, 2 * H), -ka, ka)      # fc nn.Linear weight
    bfc = unif((1,), -ka, ka)
    waT = wa.T                           # (2H, H)
    wfcT = wfc.T                         # (2H, 1)
    pieces["wa_f"] = waT[:H]
    pieces["wa_b"] = waT[H:]
    pieces["ba"] = ba
    pieces["v"] = v
    pieces["wfc_f"] = wfcT[:H, 0]
    pieces["wfc_b"] = wfcT[H:, 0]
    pieces["bfc"] = bfc

    slab = jnp.zeros((_SLAB_ROWS, LANES), jnp.float32)
    for name, arr in pieces.items():
        off, nrows = _LAYOUT[name]
        a = jnp.asarray(arr, jnp.float32)
        if a.ndim == 1:
            a = a[None, :]
        r, c = a.shape
        assert r <= nrows and c <= LANES
        slab = slab.at[off:off + r, :c].set(a)
    return {"slab": slab}


# ----------------------------------------------------------------------------
# Forward pass wrapper: one pallas_call for the whole model.
# ----------------------------------------------------------------------------
def crypto_lstm_forward(x, params):
    """x: (B, T, F) float32 -> (B, 1) float32 (same as CryptoLSTM.forward)."""
    B, T, F = x.shape
    assert F == INPUT_SIZE
    H = HIDDEN
    Bp = ((B + SUBLANE - 1) // SUBLANE) * SUBLANE   # pad batch to sublane width

    # One tiny layout step outside the kernel: pad batch + features,
    # go time-major, flatten to a lane-friendly (T*Bp, FP) slab.
    x_p = jnp.pad(x.astype(jnp.float32), ((0, Bp - B), (0, 0), (0, FP - F)))
    x_tm = jnp.transpose(x_p, (1, 0, 2)).reshape(T * Bp, FP)

    y = pl.pallas_call(
        functools.partial(_fused_kernel, T, Bp, H, _LAYOUT),
        out_shape=jax.ShapeDtypeStruct((Bp, 1), jnp.float32),
        in_specs=[pl.BlockSpec(memory_space=pltpu.MemorySpace.VMEM),
                  pl.BlockSpec(memory_space=pltpu.MemorySpace.VMEM)],
        out_specs=pl.BlockSpec(memory_space=pltpu.MemorySpace.VMEM),
        scratch_shapes=[
            pltpu.VMEM((T * Bp, 4 * H), jnp.float32),   # staged fwd input proj
            pltpu.VMEM((T * Bp, 4 * H), jnp.float32),   # staged bwd input proj
            pltpu.VMEM((T * Bp, H), jnp.float32),       # fwd hidden history
            pltpu.VMEM((T * Bp, H), jnp.float32),       # bwd hidden history
        ],
    )(x_tm, params["slab"])
    return y[:B]


if __name__ == "__main__":
    key = jax.random.PRNGKey(0)
    pkey, xkey = jax.random.split(key)
    params = init_params(pkey)
    x = jax.random.normal(xkey, (BATCH, SEQ, INPUT_SIZE), jnp.float32)

    y = jax.jit(crypto_lstm_forward)(x, params)
    y = jax.block_until_ready(y)
    assert y.shape == (BATCH, 1) and bool(jnp.all(jnp.isfinite(y)))
    print("KERNEL_OK")
</pallas_src>

<mosaic_0001>
module attributes {stable_mosaic.version = 11 : i64} {
  func.func @_fused_kernel(%arg0: memref<64x8xf32, #tpu.memory_space<vmem>>, %arg1: memref<352x128xf32, #tpu.memory_space<vmem>>, %arg2: memref<8x1xf32, #tpu.memory_space<vmem>>, %arg3: memref<64x128xf32, #tpu.memory_space<vmem>>, %arg4: memref<64x128xf32, #tpu.memory_space<vmem>>, %arg5: memref<64x32xf32, #tpu.memory_space<vmem>>, %arg6: memref<64x32xf32, #tpu.memory_space<vmem>>) attributes {dimension_semantics = [], scalar_prefetch = 0 : i64, scratch_operands = 4 : i64, tpu.core_type = #tpu.core_type<tc>} {
    %c0 = arith.constant 0 : index
    %c0_0 = arith.constant 0 : index
    %0 = vector.load %arg0[%c0, %c0_0] : memref<64x8xf32, #tpu.memory_space<vmem>>, vector<64x8xf32>
    %1 = arith.truncf %0 : vector<64x8xf32> to vector<64x8xbf16>
    %c0_1 = arith.constant 0 : index
    %c0_2 = arith.constant 0 : index
    %2 = vector.load %arg1[%c0_1, %c0_2] : memref<352x128xf32, #tpu.memory_space<vmem>>, vector<8x128xf32>
    %3 = arith.truncf %2 : vector<8x128xf32> to vector<8x128xbf16>
    %cst = arith.constant dense<0.000000e+00> : vector<64x128xf32>
    %4 = tpu.matmul %1, %3, %cst {dimension_numbers = #tpu.dot_dimension_numbers<[1], [0], [0], [1], [0, 0, 1, 1], [], []>} : vector<64x8xbf16>, vector<8x128xbf16>, vector<64x128xf32> -> vector<64x128xf32>
    %c336 = arith.constant 336 : index
    %c0_3 = arith.constant 0 : index
    %5 = vector.load %arg1[%c336, %c0_3] : memref<352x128xf32, #tpu.memory_space<vmem>>, vector<1x128xf32>
    %6 = vector.broadcast %5 : vector<1x128xf32> to vector<64x128xf32>
    %7 = arith.addf %4, %6 : vector<64x128xf32>
    %c0_4 = arith.constant 0 : index
    %c0_5 = arith.constant 0 : index
    %8 = vector.load %arg3[%c0_4, %c0_5] : memref<64x128xf32, #tpu.memory_space<vmem>>, vector<64x128xf32>
    tpu.vector_store %arg3[%c0_4, %c0_5], %7 {strides = array<i32>} : memref<64x128xf32, #tpu.memory_space<vmem>>, vector<64x128xf32>,
    %c8 = arith.constant 8 : index
    %c0_6 = arith.constant 0 : index
    %9 = vector.load %arg1[%c8, %c0_6] : memref<352x128xf32, #tpu.memory_space<vmem>>, vector<8x128xf32>
    %10 = arith.truncf %9 : vector<8x128xf32> to vector<8x128xbf16>
    %cst_7 = arith.constant dense<0.000000e+00> : vector<64x128xf32>
    %11 = tpu.matmul %1, %10, %cst_7 {dimension_numbers = #tpu.dot_dimension_numbers<[1], [0], [0], [1], [0, 0, 1, 1], [], []>} : vector<64x8xbf16>, vector<8x128xbf16>, vector<64x128xf32> -> vector<64x128xf32>
    %c337 = arith.constant 337 : index
    %c0_8 = arith.constant 0 : index
    %12 = vector.load %arg1[%c337, %c0_8] : memref<352x128xf32, #tpu.memory_space<vmem>>, vector<1x128xf32>
    %13 = vector.broadcast %12 : vector<1x128xf32> to vector<64x128xf32>
    %14 = arith.addf %11, %13 : vector<64x128xf32>
    %c0_9 = arith.constant 0 : index
    %c0_10 = arith.constant 0 : index
    %15 = vector.load %arg4[%c0_9, %c0_10] : memref<64x128xf32, #tpu.memory_space<vmem>>, vector<64x128xf32>
    tpu.vector_store %arg4[%c0_9, %c0_10], %14 {strides = array<i32>} : memref<64x128xf32, #tpu.memory_space<vmem>>, vector<64x128xf32>,
    %c16 = arith.constant 16 : index
    %c0_11 = arith.constant 0 : index
    %16 = vector.load %arg1[%c16, %c0_11] : memref<352x128xf32, #tpu.memory_space<vmem>>, vector<32x128xf32>
    %17 = arith.truncf %16 : vector<32x128xf32> to vector<32x128xbf16>
    %c48 = arith.constant 48 : index
    %c0_12 = arith.constant 0 : index
    %18 = vector.load %arg1[%c48, %c0_12] : memref<352x128xf32, #tpu.memory_space<vmem>>, vector<32x128xf32>
    %19 = arith.truncf %18 : vector<32x128xf32> to vector<32x128xbf16>
    %cst_13 = arith.constant 0.000000e+00 : f32
    %20 = vector.broadcast %cst_13 : f32 to vector<8x32xf32>
    %c0_14 = arith.constant 0 : index
    %c0_15 = arith.constant 0 : index
    %21 = vector.load %arg3[%c0_14, %c0_15] : memref<64x128xf32, #tpu.memory_space<vmem>>, vector<8x128xf32>
    %22 = arith.truncf %20 : vector<8x32xf32> to vector<8x32xbf16>
    %cst_16 = arith.constant dense<0.000000e+00> : vector<8x128xf32>
    %23 = tpu.matmul %22, %17, %cst_16 {dimension_numbers = #tpu.dot_dimension_numbers<[1], [0], [0], [1], [0, 0, 1, 1], [], []>} : vector<8x32xbf16>, vector<32x128xbf16>, vector<8x128xf32> -> vector<8x128xf32>
    %24 = arith.addf %21, %23 : vector<8x128xf32>
    %25 = arith.negf %24 : vector<8x128xf32>
    %26 = math.exp %25 : vector<8x128xf32>
    %cst_17 = arith.constant 1.000000e+00 : f32
    %27 = vector.broadcast %cst_17 : f32 to vector<8x128xf32>
    %28 = arith.addf %27, %26 : vector<8x128xf32>
    %29 = arith.divf %27, %28 : vector<8x128xf32>
    %30 = math.tanh %24 : vector<8x128xf32>
    %31 = vector.extract_strided_slice %29 {offsets = [0, 0], sizes = [8, 32], strides = [1, 1]} : vector<8x128xf32> to vector<8x32xf32>
    %32 = vector.extract_strided_slice %29 {offsets = [0, 32], sizes = [8, 32], strides = [1, 1]} : vector<8x128xf32> to vector<8x32xf32>
    %33 = vector.extract_strided_slice %30 {offsets = [0, 64], sizes = [8, 32], strides = [1, 1]} : vector<8x128xf32> to vector<8x32xf32>
    %34 = vector.extract_strided_slice %29 {offsets = [0, 96], sizes = [8, 32], strides = [1, 1]} : vector<8x128xf32> to vector<8x32xf32>
    %35 = arith.mulf %32, %20 : vector<8x32xf32>
    %36 = arith.mulf %31, %33 : vector<8x32xf32>
    %37 = arith.addf %35, %36 : vector<8x32xf32>
    %38 = math.tanh %37 : vector<8x32xf32>
    %39 = arith.mulf %34, %38 : vector<8x32xf32>
    %c0_18 = arith.constant 0 : index
    %c0_19 = arith.constant 0 : index
    %40 = vector.load %arg5[%c0_18, %c0_19] : memref<64x32xf32, #tpu.memory_space<vmem>>, vector<8x32xf32>
    tpu.vector_store %arg5[%c0_18, %c0_19], %39 {strides = array<i32>} : memref<64x32xf32, #tpu.memory_space<vmem>>, vector<8x32xf32>,
    %c56 = arith.constant 56 : index
    %c0_20 = arith.constant 0 : index
    %41 = vector.load %arg4[%c56, %c0_20] : memref<64x128xf32, #tpu.memory_space<vmem>>, vector<8x128xf32>
    %42 = arith.truncf %20 : vector<8x32xf32> to vector<8x32xbf16>
    %cst_21 = arith.constant dense<0.000000e+00> : vector<8x128xf32>
    %43 = tpu.matmul %42, %19, %cst_21 {dimension_numbers = #tpu.dot_dimension_numbers<[1], [0], [0], [1], [0, 0, 1, 1], [], []>} : vector<8x32xbf16>, vector<32x128xbf16>, vector<8x128xf32> -> vector<8x128xf32>
    %44 = arith.addf %41, %43 : vector<8x128xf32>
    %45 = arith.negf %44 : vector<8x128xf32>
    %46 = math.exp %45 : vector<8x128xf32>
    %cst_22 = arith.constant 1.000000e+00 : f32
    %47 = vector.broadcast %cst_22 : f32 to vector<8x128xf32>
    %48 = arith.addf %47, %46 : vector<8x128xf32>
    %49 = arith.divf %47, %48 : vector<8x128xf32>
    %50 = math.tanh %44 : vector<8x128xf32>
    %51 = vector.extract_strided_slice %49 {offsets = [0, 0], sizes = [8, 32], strides = [1, 1]} : vector<8x128xf32> to vector<8x32xf32>
    %52 = vector.extract_strided_slice %49 {offsets = [0, 32], sizes = [8, 32], strides = [1, 1]} : vector<8x128xf32> to vector<8x32xf32>
    %53 = vector.extract_strided_slice %50 {offsets = [0, 64], sizes = [8, 32], strides = [1, 1]} : vector<8x128xf32> to vector<8x32xf32>
    %54 = vector.extract_strided_slice %49 {offsets = [0, 96], sizes = [8, 32], strides = [1, 1]} : vector<8x128xf32> to vector<8x32xf32>
    %55 = arith.mulf %52, %20 : vector<8x32xf32>
    %56 = arith.mulf %51, %53 : vector<8x32xf32>
    %57 = arith.addf %55, %56 : vector<8x32xf32>
    %58 = math.tanh %57 : vector<8x32xf32>
    %59 = arith.mulf %54, %58 : vector<8x32xf32>
    %c56_23 = arith.constant 56 : index
    %c0_24 = arith.constant 0 : index
    %60 = vector.load %arg6[%c56_23, %c0_24] : memref<64x32xf32, #tpu.memory_space<vmem>>, vector<8x32xf32>
    tpu.vector_store %arg6[%c56_23, %c0_24], %59 {strides = array<i32>} : memref<64x32xf32, #tpu.memory_space<vmem>>, vector<8x32xf32>,
    %c8_25 = arith.constant 8 : index
    %c0_26 = arith.constant 0 : index
    %61 = vector.load %arg3[%c8_25, %c0_26] : memref<64x128xf32, #tpu.memory_space<vmem>>, vector<8x128xf32>
    %62 = arith.truncf %39 : vector<8x32xf32> to vector<8x32xbf16>
    %cst_27 = arith.constant dense<0.000000e+00> : vector<8x128xf32>
    %63 = tpu.matmul %62, %17, %cst_27 {dimension_numbers = #tpu.dot_dimension_numbers<[1], [0], [0], [1], [0, 0, 1, 1], [], []>} : vector<8x32xbf16>, vector<32x128xbf16>, vector<8x128xf32> -> vector<8x128xf32>
    %64 = arith.addf %61, %63 : vector<8x128xf32>
    %65 = arith.negf %64 : vector<8x128xf32>
    %66 = math.exp %65 : vector<8x128xf32>
    %cst_28 = arith.constant 1.000000e+00 : f32
    %67 = vector.broadcast %cst_28 : f32 to vector<8x128xf32>
    %68 = arith.addf %67, %66 : vector<8x128xf32>
    %69 = arith.divf %67, %68 : vector<8x128xf32>
    %70 = math.tanh %64 : vector<8x128xf32>
    %71 = vector.extract_strided_slice %69 {offsets = [0, 0], sizes = [8, 32], strides = [1, 1]} : vector<8x128xf32> to vector<8x32xf32>
    %72 = vector.extract_strided_slice %69 {offsets = [0, 32], sizes = [8, 32], strides = [1, 1]} : vector<8x128xf32> to vector<8x32xf32>
    %73 = vector.extract_strided_slice %70 {offsets = [0, 64], sizes = [8, 32], strides = [1, 1]} : vector<8x128xf32> to vector<8x32xf32>
    %74 = vector.extract_strided_slice %69 {offsets = [0, 96], sizes = [8, 32], strides = [1, 1]} : vector<8x128xf32> to vector<8x32xf32>
    %75 = arith.mulf %72, %37 : vector<8x32xf32>
    %76 = arith.mulf %71, %73 : vector<8x32xf32>
    %77 = arith.addf %75, %76 : vector<8x32xf32>
    %78 = math.tanh %77 : vector<8x32xf32>
    %79 = arith.mulf %74, %78 : vector<8x32xf32>
    %c8_29 = arith.constant 8 : index
    %c0_30 = arith.constant 0 : index
    %80 = vector.load %arg5[%c8_29, %c0_30] : memref<64x32xf32, #tpu.memory_space<vmem>>, vector<8x32xf32>
    tpu.vector_store %arg5[%c8_29, %c0_30], %79 {strides = array<i32>} : memref<64x32xf32, #tpu.memory_space<vmem>>, vector<8x32xf32>,
    %c48_31 = arith.constant 48 : index
    %c0_32 = arith.constant 0 : index
    %81 = vector.load %arg4[%c48_31, %c0_32] : memref<64x128xf32, #tpu.memory_space<vmem>>, vector<8x128xf32>
    %82 = arith.truncf %59 : vector<8x32xf32> to vector<8x32xbf16>
    %cst_33 = arith.constant dense<0.000000e+00> : vector<8x128xf32>
    %83 = tpu.matmul %82, %19, %cst_33 {dimension_numbers = #tpu.dot_dimension_numbers<[1], [0], [0], [1], [0, 0, 1, 1], [], []>} : vector<8x32xbf16>, vector<32x128xbf16>, vector<8x128xf32> -> vector<8x128xf32>
    %84 = arith.addf %81, %83 : vector<8x128xf32>
    %85 = arith.negf %84 : vector<8x128xf32>
    %86 = math.exp %85 : vector<8x128xf32>
    %cst_34 = arith.constant 1.000000e+00 : f32
    %87 = vector.broadcast %cst_34 : f32 to vector<8x128xf32>
    %88 = arith.addf %87, %86 : vector<8x128xf32>
    %89 = arith.divf %87, %88 : vector<8x128xf32>
    %90 = math.tanh %84 : vector<8x128xf32>
    %91 = vector.extract_strided_slice %89 {offsets = [0, 0], sizes = [8, 32], strides = [1, 1]} : vector<8x128xf32> to vector<8x32xf32>
    %92 = vector.extract_strided_slice %89 {offsets = [0, 32], sizes = [8, 32], strides = [1, 1]} : vector<8x128xf32> to vector<8x32xf32>
    %93 = vector.extract_strided_slice %90 {offsets = [0, 64], sizes = [8, 32], strides = [1, 1]} : vector<8x128xf32> to vector<8x32xf32>
    %94 = vector.extract_strided_slice %89 {offsets = [0, 96], sizes = [8, 32], strides = [1, 1]} : vector<8x128xf32> to vector<8x32xf32>
    %95 = arith.mulf %92, %57 : vector<8x32xf32>
    %96 = arith.mulf %91, %93 : vector<8x32xf32>
    %97 = arith.addf %95, %96 : vector<8x32xf32>
    %98 = math.tanh %97 : vector<8x32xf32>
    %99 = arith.mulf %94, %98 : vector<8x32xf32>
    %c48_35 = arith.constant 48 : index
    %c0_36 = arith.constant 0 : index
    %100 = vector.load %arg6[%c48_35, %c0_36] : memref<64x32xf32, #tpu.memory_space<vmem>>, vector<8x32xf32>
    tpu.vector_store %arg6[%c48_35, %c0_36], %99 {strides = array<i32>} : memref<64x32xf32, #tpu.memory_space<vmem>>, vector<8x32xf32>,
    %c16_37 = arith.constant 16 : index
    %c0_38 = arith.constant 0 : index
    %101 = vector.load %arg3[%c16_37, %c0_38] : memref<64x128xf32, #tpu.memory_space<vmem>>, vector<8x128xf32>
    %102 = arith.truncf %79 : vector<8x32xf32> to vector<8x32xbf16>
    %cst_39 = arith.constant dense<0.000000e+00> : vector<8x128xf32>
    %103 = tpu.matmul %102, %17, %cst_39 {dimension_numbers = #tpu.dot_dimension_numbers<[1], [0], [0], [1], [0, 0, 1, 1], [], []>} : vector<8x32xbf16>, vector<32x128xbf16>, vector<8x128xf32> -> vector<8x128xf32>
    %104 = arith.addf %101, %103 : vector<8x128xf32>
    %105 = arith.negf %104 : vector<8x128xf32>
    %106 = math.exp %105 : vector<8x128xf32>
    %cst_40 = arith.constant 1.000000e+00 : f32
    %107 = vector.broadcast %cst_40 : f32 to vector<8x128xf32>
    %108 = arith.addf %107, %106 : vector<8x128xf32>
    %109 = arith.divf %107, %108 : vector<8x128xf32>
    %110 = math.tanh %104 : vector<8x128xf32>
    %111 = vector.extract_strided_slice %109 {offsets = [0, 0], sizes = [8, 32], strides = [1, 1]} : vector<8x128xf32> to vector<8x32xf32>
    %112 = vector.extract_strided_slice %109 {offsets = [0, 32], sizes = [8, 32], strides = [1, 1]} : vector<8x128xf32> to vector<8x32xf32>
    %113 = vector.extract_strided_slice %110 {offsets = [0, 64], sizes = [8, 32], strides = [1, 1]} : vector<8x128xf32> to vector<8x32xf32>
    %114 = vector.extract_strided_slice %109 {offsets = [0, 96], sizes = [8, 32], strides = [1, 1]} : vector<8x128xf32> to vector<8x32xf32>
    %115 = arith.mulf %112, %77 : vector<8x32xf32>
    %116 = arith.mulf %111, %113 : vector<8x32xf32>
    %117 = arith.addf %115, %116 : vector<8x32xf32>
    %118 = math.tanh %117 : vector<8x32xf32>
    %119 = arith.mulf %114, %118 : vector<8x32xf32>
    %c16_41 = arith.constant 16 : index
    %c0_42 = arith.constant 0 : index
    %120 = vector.load %arg5[%c16_41, %c0_42] : memref<64x32xf32, #tpu.memory_space<vmem>>, vector<8x32xf32>
    tpu.vector_store %arg5[%c16_41, %c0_42], %119 {strides = array<i32>} : memref<64x32xf32, #tpu.memory_space<vmem>>, vector<8x32xf32>,
    %c40 = arith.constant 40 : index
    %c0_43 = arith.constant 0 : index
    %121 = vector.load %arg4[%c40, %c0_43] : memref<64x128xf32, #tpu.memory_space<vmem>>, vector<8x128xf32>
    %122 = arith.truncf %99 : vector<8x32xf32> to vector<8x32xbf16>
    %cst_44 = arith.constant dense<0.000000e+00> : vector<8x128xf32>
    %123 = tpu.matmul %122, %19, %cst_44 {dimension_numbers = #tpu.dot_dimension_numbers<[1], [0], [0], [1], [0, 0, 1, 1], [], []>} : vector<8x32xbf16>, vector<32x128xbf16>, vector<8x128xf32> -> vector<8x128xf32>
    %124 = arith.addf %121, %123 : vector<8x128xf32>
    %125 = arith.negf %124 : vector<8x128xf32>
    %126 = math.exp %125 : vector<8x128xf32>
    %cst_45 = arith.constant 1.000000e+00 : f32
    %127 = vector.broadcast %cst_45 : f32 to vector<8x128xf32>
    %128 = arith.addf %127, %126 : vector<8x128xf32>
    %129 = arith.divf %127, %128 : vector<8x128xf32>
    %130 = math.tanh %124 : vector<8x128xf32>
    %131 = vector.extract_strided_slice %129 {offsets = [0, 0], sizes = [8, 32], strides = [1, 1]} : vector<8x128xf32> to vector<8x32xf32>
    %132 = vector.extract_strided_slice %129 {offsets = [0, 32], sizes = [8, 32], strides = [1, 1]} : vector<8x128xf32> to vector<8x32xf32>
    %133 = vector.extract_strided_slice %130 {offsets = [0, 64], sizes = [8, 32], strides = [1, 1]} : vector<8x128xf32> to vector<8x32xf32>
    %134 = vector.extract_strided_slice %129 {offsets = [0, 96], sizes = [8, 32], strides = [1, 1]} : vector<8x128xf32> to vector<8x32xf32>
    %135 = arith.mulf %132, %97 : vector<8x32xf32>
    %136 = arith.mulf %131, %133 : vector<8x32xf32>
    %137 = arith.addf %135, %136 : vector<8x32xf32>
    %138 = math.tanh %137 : vector<8x32xf32>
    %139 = arith.mulf %134, %138 : vector<8x32xf32>
    %c40_46 = arith.constant 40 : index
    %c0_47 = arith.constant 0 : index
    %140 = vector.load %arg6[%c40_46, %c0_47] : memref<64x32xf32, #tpu.memory_space<vmem>>, vector<8x32xf32>
    tpu.vector_store %arg6[%c40_46, %c0_47], %139 {strides = array<i32>} : memref<64x32xf32, #tpu.memory_space<vmem>>, vector<8x32xf32>,
    %c24 = arith.constant 24 : index
    %c0_48 = arith.constant 0 : index
    %141 = vector.load %arg3[%c24, %c0_48] : memref<64x128xf32, #tpu.memory_space<vmem>>, vector<8x128xf32>
    %142 = arith.truncf %119 : vector<8x32xf32> to vector<8x32xbf16>
    %cst_49 = arith.constant dense<0.000000e+00> : vector<8x128xf32>
    %143 = tpu.matmul %142, %17, %cst_49 {dimension_numbers = #tpu.dot_dimension_numbers<[1], [0], [0], [1], [0, 0, 1, 1], [], []>} : vector<8x32xbf16>, vector<32x128xbf16>, vector<8x128xf32> -> vector<8x128xf32>
    %144 = arith.addf %141, %143 : vector<8x128xf32>
    %145 = arith.negf %144 : vector<8x128xf32>
    %146 = math.exp %145 : vector<8x128xf32>
    %cst_50 = arith.constant 1.000000e+00 : f32
    %147 = vector.broadcast %cst_50 : f32 to vector<8x128xf32>
    %148 = arith.addf %147, %146 : vector<8x128xf32>
    %149 = arith.divf %147, %148 : vector<8x128xf32>
    %150 = math.tanh %144 : vector<8x128xf32>
    %151 = vector.extract_strided_slice %149 {offsets = [0, 0], sizes = [8, 32], strides = [1, 1]} : vector<8x128xf32> to vector<8x32xf32>
    %152 = vector.extract_strided_slice %149 {offsets = [0, 32], sizes = [8, 32], strides = [1, 1]} : vector<8x128xf32> to vector<8x32xf32>
    %153 = vector.extract_strided_slice %150 {offsets = [0, 64], sizes = [8, 32], strides = [1, 1]} : vector<8x128xf32> to vector<8x32xf32>
    %154 = vector.extract_strided_slice %149 {offsets = [0, 96], sizes = [8, 32], strides = [1, 1]} : vector<8x128xf32> to vector<8x32xf32>
    %155 = arith.mulf %152, %117 : vector<8x32xf32>
    %156 = arith.mulf %151, %153 : vector<8x32xf32>
    %157 = arith.addf %155, %156 : vector<8x32xf32>
    %158 = math.tanh %157 : vector<8x32xf32>
    %159 = arith.mulf %154, %158 : vector<8x32xf32>
    %c24_51 = arith.constant 24 : index
    %c0_52 = arith.constant 0 : index
    %160 = vector.load %arg5[%c24_51, %c0_52] : memref<64x32xf32, #tpu.memory_space<vmem>>, vector<8x32xf32>
    tpu.vector_store %arg5[%c24_51, %c0_52], %159 {strides = array<i32>} : memref<64x32xf32, #tpu.memory_space<vmem>>, vector<8x32xf32>,
    %c32 = arith.constant 32 : index
    %c0_53 = arith.constant 0 : index
    %161 = vector.load %arg4[%c32, %c0_53] : memref<64x128xf32, #tpu.memory_space<vmem>>, vector<8x128xf32>
    %162 = arith.truncf %139 : vector<8x32xf32> to vector<8x32xbf16>
    %cst_54 = arith.constant dense<0.000000e+00> : vector<8x128xf32>
    %163 = tpu.matmul %162, %19, %cst_54 {dimension_numbers = #tpu.dot_dimension_numbers<[1], [0], [0], [1], [0, 0, 1, 1], [], []>} : vector<8x32xbf16>, vector<32x128xbf16>, vector<8x128xf32> -> vector<8x128xf32>
    %164 = arith.addf %161, %163 : vector<8x128xf32>
    %165 = arith.negf %164 : vector<8x128xf32>
    %166 = math.exp %165 : vector<8x128xf32>
    %cst_55 = arith.constant 1.000000e+00 : f32
    %167 = vector.broadcast %cst_55 : f32 to vector<8x128xf32>
    %168 = arith.addf %167, %166 : vector<8x128xf32>
    %169 = arith.divf %167, %168 : vector<8x128xf32>
    %170 = math.tanh %164 : vector<8x128xf32>
    %171 = vector.extract_strided_slice %169 {offsets = [0, 0], sizes = [8, 32], strides = [1, 1]} : vector<8x128xf32> to vector<8x32xf32>
    %172 = vector.extract_strided_slice %169 {offsets = [0, 32], sizes = [8, 32], strides = [1, 1]} : vector<8x128xf32> to vector<8x32xf32>
    %173 = vector.extract_strided_slice %170 {offsets = [0, 64], sizes = [8, 32], strides = [1, 1]} : vector<8x128xf32> to vector<8x32xf32>
    %174 = vector.extract_strided_slice %169 {offsets = [0, 96], sizes = [8, 32], strides = [1, 1]} : vector<8x128xf32> to vector<8x32xf32>
    %175 = arith.mulf %172, %137 : vector<8x32xf32>
    %176 = arith.mulf %171, %173 : vector<8x32xf32>
    %177 = arith.addf %175, %176 : vector<8x32xf32>
    %178 = math.tanh %177 : vector<8x32xf32>
    %179 = arith.mulf %174, %178 : vector<8x32xf32>
    %c32_56 = arith.constant 32 : index
    %c0_57 = arith.constant 0 : index
    %180 = vector.load %arg6[%c32_56, %c0_57] : memref<64x32xf32, #tpu.memory_space<vmem>>, vector<8x32xf32>
    tpu.vector_store %arg6[%c32_56, %c0_57], %179 {strides = array<i32>} : memref<64x32xf32, #tpu.memory_space<vmem>>, vector<8x32xf32>,
    %c32_58 = arith.constant 32 : index
    %c0_59 = arith.constant 0 : index
    %181 = vector.load %arg3[%c32_58, %c0_59] : memref<64x128xf32, #tpu.memory_space<vmem>>, vector<8x128xf32>
    %182 = arith.truncf %159 : vector<8x32xf32> to vector<8x32xbf16>
    %cst_60 = arith.constant dense<0.000000e+00> : vector<8x128xf32>
    %183 = tpu.matmul %182, %17, %cst_60 {dimension_numbers = #tpu.dot_dimension_numbers<[1], [0], [0], [1], [0, 0, 1, 1], [], []>} : vector<8x32xbf16>, vector<32x128xbf16>, vector<8x128xf32> -> vector<8x128xf32>
    %184 = arith.addf %181, %183 : vector<8x128xf32>
    %185 = arith.negf %184 : vector<8x128xf32>
    %186 = math.exp %185 : vector<8x128xf32>
    %cst_61 = arith.constant 1.000000e+00 : f32
    %187 = vector.broadcast %cst_61 : f32 to vector<8x128xf32>
    %188 = arith.addf %187, %186 : vector<8x128xf32>
    %189 = arith.divf %187, %188 : vector<8x128xf32>
    %190 = math.tanh %184 : vector<8x128xf32>
    %191 = vector.extract_strided_slice %189 {offsets = [0, 0], sizes = [8, 32], strides = [1, 1]} : vector<8x128xf32> to vector<8x32xf32>
    %192 = vector.extract_strided_slice %189 {offsets = [0, 32], sizes = [8, 32], strides = [1, 1]} : vector<8x128xf32> to vector<8x32xf32>
    %193 = vector.extract_strided_slice %190 {offsets = [0, 64], sizes = [8, 32], strides = [1, 1]} : vector<8x128xf32> to vector<8x32xf32>
    %194 = vector.extract_strided_slice %189 {offsets = [0, 96], sizes = [8, 32], strides = [1, 1]} : vector<8x128xf32> to vector<8x32xf32>
    %195 = arith.mulf %192, %157 : vector<8x32xf32>
    %196 = arith.mulf %191, %193 : vector<8x32xf32>
    %197 = arith.addf %195, %196 : vector<8x32xf32>
    %198 = math.tanh %197 : vector<8x32xf32>
    %199 = arith.mulf %194, %198 : vector<8x32xf32>
    %c32_62 = arith.constant 32 : index
    %c0_63 = arith.constant 0 : index
    %200 = vector.load %arg5[%c32_62, %c0_63] : memref<64x32xf32, #tpu.memory_space<vmem>>, vector<8x32xf32>
    tpu.vector_store %arg5[%c32_62, %c0_63], %199 {strides = array<i32>} : memref<64x32xf32, #tpu.memory_space<vmem>>, vector<8x32xf32>,
    %c24_64 = arith.constant 24 : index
    %c0_65 = arith.constant 0 : index
    %201 = vector.load %arg4[%c24_64, %c0_65] : memref<64x128xf32, #tpu.memory_space<vmem>>, vector<8x128xf32>
    %202 = arith.truncf %179 : vector<8x32xf32> to vector<8x32xbf16>
    %cst_66 = arith.constant dense<0.000000e+00> : vector<8x128xf32>
    %203 = tpu.matmul %202, %19, %cst_66 {dimension_numbers = #tpu.dot_dimension_numbers<[1], [0], [0], [1], [0, 0, 1, 1], [], []>} : vector<8x32xbf16>, vector<32x128xbf16>, vector<8x128xf32> -> vector<8x128xf32>
    %204 = arith.addf %201, %203 : vector<8x128xf32>
    %205 = arith.negf %204 : vector<8x128xf32>
    %206 = math.exp %205 : vector<8x128xf32>
    %cst_67 = arith.constant 1.000000e+00 : f32
    %207 = vector.broadcast %cst_67 : f32 to vector<8x128xf32>
    %208 = arith.addf %207, %206 : vector<8x128xf32>
    %209 = arith.divf %207, %208 : vector<8x128xf32>
    %210 = math.tanh %204 : vector<8x128xf32>
    %211 = vector.extract_strided_slice %209 {offsets = [0, 0], sizes = [8, 32], strides = [1, 1]} : vector<8x128xf32> to vector<8x32xf32>
    %212 = vector.extract_strided_slice %209 {offsets = [0, 32], sizes = [8, 32], strides = [1, 1]} : vector<8x128xf32> to vector<8x32xf32>
    %213 = vector.extract_strided_slice %210 {offsets = [0, 64], sizes = [8, 32], strides = [1, 1]} : vector<8x128xf32> to vector<8x32xf32>
    %214 = vector.extract_strided_slice %209 {offsets = [0, 96], sizes = [8, 32], strides = [1, 1]} : vector<8x128xf32> to vector<8x32xf32>
    %215 = arith.mulf %212, %177 : vector<8x32xf32>
    %216 = arith.mulf %211, %213 : vector<8x32xf32>
    %217 = arith.addf %215, %216 : vector<8x32xf32>
    %218 = math.tanh %217 : vector<8x32xf32>
    %219 = arith.mulf %214, %218 : vector<8x32xf32>
    %c24_68 = arith.constant 24 : index
    %c0_69 = arith.constant 0 : index
    %220 = vector.load %arg6[%c24_68, %c0_69] : memref<64x32xf32, #tpu.memory_space<vmem>>, vector<8x32xf32>
    tpu.vector_store %arg6[%c24_68, %c0_69], %219 {strides = array<i32>} : memref<64x32xf32, #tpu.memory_space<vmem>>, vector<8x32xf32>,
    %c40_70 = arith.constant 40 : index
    %c0_71 = arith.constant 0 : index
    %221 = vector.load %arg3[%c40_70, %c0_71] : memref<64x128xf32, #tpu.memory_space<vmem>>, vector<8x128xf32>
    %222 = arith.truncf %199 : vector<8x32xf32> to vector<8x32xbf16>
    %cst_72 = arith.constant dense<0.000000e+00> : vector<8x128xf32>
    %223 = tpu.matmul %222, %17, %cst_72 {dimension_numbers = #tpu.dot_dimension_numbers<[1], [0], [0], [1], [0, 0, 1, 1], [], []>} : vector<8x32xbf16>, vector<32x128xbf16>, vector<8x128xf32> -> vector<8x128xf32>
    %224 = arith.addf %221, %223 : vector<8x128xf32>
    %225 = arith.negf %224 : vector<8x128xf32>
    %226 = math.exp %225 : vector<8x128xf32>
    %cst_73 = arith.constant 1.000000e+00 : f32
    %227 = vector.broadcast %cst_73 : f32 to vector<8x128xf32>
    %228 = arith.addf %227, %226 : vector<8x128xf32>
    %229 = arith.divf %227, %228 : vector<8x128xf32>
    %230 = math.tanh %224 : vector<8x128xf32>
    %231 = vector.extract_strided_slice %229 {offsets = [0, 0], sizes = [8, 32], strides = [1, 1]} : vector<8x128xf32> to vector<8x32xf32>
    %232 = vector.extract_strided_slice %229 {offsets = [0, 32], sizes = [8, 32], strides = [1, 1]} : vector<8x128xf32> to vector<8x32xf32>
    %233 = vector.extract_strided_slice %230 {offsets = [0, 64], sizes = [8, 32], strides = [1, 1]} : vector<8x128xf32> to vector<8x32xf32>
    %234 = vector.extract_strided_slice %229 {offsets = [0, 96], sizes = [8, 32], strides = [1, 1]} : vector<8x128xf32> to vector<8x32xf32>
    %235 = arith.mulf %232, %197 : vector<8x32xf32>
    %236 = arith.mulf %231, %233 : vector<8x32xf32>
    %237 = arith.addf %235, %236 : vector<8x32xf32>
    %238 = math.tanh %237 : vector<8x32xf32>
    %239 = arith.mulf %234, %238 : vector<8x32xf32>
    %c40_74 = arith.constant 40 : index
    %c0_75 = arith.constant 0 : index
    %240 = vector.load %arg5[%c40_74, %c0_75] : memref<64x32xf32, #tpu.memory_space<vmem>>, vector<8x32xf32>
    tpu.vector_store %arg5[%c40_74, %c0_75], %239 {strides = array<i32>} : memref<64x32xf32, #tpu.memory_space<vmem>>, vector<8x32xf32>,
    %c16_76 = arith.constant 16 : index
    %c0_77 = arith.constant 0 : index
    %241 = vector.load %arg4[%c16_76, %c0_77] : memref<64x128xf32, #tpu.memory_space<vmem>>, vector<8x128xf32>
    %242 = arith.truncf %219 : vector<8x32xf32> to vector<8x32xbf16>
    %cst_78 = arith.constant dense<0.000000e+00> : vector<8x128xf32>
    %243 = tpu.matmul %242, %19, %cst_78 {dimension_numbers = #tpu.dot_dimension_numbers<[1], [0], [0], [1], [0, 0, 1, 1], [], []>} : vector<8x32xbf16>, vector<32x128xbf16>, vector<8x128xf32> -> vector<8x128xf32>
    %244 = arith.addf %241, %243 : vector<8x128xf32>
    %245 = arith.negf %244 : vector<8x128xf32>
    %246 = math.exp %245 : vector<8x128xf32>
    %cst_79 = arith.constant 1.000000e+00 : f32
    %247 = vector.broadcast %cst_79 : f32 to vector<8x128xf32>
    %248 = arith.addf %247, %246 : vector<8x128xf32>
    %249 = arith.divf %247, %248 : vector<8x128xf32>
    %250 = math.tanh %244 : vector<8x128xf32>
    %251 = vector.extract_strided_slice %249 {offsets = [0, 0], sizes = [8, 32], strides = [1, 1]} : vector<8x128xf32> to vector<8x32xf32>
    %252 = vector.extract_strided_slice %249 {offsets = [0, 32], sizes = [8, 32], strides = [1, 1]} : vector<8x128xf32> to vector<8x32xf32>
    %253 = vector.extract_strided_slice %250 {offsets = [0, 64], sizes = [8, 32], strides = [1, 1]} : vector<8x128xf32> to vector<8x32xf32>
    %254 = vector.extract_strided_slice %249 {offsets = [0, 96], sizes = [8, 32], strides = [1, 1]} : vector<8x128xf32> to vector<8x32xf32>
    %255 = arith.mulf %252, %217 : vector<8x32xf32>
    %256 = arith.mulf %251, %253 : vector<8x32xf32>
    %257 = arith.addf %255, %256 : vector<8x32xf32>
    %258 = math.tanh %257 : vector<8x32xf32>
    %259 = arith.mulf %254, %258 : vector<8x32xf32>
    %c16_80 = arith.constant 16 : index
    %c0_81 = arith.constant 0 : index
    %260 = vector.load %arg6[%c16_80, %c0_81] : memref<64x32xf32, #tpu.memory_space<vmem>>, vector<8x32xf32>
    tpu.vector_store %arg6[%c16_80, %c0_81], %259 {strides = array<i32>} : memref<64x32xf32, #tpu.memory_space<vmem>>, vector<8x32xf32>,
    %c48_82 = arith.constant 48 : index
    %c0_83 = arith.constant 0 : index
    %261 = vector.load %arg3[%c48_82, %c0_83] : memref<64x128xf32, #tpu.memory_space<vmem>>, vector<8x128xf32>
    %262 = arith.truncf %239 : vector<8x32xf32> to vector<8x32xbf16>
    %cst_84 = arith.constant dense<0.000000e+00> : vector<8x128xf32>
    %263 = tpu.matmul %262, %17, %cst_84 {dimension_numbers = #tpu.dot_dimension_numbers<[1], [0], [0], [1], [0, 0, 1, 1], [], []>} : vector<8x32xbf16>, vector<32x128xbf16>, vector<8x128xf32> -> vector<8x128xf32>
    %264 = arith.addf %261, %263 : vector<8x128xf32>
    %265 = arith.negf %264 : vector<8x128xf32>
    %266 = math.exp %265 : vector<8x128xf32>
    %cst_85 = arith.constant 1.000000e+00 : f32
    %267 = vector.broadcast %cst_85 : f32 to vector<8x128xf32>
    %268 = arith.addf %267, %266 : vector<8x128xf32>
    %269 = arith.divf %267, %268 : vector<8x128xf32>
    %270 = math.tanh %264 : vector<8x128xf32>
    %271 = vector.extract_strided_slice %269 {offsets = [0, 0], sizes = [8, 32], strides = [1, 1]} : vector<8x128xf32> to vector<8x32xf32>
    %272 = vector.extract_strided_slice %269 {offsets = [0, 32], sizes = [8, 32], strides = [1, 1]} : vector<8x128xf32> to vector<8x32xf32>
    %273 = vector.extract_strided_slice %270 {offsets = [0, 64], sizes = [8, 32], strides = [1, 1]} : vector<8x128xf32> to vector<8x32xf32>
    %274 = vector.extract_strided_slice %269 {offsets = [0, 96], sizes = [8, 32], strides = [1, 1]} : vector<8x128xf32> to vector<8x32xf32>
    %275 = arith.mulf %272, %237 : vector<8x32xf32>
    %276 = arith.mulf %271, %273 : vector<8x32xf32>
    %277 = arith.addf %275, %276 : vector<8x32xf32>
    %278 = math.tanh %277 : vector<8x32xf32>
    %279 = arith.mulf %274, %278 : vector<8x32xf32>
    %c48_86 = arith.constant 48 : index
    %c0_87 = arith.constant 0 : index
    %280 = vector.load %arg5[%c48_86, %c0_87] : memref<64x32xf32, #tpu.memory_space<vmem>>, vector<8x32xf32>
    tpu.vector_store %arg5[%c48_86, %c0_87], %279 {strides = array<i32>} : memref<64x32xf32, #tpu.memory_space<vmem>>, vector<8x32xf32>,
    %c8_88 = arith.constant 8 : index
    %c0_89 = arith.constant 0 : index
    %281 = vector.load %arg4[%c8_88, %c0_89] : memref<64x128xf32, #tpu.memory_space<vmem>>, vector<8x128xf32>
    %282 = arith.truncf %259 : vector<8x32xf32> to vector<8x32xbf16>
    %cst_90 = arith.constant dense<0.000000e+00> : vector<8x128xf32>
    %283 = tpu.matmul %282, %19, %cst_90 {dimension_numbers = #tpu.dot_dimension_numbers<[1], [0], [0], [1], [0, 0, 1, 1], [], []>} : vector<8x32xbf16>, vector<32x128xbf16>, vector<8x128xf32> -> vector<8x128xf32>
    %284 = arith.addf %281, %283 : vector<8x128xf32>
    %285 = arith.negf %284 : vector<8x128xf32>
    %286 = math.exp %285 : vector<8x128xf32>
    %cst_91 = arith.constant 1.000000e+00 : f32
    %287 = vector.broadcast %cst_91 : f32 to vector<8x128xf32>
    %288 = arith.addf %287, %286 : vector<8x128xf32>
    %289 = arith.divf %287, %288 : vector<8x128xf32>
    %290 = math.tanh %284 : vector<8x128xf32>
    %291 = vector.extract_strided_slice %289 {offsets = [0, 0], sizes = [8, 32], strides = [1, 1]} : vector<8x128xf32> to vector<8x32xf32>
    %292 = vector.extract_strided_slice %289 {offsets = [0, 32], sizes = [8, 32], strides = [1, 1]} : vector<8x128xf32> to vector<8x32xf32>
    %293 = vector.extract_strided_slice %290 {offsets = [0, 64], sizes = [8, 32], strides = [1, 1]} : vector<8x128xf32> to vector<8x32xf32>
    %294 = vector.extract_strided_slice %289 {offsets = [0, 96], sizes = [8, 32], strides = [1, 1]} : vector<8x128xf32> to vector<8x32xf32>
    %295 = arith.mulf %292, %257 : vector<8x32xf32>
    %296 = arith.mulf %291, %293 : vector<8x32xf32>
    %297 = arith.addf %295, %296 : vector<8x32xf32>
    %298 = math.tanh %297 : vector<8x32xf32>
    %299 = arith.mulf %294, %298 : vector<8x32xf32>
    %c8_92 = arith.constant 8 : index
    %c0_93 = arith.constant 0 : index
    %300 = vector.load %arg6[%c8_92, %c0_93] : memref<64x32xf32, #tpu.memory_space<vmem>>, vector<8x32xf32>
    tpu.vector_store %arg6[%c8_92, %c0_93], %299 {strides = array<i32>} : memref<64x32xf32, #tpu.memory_space<vmem>>, vector<8x32xf32>,
    %c56_94 = arith.constant 56 : index
    %c0_95 = arith.constant 0 : index
    %301 = vector.load %arg3[%c56_94, %c0_95] : memref<64x128xf32, #tpu.memory_space<vmem>>, vector<8x128xf32>
    %302 = arith.truncf %279 : vector<8x32xf32> to vector<8x32xbf16>
    %cst_96 = arith.constant dense<0.000000e+00> : vector<8x128xf32>
    %303 = tpu.matmul %302, %17, %cst_96 {dimension_numbers = #tpu.dot_dimension_numbers<[1], [0], [0], [1], [0, 0, 1, 1], [], []>} : vector<8x32xbf16>, vector<32x128xbf16>, vector<8x128xf32> -> vector<8x128xf32>
    %304 = arith.addf %301, %303 : vector<8x128xf32>
    %305 = arith.negf %304 : vector<8x128xf32>
    %306 = math.exp %305 : vector<8x128xf32>
    %cst_97 = arith.constant 1.000000e+00 : f32
    %307 = vector.broadcast %cst_97 : f32 to vector<8x128xf32>
    %308 = arith.addf %307, %306 : vector<8x128xf32>
    %309 = arith.divf %307, %308 : vector<8x128xf32>
    %310 = math.tanh %304 : vector<8x128xf32>
    %311 = vector.extract_strided_slice %309 {offsets = [0, 0], sizes = [8, 32], strides = [1, 1]} : vector<8x128xf32> to vector<8x32xf32>
    %312 = vector.extract_strided_slice %309 {offsets = [0, 32], sizes = [8, 32], strides = [1, 1]} : vector<8x128xf32> to vector<8x32xf32>
    %313 = vector.extract_strided_slice %310 {offsets = [0, 64], sizes = [8, 32], strides = [1, 1]} : vector<8x128xf32> to vector<8x32xf32>
    %314 = vector.extract_strided_slice %309 {offsets = [0, 96], sizes = [8, 32], strides = [1, 1]} : vector<8x128xf32> to vector<8x32xf32>
    %315 = arith.mulf %312, %277 : vector<8x32xf32>
    %316 = arith.mulf %311, %313 : vector<8x32xf32>
    %317 = arith.addf %315, %316 : vector<8x32xf32>
    %318 = math.tanh %317 : vector<8x32xf32>
    %319 = arith.mulf %314, %318 : vector<8x32xf32>
    %c56_98 = arith.constant 56 : index
    %c0_99 = arith.constant 0 : index
    %320 = vector.load %arg5[%c56_98, %c0_99] : memref<64x32xf32, #tpu.memory_space<vmem>>, vector<8x32xf32>
    tpu.vector_store %arg5[%c56_98, %c0_99], %319 {strides = array<i32>} : memref<64x32xf32, #tpu.memory_space<vmem>>, vector<8x32xf32>,
    %c0_100 = arith.constant 0 : index
    %c0_101 = arith.constant 0 : index
    %321 = vector.load %arg4[%c0_100, %c0_101] : memref<64x128xf32, #tpu.memory_space<vmem>>, vector<8x128xf32>
    %322 = arith.truncf %299 : vector<8x32xf32> to vector<8x32xbf16>
    %cst_102 = arith.constant dense<0.000000e+00> : vector<8x128xf32>
    %323 = tpu.matmul %322, %19, %cst_102 {dimension_numbers = #tpu.dot_dimension_numbers<[1], [0], [0], [1], [0, 0, 1, 1], [], []>} : vector<8x32xbf16>, vector<32x128xbf16>, vector<8x128xf32> -> vector<8x128xf32>
    %324 = arith.addf %321, %323 : vector<8x128xf32>
    %325 = arith.negf %324 : vector<8x128xf32>
    %326 = math.exp %325 : vector<8x128xf32>
    %cst_103 = arith.constant 1.000000e+00 : f32
    %327 = vector.broadcast %cst_103 : f32 to vector<8x128xf32>
    %328 = arith.addf %327, %326 : vector<8x128xf32>
    %329 = arith.divf %327, %328 : vector<8x128xf32>
    %330 = math.tanh %324 : vector<8x128xf32>
    %331 = vector.extract_strided_slice %329 {offsets = [0, 0], sizes = [8, 32], strides = [1, 1]} : vector<8x128xf32> to vector<8x32xf32>
    %332 = vector.extract_strided_slice %329 {offsets = [0, 32], sizes = [8, 32], strides = [1, 1]} : vector<8x128xf32> to vector<8x32xf32>
    %333 = vector.extract_strided_slice %330 {offsets = [0, 64], sizes = [8, 32], strides = [1, 1]} : vector<8x128xf32> to vector<8x32xf32>
    %334 = vector.extract_strided_slice %329 {offsets = [0, 96], sizes = [8, 32], strides = [1, 1]} : vector<8x128xf32> to vector<8x32xf32>
    %335 = arith.mulf %332, %297 : vector<8x32xf32>
    %336 = arith.mulf %331, %333 : vector<8x32xf32>
    %337 = arith.addf %335, %336 : vector<8x32xf32>
    %338 = math.tanh %337 : vector<8x32xf32>
    %339 = arith.mulf %334, %338 : vector<8x32xf32>
    %c0_104 = arith.constant 0 : index
    %c0_105 = arith.constant 0 : index
    %340 = vector.load %arg6[%c0_104, %c0_105] : memref<64x32xf32, #tpu.memory_space<vmem>>, vector<8x32xf32>
    tpu.vector_store %arg6[%c0_104, %c0_105], %339 {strides = array<i32>} : memref<64x32xf32, #tpu.memory_space<vmem>>, vector<8x32xf32>,
    %c0_106 = arith.constant 0 : index
    %c0_107 = arith.constant 0 : index
    %341 = vector.load %arg5[%c0_106, %c0_107] : memref<64x32xf32, #tpu.memory_space<vmem>>, vector<64x32xf32>
    %342 = arith.truncf %341 : vector<64x32xf32> to vector<64x32xbf16>
    %c0_108 = arith.constant 0 : index
    %c0_109 = arith.constant 0 : index
    %343 = vector.load %arg6[%c0_108, %c0_109] : memref<64x32xf32, #tpu.memory_space<vmem>>, vector<64x32xf32>
    %344 = arith.truncf %343 : vector<64x32xf32> to vector<64x32xbf16>
    %c80 = arith.constant 80 : index
    %c0_110 = arith.constant 0 : index
    %345 = vector.load %arg1[%c80, %c0_110] : memref<352x128xf32, #tpu.memory_space<vmem>>, vector<32x128xf32>
    %346 = arith.truncf %345 : vector<32x128xf32> to vector<32x128xbf16>
    %cst_111 = arith.constant dense<0.000000e+00> : vector<64x128xf32>
    %347 = tpu.matmul %342, %346, %cst_111 {dimension_numbers = #tpu.dot_dimension_numbers<[1], [0], [0], [1], [0, 0, 1, 1], [], []>} : vector<64x32xbf16>, vector<32x128xbf16>, vector<64x128xf32> -> vector<64x128xf32>
    %c112 = arith.constant 112 : index
    %c0_112 = arith.constant 0 : index
    %348 = vector.load %arg1[%c112, %c0_112] : memref<352x128xf32, #tpu.memory_space<vmem>>, vector<32x128xf32>
    %349 = arith.truncf %348 : vector<32x128xf32> to vector<32x128xbf16>
    %cst_113 = arith.constant dense<0.000000e+00> : vector<64x128xf32>
    %350 = tpu.matmul %344, %349, %cst_113 {dimension_numbers = #tpu.dot_dimension_numbers<[1], [0], [0], [1], [0, 0, 1, 1], [], []>} : vector<64x32xbf16>, vector<32x128xbf16>, vector<64x128xf32> -> vector<64x128xf32>
    %351 = arith.addf %347, %350 : vector<64x128xf32>
    %c338 = arith.constant 338 : index
    %c0_114 = arith.constant 0 : index
    %352 = vector.load %arg1[%c338, %c0_114] : memref<352x128xf32, #tpu.memory_space<vmem>>, vector<1x128xf32>
    %353 = vector.broadcast %352 : vector<1x128xf32> to vector<64x128xf32>
    %354 = arith.addf %351, %353 : vector<64x128xf32>
    %c0_115 = arith.constant 0 : index
    %c0_116 = arith.constant 0 : index
    %355 = vector.load %arg3[%c0_115, %c0_116] : memref<64x128xf32, #tpu.memory_space<vmem>>, vector<64x128xf32>
    tpu.vector_store %arg3[%c0_115, %c0_116], %354 {strides = array<i32>} : memref<64x128xf32, #tpu.memory_space<vmem>>, vector<64x128xf32>,
    %c144 = arith.constant 144 : index
    %c0_117 = arith.constant 0 : index
    %356 = vector.load %arg1[%c144, %c0_117] : memref<352x128xf32, #tpu.memory_space<vmem>>, vector<32x128xf32>
    %357 = arith.truncf %356 : vector<32x128xf32> to vector<32x128xbf16>
    %cst_118 = arith.constant dense<0.000000e+00> : vector<64x128xf32>
    %358 = tpu.matmul %342, %357, %cst_118 {dimension_numbers = #tpu.dot_dimension_numbers<[1], [0], [0], [1], [0, 0, 1, 1], [], []>} : vector<64x32xbf16>, vector<32x128xbf16>, vector<64x128xf32> -> vector<64x128xf32>
    %c176 = arith.constant 176 : index
    %c0_119 = arith.constant 0 : index
    %359 = vector.load %arg1[%c176, %c0_119] : memref<352x128xf32, #tpu.memory_space<vmem>>, vector<32x128xf32>
    %360 = arith.truncf %359 : vector<32x128xf32> to vector<32x128xbf16>
    %cst_120 = arith.constant dense<0.000000e+00> : vector<64x128xf32>
    %361 = tpu.matmul %344, %360, %cst_120 {dimension_numbers = #tpu.dot_dimension_numbers<[1], [0], [0], [1], [0, 0, 1, 1], [], []>} : vector<64x32xbf16>, vector<32x128xbf16>, vector<64x128xf32> -> vector<64x128xf32>
    %362 = arith.addf %358, %361 : vector<64x128xf32>
    %c339 = arith.constant 339 : index
    %c0_121 = arith.constant 0 : index
    %363 = vector.load %arg1[%c339, %c0_121] : memref<352x128xf32, #tpu.memory_space<vmem>>, vector<1x128xf32>
    %364 = vector.broadcast %363 : vector<1x128xf32> to vector<64x128xf32>
    %365 = arith.addf %362, %364 : vector<64x128xf32>
    %c0_122 = arith.constant 0 : index
    %c0_123 = arith.constant 0 : index
    %366 = vector.load %arg4[%c0_122, %c0_123] : memref<64x128xf32, #tpu.memory_space<vmem>>, vector<64x128xf32>
    tpu.vector_store %arg4[%c0_122, %c0_123], %365 {strides = array<i32>} : memref<64x128xf32, #tpu.memory_space<vmem>>, vector<64x128xf32>,
    %c208 = arith.constant 208 : index
    %c0_124 = arith.constant 0 : index
    %367 = vector.load %arg1[%c208, %c0_124] : memref<352x128xf32, #tpu.memory_space<vmem>>, vector<32x128xf32>
    %368 = arith.truncf %367 : vector<32x128xf32> to vector<32x128xbf16>
    %c240 = arith.constant 240 : index
    %c0_125 = arith.constant 0 : index
    %369 = vector.load %arg1[%c240, %c0_125] : memref<352x128xf32, #tpu.memory_space<vmem>>, vector<32x128xf32>
    %370 = arith.truncf %369 : vector<32x128xf32> to vector<32x128xbf16>
    %cst_126 = arith.constant 0.000000e+00 : f32
    %371 = vector.broadcast %cst_126 : f32 to vector<8x32xf32>
    %c0_127 = arith.constant 0 : index
    %c0_128 = arith.constant 0 : index
    %372 = vector.load %arg3[%c0_127, %c0_128] : memref<64x128xf32, #tpu.memory_space<vmem>>, vector<8x128xf32>
    %373 = arith.truncf %371 : vector<8x32xf32> to vector<8x32xbf16>
    %cst_129 = arith.constant dense<0.000000e+00> : vector<8x128xf32>
    %374 = tpu.matmul %373, %368, %cst_129 {dimension_numbers = #tpu.dot_dimension_numbers<[1], [0], [0], [1], [0, 0, 1, 1], [], []>} : vector<8x32xbf16>, vector<32x128xbf16>, vector<8x128xf32> -> vector<8x128xf32>
    %375 = arith.addf %372, %374 : vector<8x128xf32>
    %376 = arith.negf %375 : vector<8x128xf32>
    %377 = math.exp %376 : vector<8x128xf32>
    %cst_130 = arith.constant 1.000000e+00 : f32
    %378 = vector.broadcast %cst_130 : f32 to vector<8x128xf32>
    %379 = arith.addf %378, %377 : vector<8x128xf32>
    %380 = arith.divf %378, %379 : vector<8x128xf32>
    %381 = math.tanh %375 : vector<8x128xf32>
    %382 = vector.extract_strided_slice %380 {offsets = [0, 0], sizes = [8, 32], strides = [1, 1]} : vector<8x128xf32> to vector<8x32xf32>
    %383 = vector.extract_strided_slice %380 {offsets = [0, 32], sizes = [8, 32], strides = [1, 1]} : vector<8x128xf32> to vector<8x32xf32>
    %384 = vector.extract_strided_slice %381 {offsets = [0, 64], sizes = [8, 32], strides = [1, 1]} : vector<8x128xf32> to vector<8x32xf32>
    %385 = vector.extract_strided_slice %380 {offsets = [0, 96], sizes = [8, 32], strides = [1, 1]} : vector<8x128xf32> to vector<8x32xf32>
    %386 = arith.mulf %383, %371 : vector<8x32xf32>
    %387 = arith.mulf %382, %384 : vector<8x32xf32>
    %388 = arith.addf %386, %387 : vector<8x32xf32>
    %389 = math.tanh %388 : vector<8x32xf32>
    %390 = arith.mulf %385, %389 : vector<8x32xf32>
    %c0_131 = arith.constant 0 : index
    %c0_132 = arith.constant 0 : index
    %391 = vector.load %arg5[%c0_131, %c0_132] : memref<64x32xf32, #tpu.memory_space<vmem>>, vector<8x32xf32>
    tpu.vector_store %arg5[%c0_131, %c0_132], %390 {strides = array<i32>} : memref<64x32xf32, #tpu.memory_space<vmem>>, vector<8x32xf32>,
    %c56_133 = arith.constant 56 : index
    %c0_134 = arith.constant 0 : index
    %392 = vector.load %arg4[%c56_133, %c0_134] : memref<64x128xf32, #tpu.memory_space<vmem>>, vector<8x128xf32>
    %393 = arith.truncf %371 : vector<8x32xf32> to vector<8x32xbf16>
    %cst_135 = arith.constant dense<0.000000e+00> : vector<8x128xf32>
    %394 = tpu.matmul %393, %370, %cst_135 {dimension_numbers = #tpu.dot_dimension_numbers<[1], [0], [0], [1], [0, 0, 1, 1], [], []>} : vector<8x32xbf16>, vector<32x128xbf16>, vector<8x128xf32> -> vector<8x128xf32>
    %395 = arith.addf %392, %394 : vector<8x128xf32>
    %396 = arith.negf %395 : vector<8x128xf32>
    %397 = math.exp %396 : vector<8x128xf32>
    %cst_136 = arith.constant 1.000000e+00 : f32
    %398 = vector.broadcast %cst_136 : f32 to vector<8x128xf32>
    %399 = arith.addf %398, %397 : vector<8x128xf32>
    %400 = arith.divf %398, %399 : vector<8x128xf32>
    %401 = math.tanh %395 : vector<8x128xf32>
    %402 = vector.extract_strided_slice %400 {offsets = [0, 0], sizes = [8, 32], strides = [1, 1]} : vector<8x128xf32> to vector<8x32xf32>
    %403 = vector.extract_strided_slice %400 {offsets = [0, 32], sizes = [8, 32], strides = [1, 1]} : vector<8x128xf32> to vector<8x32xf32>
    %404 = vector.extract_strided_slice %401 {offsets = [0, 64], sizes = [8, 32], strides = [1, 1]} : vector<8x128xf32> to vector<8x32xf32>
    %405 = vector.extract_strided_slice %400 {offsets = [0, 96], sizes = [8, 32], strides = [1, 1]} : vector<8x128xf32> to vector<8x32xf32>
    %406 = arith.mulf %403, %371 : vector<8x32xf32>
    %407 = arith.mulf %402, %404 : vector<8x32xf32>
    %408 = arith.addf %406, %407 : vector<8x32xf32>
    %409 = math.tanh %408 : vector<8x32xf32>
    %410 = arith.mulf %405, %409 : vector<8x32xf32>
    %c56_137 = arith.constant 56 : index
    %c0_138 = arith.constant 0 : index
    %411 = vector.load %arg6[%c56_137, %c0_138] : memref<64x32xf32, #tpu.memory_space<vmem>>, vector<8x32xf32>
    tpu.vector_store %arg6[%c56_137, %c0_138], %410 {strides = array<i32>} : memref<64x32xf32, #tpu.memory_space<vmem>>, vector<8x32xf32>,
    %c8_139 = arith.constant 8 : index
    %c0_140 = arith.constant 0 : index
    %412 = vector.load %arg3[%c8_139, %c0_140] : memref<64x128xf32, #tpu.memory_space<vmem>>, vector<8x128xf32>
    %413 = arith.truncf %390 : vector<8x32xf32> to vector<8x32xbf16>
    %cst_141 = arith.constant dense<0.000000e+00> : vector<8x128xf32>
    %414 = tpu.matmul %413, %368, %cst_141 {dimension_numbers = #tpu.dot_dimension_numbers<[1], [0], [0], [1], [0, 0, 1, 1], [], []>} : vector<8x32xbf16>, vector<32x128xbf16>, vector<8x128xf32> -> vector<8x128xf32>
    %415 = arith.addf %412, %414 : vector<8x128xf32>
    %416 = arith.negf %415 : vector<8x128xf32>
    %417 = math.exp %416 : vector<8x128xf32>
    %cst_142 = arith.constant 1.000000e+00 : f32
    %418 = vector.broadcast %cst_142 : f32 to vector<8x128xf32>
    %419 = arith.addf %418, %417 : vector<8x128xf32>
    %420 = arith.divf %418, %419 : vector<8x128xf32>
    %421 = math.tanh %415 : vector<8x128xf32>
    %422 = vector.extract_strided_slice %420 {offsets = [0, 0], sizes = [8, 32], strides = [1, 1]} : vector<8x128xf32> to vector<8x32xf32>
    %423 = vector.extract_strided_slice %420 {offsets = [0, 32], sizes = [8, 32], strides = [1, 1]} : vector<8x128xf32> to vector<8x32xf32>
    %424 = vector.extract_strided_slice %421 {offsets = [0, 64], sizes = [8, 32], strides = [1, 1]} : vector<8x128xf32> to vector<8x32xf32>
    %425 = vector.extract_strided_slice %420 {offsets = [0, 96], sizes = [8, 32], strides = [1, 1]} : vector<8x128xf32> to vector<8x32xf32>
    %426 = arith.mulf %423, %388 : vector<8x32xf32>
    %427 = arith.mulf %422, %424 : vector<8x32xf32>
    %428 = arith.addf %426, %427 : vector<8x32xf32>
    %429 = math.tanh %428 : vector<8x32xf32>
    %430 = arith.mulf %425, %429 : vector<8x32xf32>
    %c8_143 = arith.constant 8 : index
    %c0_144 = arith.constant 0 : index
    %431 = vector.load %arg5[%c8_143, %c0_144] : memref<64x32xf32, #tpu.memory_space<vmem>>, vector<8x32xf32>
    tpu.vector_store %arg5[%c8_143, %c0_144], %430 {strides = array<i32>} : memref<64x32xf32, #tpu.memory_space<vmem>>, vector<8x32xf32>,
    %c48_145 = arith.constant 48 : index
    %c0_146 = arith.constant 0 : index
    %432 = vector.load %arg4[%c48_145, %c0_146] : memref<64x128xf32, #tpu.memory_space<vmem>>, vector<8x128xf32>
    %433 = arith.truncf %410 : vector<8x32xf32> to vector<8x32xbf16>
    %cst_147 = arith.constant dense<0.000000e+00> : vector<8x128xf32>
    %434 = tpu.matmul %433, %370, %cst_147 {dimension_numbers = #tpu.dot_dimension_numbers<[1], [0], [0], [1], [0, 0, 1, 1], [], []>} : vector<8x32xbf16>, vector<32x128xbf16>, vector<8x128xf32> -> vector<8x128xf32>
    %435 = arith.addf %432, %434 : vector<8x128xf32>
    %436 = arith.negf %435 : vector<8x128xf32>
    %437 = math.exp %436 : vector<8x128xf32>
    %cst_148 = arith.constant 1.000000e+00 : f32
    %438 = vector.broadcast %cst_148 : f32 to vector<8x128xf32>
    %439 = arith.addf %438, %437 : vector<8x128xf32>
    %440 = arith.divf %438, %439 : vector<8x128xf32>
    %441 = math.tanh %435 : vector<8x128xf32>
    %442 = vector.extract_strided_slice %440 {offsets = [0, 0], sizes = [8, 32], strides = [1, 1]} : vector<8x128xf32> to vector<8x32xf32>
    %443 = vector.extract_strided_slice %440 {offsets = [0, 32], sizes = [8, 32], strides = [1, 1]} : vector<8x128xf32> to vector<8x32xf32>
    %444 = vector.extract_strided_slice %441 {offsets = [0, 64], sizes = [8, 32], strides = [1, 1]} : vector<8x128xf32> to vector<8x32xf32>
    %445 = vector.extract_strided_slice %440 {offsets = [0, 96], sizes = [8, 32], strides = [1, 1]} : vector<8x128xf32> to vector<8x32xf32>
    %446 = arith.mulf %443, %408 : vector<8x32xf32>
    %447 = arith.mulf %442, %444 : vector<8x32xf32>
    %448 = arith.addf %446, %447 : vector<8x32xf32>
    %449 = math.tanh %448 : vector<8x32xf32>
    %450 = arith.mulf %445, %449 : vector<8x32xf32>
    %c48_149 = arith.constant 48 : index
    %c0_150 = arith.constant 0 : index
    %451 = vector.load %arg6[%c48_149, %c0_150] : memref<64x32xf32, #tpu.memory_space<vmem>>, vector<8x32xf32>
    tpu.vector_store %arg6[%c48_149, %c0_150], %450 {strides = array<i32>} : memref<64x32xf32, #tpu.memory_space<vmem>>, vector<8x32xf32>,
    %c16_151 = arith.constant 16 : index
    %c0_152 = arith.constant 0 : index
    %452 = vector.load %arg3[%c16_151, %c0_152] : memref<64x128xf32, #tpu.memory_space<vmem>>, vector<8x128xf32>
    %453 = arith.truncf %430 : vector<8x32xf32> to vector<8x32xbf16>
    %cst_153 = arith.constant dense<0.000000e+00> : vector<8x128xf32>
    %454 = tpu.matmul %453, %368, %cst_153 {dimension_numbers = #tpu.dot_dimension_numbers<[1], [0], [0], [1], [0, 0, 1, 1], [], []>} : vector<8x32xbf16>, vector<32x128xbf16>, vector<8x128xf32> -> vector<8x128xf32>
    %455 = arith.addf %452, %454 : vector<8x128xf32>
    %456 = arith.negf %455 : vector<8x128xf32>
    %457 = math.exp %456 : vector<8x128xf32>
    %cst_154 = arith.constant 1.000000e+00 : f32
    %458 = vector.broadcast %cst_154 : f32 to vector<8x128xf32>
    %459 = arith.addf %458, %457 : vector<8x128xf32>
    %460 = arith.divf %458, %459 : vector<8x128xf32>
    %461 = math.tanh %455 : vector<8x128xf32>
    %462 = vector.extract_strided_slice %460 {offsets = [0, 0], sizes = [8, 32], strides = [1, 1]} : vector<8x128xf32> to vector<8x32xf32>
    %463 = vector.extract_strided_slice %460 {offsets = [0, 32], sizes = [8, 32], strides = [1, 1]} : vector<8x128xf32> to vector<8x32xf32>
    %464 = vector.extract_strided_slice %461 {offsets = [0, 64], sizes = [8, 32], strides = [1, 1]} : vector<8x128xf32> to vector<8x32xf32>
    %465 = vector.extract_strided_slice %460 {offsets = [0, 96], sizes = [8, 32], strides = [1, 1]} : vector<8x128xf32> to vector<8x32xf32>
    %466 = arith.mulf %463, %428 : vector<8x32xf32>
    %467 = arith.mulf %462, %464 : vector<8x32xf32>
    %468 = arith.addf %466, %467 : vector<8x32xf32>
    %469 = math.tanh %468 : vector<8x32xf32>
    %470 = arith.mulf %465, %469 : vector<8x32xf32>
    %c16_155 = arith.constant 16 : index
    %c0_156 = arith.constant 0 : index
    %471 = vector.load %arg5[%c16_155, %c0_156] : memref<64x32xf32, #tpu.memory_space<vmem>>, vector<8x32xf32>
    tpu.vector_store %arg5[%c16_155, %c0_156], %470 {strides = array<i32>} : memref<64x32xf32, #tpu.memory_space<vmem>>, vector<8x32xf32>,
    %c40_157 = arith.constant 40 : index
    %c0_158 = arith.constant 0 : index
    %472 = vector.load %arg4[%c40_157, %c0_158] : memref<64x128xf32, #tpu.memory_space<vmem>>, vector<8x128xf32>
    %473 = arith.truncf %450 : vector<8x32xf32> to vector<8x32xbf16>
    %cst_159 = arith.constant dense<0.000000e+00> : vector<8x128xf32>
    %474 = tpu.matmul %473, %370, %cst_159 {dimension_numbers = #tpu.dot_dimension_numbers<[1], [0], [0], [1], [0, 0, 1, 1], [], []>} : vector<8x32xbf16>, vector<32x128xbf16>, vector<8x128xf32> -> vector<8x128xf32>
    %475 = arith.addf %472, %474 : vector<8x128xf32>
    %476 = arith.negf %475 : vector<8x128xf32>
    %477 = math.exp %476 : vector<8x128xf32>
    %cst_160 = arith.constant 1.000000e+00 : f32
    %478 = vector.broadcast %cst_160 : f32 to vector<8x128xf32>
    %479 = arith.addf %478, %477 : vector<8x128xf32>
    %480 = arith.divf %478, %479 : vector<8x128xf32>
    %481 = math.tanh %475 : vector<8x128xf32>
    %482 = vector.extract_strided_slice %480 {offsets = [0, 0], sizes = [8, 32], strides = [1, 1]} : vector<8x128xf32> to vector<8x32xf32>
    %483 = vector.extract_strided_slice %480 {offsets = [0, 32], sizes = [8, 32], strides = [1, 1]} : vector<8x128xf32> to vector<8x32xf32>
    %484 = vector.extract_strided_slice %481 {offsets = [0, 64], sizes = [8, 32], strides = [1, 1]} : vector<8x128xf32> to vector<8x32xf32>
    %485 = vector.extract_strided_slice %480 {offsets = [0, 96], sizes = [8, 32], strides = [1, 1]} : vector<8x128xf32> to vector<8x32xf32>
    %486 = arith.mulf %483, %448 : vector<8x32xf32>
    %487 = arith.mulf %482, %484 : vector<8x32xf32>
    %488 = arith.addf %486, %487 : vector<8x32xf32>
    %489 = math.tanh %488 : vector<8x32xf32>
    %490 = arith.mulf %485, %489 : vector<8x32xf32>
    %c40_161 = arith.constant 40 : index
    %c0_162 = arith.constant 0 : index
    %491 = vector.load %arg6[%c40_161, %c0_162] : memref<64x32xf32, #tpu.memory_space<vmem>>, vector<8x32xf32>
    tpu.vector_store %arg6[%c40_161, %c0_162], %490 {strides = array<i32>} : memref<64x32xf32, #tpu.memory_space<vmem>>, vector<8x32xf32>,
    %c24_163 = arith.constant 24 : index
    %c0_164 = arith.constant 0 : index
    %492 = vector.load %arg3[%c24_163, %c0_164] : memref<64x128xf32, #tpu.memory_space<vmem>>, vector<8x128xf32>
    %493 = arith.truncf %470 : vector<8x32xf32> to vector<8x32xbf16>
    %cst_165 = arith.constant dense<0.000000e+00> : vector<8x128xf32>
    %494 = tpu.matmul %493, %368, %cst_165 {dimension_numbers = #tpu.dot_dimension_numbers<[1], [0], [0], [1], [0, 0, 1, 1], [], []>} : vector<8x32xbf16>, vector<32x128xbf16>, vector<8x128xf32> -> vector<8x128xf32>
    %495 = arith.addf %492, %494 : vector<8x128xf32>
    %496 = arith.negf %495 : vector<8x128xf32>
    %497 = math.exp %496 : vector<8x128xf32>
    %cst_166 = arith.constant 1.000000e+00 : f32
    %498 = vector.broadcast %cst_166 : f32 to vector<8x128xf32>
    %499 = arith.addf %498, %497 : vector<8x128xf32>
    %500 = arith.divf %498, %499 : vector<8x128xf32>
    %501 = math.tanh %495 : vector<8x128xf32>
    %502 = vector.extract_strided_slice %500 {offsets = [0, 0], sizes = [8, 32], strides = [1, 1]} : vector<8x128xf32> to vector<8x32xf32>
    %503 = vector.extract_strided_slice %500 {offsets = [0, 32], sizes = [8, 32], strides = [1, 1]} : vector<8x128xf32> to vector<8x32xf32>
    %504 = vector.extract_strided_slice %501 {offsets = [0, 64], sizes = [8, 32], strides = [1, 1]} : vector<8x128xf32> to vector<8x32xf32>
    %505 = vector.extract_strided_slice %500 {offsets = [0, 96], sizes = [8, 32], strides = [1, 1]} : vector<8x128xf32> to vector<8x32xf32>
    %506 = arith.mulf %503, %468 : vector<8x32xf32>
    %507 = arith.mulf %502, %504 : vector<8x32xf32>
    %508 = arith.addf %506, %507 : vector<8x32xf32>
    %509 = math.tanh %508 : vector<8x32xf32>
    %510 = arith.mulf %505, %509 : vector<8x32xf32>
    %c24_167 = arith.constant 24 : index
    %c0_168 = arith.constant 0 : index
    %511 = vector.load %arg5[%c24_167, %c0_168] : memref<64x32xf32, #tpu.memory_space<vmem>>, vector<8x32xf32>
    tpu.vector_store %arg5[%c24_167, %c0_168], %510 {strides = array<i32>} : memref<64x32xf32, #tpu.memory_space<vmem>>, vector<8x32xf32>,
    %c32_169 = arith.constant 32 : index
    %c0_170 = arith.constant 0 : index
    %512 = vector.load %arg4[%c32_169, %c0_170] : memref<64x128xf32, #tpu.memory_space<vmem>>, vector<8x128xf32>
    %513 = arith.truncf %490 : vector<8x32xf32> to vector<8x32xbf16>
    %cst_171 = arith.constant dense<0.000000e+00> : vector<8x128xf32>
    %514 = tpu.matmul %513, %370, %cst_171 {dimension_numbers = #tpu.dot_dimension_numbers<[1], [0], [0], [1], [0, 0, 1, 1], [], []>} : vector<8x32xbf16>, vector<32x128xbf16>, vector<8x128xf32> -> vector<8x128xf32>
    %515 = arith.addf %512, %514 : vector<8x128xf32>
    %516 = arith.negf %515 : vector<8x128xf32>
    %517 = math.exp %516 : vector<8x128xf32>
    %cst_172 = arith.constant 1.000000e+00 : f32
    %518 = vector.broadcast %cst_172 : f32 to vector<8x128xf32>
    %519 = arith.addf %518, %517 : vector<8x128xf32>
    %520 = arith.divf %518, %519 : vector<8x128xf32>
    %521 = math.tanh %515 : vector<8x128xf32>
    %522 = vector.extract_strided_slice %520 {offsets = [0, 0], sizes = [8, 32], strides = [1, 1]} : vector<8x128xf32> to vector<8x32xf32>
    %523 = vector.extract_strided_slice %520 {offsets = [0, 32], sizes = [8, 32], strides = [1, 1]} : vector<8x128xf32> to vector<8x32xf32>
    %524 = vector.extract_strided_slice %521 {offsets = [0, 64], sizes = [8, 32], strides = [1, 1]} : vector<8x128xf32> to vector<8x32xf32>
    %525 = vector.extract_strided_slice %520 {offsets = [0, 96], sizes = [8, 32], strides = [1, 1]} : vector<8x128xf32> to vector<8x32xf32>
    %526 = arith.mulf %523, %488 : vector<8x32xf32>
    %527 = arith.mulf %522, %524 : vector<8x32xf32>
    %528 = arith.addf %526, %527 : vector<8x32xf32>
    %529 = math.tanh %528 : vector<8x32xf32>
    %530 = arith.mulf %525, %529 : vector<8x32xf32>
    %c32_173 = arith.constant 32 : index
    %c0_174 = arith.constant 0 : index
    %531 = vector.load %arg6[%c32_173, %c0_174] : memref<64x32xf32, #tpu.memory_space<vmem>>, vector<8x32xf32>
    tpu.vector_store %arg6[%c32_173, %c0_174], %530 {strides = array<i32>} : memref<64x32xf32, #tpu.memory_space<vmem>>, vector<8x32xf32>,
    %c32_175 = arith.constant 32 : index
    %c0_176 = arith.constant 0 : index
    %532 = vector.load %arg3[%c32_175, %c0_176] : memref<64x128xf32, #tpu.memory_space<vmem>>, vector<8x128xf32>
    %533 = arith.truncf %510 : vector<8x32xf32> to vector<8x32xbf16>
    %cst_177 = arith.constant dense<0.000000e+00> : vector<8x128xf32>
    %534 = tpu.matmul %533, %368, %cst_177 {dimension_numbers = #tpu.dot_dimension_numbers<[1], [0], [0], [1], [0, 0, 1, 1], [], []>} : vector<8x32xbf16>, vector<32x128xbf16>, vector<8x128xf32> -> vector<8x128xf32>
    %535 = arith.addf %532, %534 : vector<8x128xf32>
    %536 = arith.negf %535 : vector<8x128xf32>
    %537 = math.exp %536 : vector<8x128xf32>
    %cst_178 = arith.constant 1.000000e+00 : f32
    %538 = vector.broadcast %cst_178 : f32 to vector<8x128xf32>
    %539 = arith.addf %538, %537 : vector<8x128xf32>
    %540 = arith.divf %538, %539 : vector<8x128xf32>
    %541 = math.tanh %535 : vector<8x128xf32>
    %542 = vector.extract_strided_slice %540 {offsets = [0, 0], sizes = [8, 32], strides = [1, 1]} : vector<8x128xf32> to vector<8x32xf32>
    %543 = vector.extract_strided_slice %540 {offsets = [0, 32], sizes = [8, 32], strides = [1, 1]} : vector<8x128xf32> to vector<8x32xf32>
    %544 = vector.extract_strided_slice %541 {offsets = [0, 64], sizes = [8, 32], strides = [1, 1]} : vector<8x128xf32> to vector<8x32xf32>
    %545 = vector.extract_strided_slice %540 {offsets = [0, 96], sizes = [8, 32], strides = [1, 1]} : vector<8x128xf32> to vector<8x32xf32>
    %546 = arith.mulf %543, %508 : vector<8x32xf32>
    %547 = arith.mulf %542, %544 : vector<8x32xf32>
    %548 = arith.addf %546, %547 : vector<8x32xf32>
    %549 = math.tanh %548 : vector<8x32xf32>
    %550 = arith.mulf %545, %549 : vector<8x32xf32>
    %c32_179 = arith.constant 32 : index
    %c0_180 = arith.constant 0 : index
    %551 = vector.load %arg5[%c32_179, %c0_180] : memref<64x32xf32, #tpu.memory_space<vmem>>, vector<8x32xf32>
    tpu.vector_store %arg5[%c32_179, %c0_180], %550 {strides = array<i32>} : memref<64x32xf32, #tpu.memory_space<vmem>>, vector<8x32xf32>,
    %c24_181 = arith.constant 24 : index
    %c0_182 = arith.constant 0 : index
    %552 = vector.load %arg4[%c24_181, %c0_182] : memref<64x128xf32, #tpu.memory_space<vmem>>, vector<8x128xf32>
    %553 = arith.truncf %530 : vector<8x32xf32> to vector<8x32xbf16>
    %cst_183 = arith.constant dense<0.000000e+00> : vector<8x128xf32>
    %554 = tpu.matmul %553, %370, %cst_183 {dimension_numbers = #tpu.dot_dimension_numbers<[1], [0], [0], [1], [0, 0, 1, 1], [], []>} : vector<8x32xbf16>, vector<32x128xbf16>, vector<8x128xf32> -> vector<8x128xf32>
    %555 = arith.addf %552, %554 : vector<8x128xf32>
    %556 = arith.negf %555 : vector<8x128xf32>
    %557 = math.exp %556 : vector<8x128xf32>
    %cst_184 = arith.constant 1.000000e+00 : f32
    %558 = vector.broadcast %cst_184 : f32 to vector<8x128xf32>
    %559 = arith.addf %558, %557 : vector<8x128xf32>
    %560 = arith.divf %558, %559 : vector<8x128xf32>
    %561 = math.tanh %555 : vector<8x128xf32>
    %562 = vector.extract_strided_slice %560 {offsets = [0, 0], sizes = [8, 32], strides = [1, 1]} : vector<8x128xf32> to vector<8x32xf32>
    %563 = vector.extract_strided_slice %560 {offsets = [0, 32], sizes = [8, 32], strides = [1, 1]} : vector<8x128xf32> to vector<8x32xf32>
    %564 = vector.extract_strided_slice %561 {offsets = [0, 64], sizes = [8, 32], strides = [1, 1]} : vector<8x128xf32> to vector<8x32xf32>
    %565 = vector.extract_strided_slice %560 {offsets = [0, 96], sizes = [8, 32], strides = [1, 1]} : vector<8x128xf32> to vector<8x32xf32>
    %566 = arith.mulf %563, %528 : vector<8x32xf32>
    %567 = arith.mulf %562, %564 : vector<8x32xf32>
    %568 = arith.addf %566, %567 : vector<8x32xf32>
    %569 = math.tanh %568 : vector<8x32xf32>
    %570 = arith.mulf %565, %569 : vector<8x32xf32>
    %c24_185 = arith.constant 24 : index
    %c0_186 = arith.constant 0 : index
    %571 = vector.load %arg6[%c24_185, %c0_186] : memref<64x32xf32, #tpu.memory_space<vmem>>, vector<8x32xf32>
    tpu.vector_store %arg6[%c24_185, %c0_186], %570 {strides = array<i32>} : memref<64x32xf32, #tpu.memory_space<vmem>>, vector<8x32xf32>,
    %c40_187 = arith.constant 40 : index
    %c0_188 = arith.constant 0 : index
    %572 = vector.load %arg3[%c40_187, %c0_188] : memref<64x128xf32, #tpu.memory_space<vmem>>, vector<8x128xf32>
    %573 = arith.truncf %550 : vector<8x32xf32> to vector<8x32xbf16>
    %cst_189 = arith.constant dense<0.000000e+00> : vector<8x128xf32>
    %574 = tpu.matmul %573, %368, %cst_189 {dimension_numbers = #tpu.dot_dimension_numbers<[1], [0], [0], [1], [0, 0, 1, 1], [], []>} : vector<8x32xbf16>, vector<32x128xbf16>, vector<8x128xf32> -> vector<8x128xf32>
    %575 = arith.addf %572, %574 : vector<8x128xf32>
    %576 = arith.negf %575 : vector<8x128xf32>
    %577 = math.exp %576 : vector<8x128xf32>
    %cst_190 = arith.constant 1.000000e+00 : f32
    %578 = vector.broadcast %cst_190 : f32 to vector<8x128xf32>
    %579 = arith.addf %578, %577 : vector<8x128xf32>
    %580 = arith.divf %578, %579 : vector<8x128xf32>
    %581 = math.tanh %575 : vector<8x128xf32>
    %582 = vector.extract_strided_slice %580 {offsets = [0, 0], sizes = [8, 32], strides = [1, 1]} : vector<8x128xf32> to vector<8x32xf32>
    %583 = vector.extract_strided_slice %580 {offsets = [0, 32], sizes = [8, 32], strides = [1, 1]} : vector<8x128xf32> to vector<8x32xf32>
    %584 = vector.extract_strided_slice %581 {offsets = [0, 64], sizes = [8, 32], strides = [1, 1]} : vector<8x128xf32> to vector<8x32xf32>
    %585 = vector.extract_strided_slice %580 {offsets = [0, 96], sizes = [8, 32], strides = [1, 1]} : vector<8x128xf32> to vector<8x32xf32>
    %586 = arith.mulf %583, %548 : vector<8x32xf32>
    %587 = arith.mulf %582, %584 : vector<8x32xf32>
    %588 = arith.addf %586, %587 : vector<8x32xf32>
    %589 = math.tanh %588 : vector<8x32xf32>
    %590 = arith.mulf %585, %589 : vector<8x32xf32>
    %c40_191 = arith.constant 40 : index
    %c0_192 = arith.constant 0 : index
    %591 = vector.load %arg5[%c40_191, %c0_192] : memref<64x32xf32, #tpu.memory_space<vmem>>, vector<8x32xf32>
    tpu.vector_store %arg5[%c40_191, %c0_192], %590 {strides = array<i32>} : memref<64x32xf32, #tpu.memory_space<vmem>>, vector<8x32xf32>,
    %c16_193 = arith.constant 16 : index
    %c0_194 = arith.constant 0 : index
    %592 = vector.load %arg4[%c16_193, %c0_194] : memref<64x128xf32, #tpu.memory_space<vmem>>, vector<8x128xf32>
    %593 = arith.truncf %570 : vector<8x32xf32> to vector<8x32xbf16>
    %cst_195 = arith.constant dense<0.000000e+00> : vector<8x128xf32>
    %594 = tpu.matmul %593, %370, %cst_195 {dimension_numbers = #tpu.dot_dimension_numbers<[1], [0], [0], [1], [0, 0, 1, 1], [], []>} : vector<8x32xbf16>, vector<32x128xbf16>, vector<8x128xf32> -> vector<8x128xf32>
    %595 = arith.addf %592, %594 : vector<8x128xf32>
    %596 = arith.negf %595 : vector<8x128xf32>
    %597 = math.exp %596 : vector<8x128xf32>
    %cst_196 = arith.constant 1.000000e+00 : f32
    %598 = vector.broadcast %cst_196 : f32 to vector<8x128xf32>
    %599 = arith.addf %598, %597 : vector<8x128xf32>
    %600 = arith.divf %598, %599 : vector<8x128xf32>
    %601 = math.tanh %595 : vector<8x128xf32>
    %602 = vector.extract_strided_slice %600 {offsets = [0, 0], sizes = [8, 32], strides = [1, 1]} : vector<8x128xf32> to vector<8x32xf32>
    %603 = vector.extract_strided_slice %600 {offsets = [0, 32], sizes = [8, 32], strides = [1, 1]} : vector<8x128xf32> to vector<8x32xf32>
    %604 = vector.extract_strided_slice %601 {offsets = [0, 64], sizes = [8, 32], strides = [1, 1]} : vector<8x128xf32> to vector<8x32xf32>
    %605 = vector.extract_strided_slice %600 {offsets = [0, 96], sizes = [8, 32], strides = [1, 1]} : vector<8x128xf32> to vector<8x32xf32>
    %606 = arith.mulf %603, %568 : vector<8x32xf32>
    %607 = arith.mulf %602, %604 : vector<8x32xf32>
    %608 = arith.addf %606, %607 : vector<8x32xf32>
    %609 = math.tanh %608 : vector<8x32xf32>
    %610 = arith.mulf %605, %609 : vector<8x32xf32>
    %c16_197 = arith.constant 16 : index
    %c0_198 = arith.constant 0 : index
    %611 = vector.load %arg6[%c16_197, %c0_198] : memref<64x32xf32, #tpu.memory_space<vmem>>, vector<8x32xf32>
    tpu.vector_store %arg6[%c16_197, %c0_198], %610 {strides = array<i32>} : memref<64x32xf32, #tpu.memory_space<vmem>>, vector<8x32xf32>,
    %c48_199 = arith.constant 48 : index
    %c0_200 = arith.constant 0 : index
    %612 = vector.load %arg3[%c48_199, %c0_200] : memref<64x128xf32, #tpu.memory_space<vmem>>, vector<8x128xf32>
    %613 = arith.truncf %590 : vector<8x32xf32> to vector<8x32xbf16>
    %cst_201 = arith.constant dense<0.000000e+00> : vector<8x128xf32>
    %614 = tpu.matmul %613, %368, %cst_201 {dimension_numbers = #tpu.dot_dimension_numbers<[1], [0], [0], [1], [0, 0, 1, 1], [], []>} : vector<8x32xbf16>, vector<32x128xbf16>, vector<8x128xf32> -> vector<8x128xf32>
    %615 = arith.addf %612, %614 : vector<8x128xf32>
    %616 = arith.negf %615 : vector<8x128xf32>
    %617 = math.exp %616 : vector<8x128xf32>
    %cst_202 = arith.constant 1.000000e+00 : f32
    %618 = vector.broadcast %cst_202 : f32 to vector<8x128xf32>
    %619 = arith.addf %618, %617 : vector<8x128xf32>
    %620 = arith.divf %618, %619 : vector<8x128xf32>
    %621 = math.tanh %615 : vector<8x128xf32>
    %622 = vector.extract_strided_slice %620 {offsets = [0, 0], sizes = [8, 32], strides = [1, 1]} : vector<8x128xf32> to vector<8x32xf32>
    %623 = vector.extract_strided_slice %620 {offsets = [0, 32], sizes = [8, 32], strides = [1, 1]} : vector<8x128xf32> to vector<8x32xf32>
    %624 = vector.extract_strided_slice %621 {offsets = [0, 64], sizes = [8, 32], strides = [1, 1]} : vector<8x128xf32> to vector<8x32xf32>
    %625 = vector.extract_strided_slice %620 {offsets = [0, 96], sizes = [8, 32], strides = [1, 1]} : vector<8x128xf32> to vector<8x32xf32>
    %626 = arith.mulf %623, %588 : vector<8x32xf32>
    %627 = arith.mulf %622, %624 : vector<8x32xf32>
    %628 = arith.addf %626, %627 : vector<8x32xf32>
    %629 = math.tanh %628 : vector<8x32xf32>
    %630 = arith.mulf %625, %629 : vector<8x32xf32>
    %c48_203 = arith.constant 48 : index
    %c0_204 = arith.constant 0 : index
    %631 = vector.load %arg5[%c48_203, %c0_204] : memref<64x32xf32, #tpu.memory_space<vmem>>, vector<8x32xf32>
    tpu.vector_store %arg5[%c48_203, %c0_204], %630 {strides = array<i32>} : memref<64x32xf32, #tpu.memory_space<vmem>>, vector<8x32xf32>,
    %c8_205 = arith.constant 8 : index
    %c0_206 = arith.constant 0 : index
    %632 = vector.load %arg4[%c8_205, %c0_206] : memref<64x128xf32, #tpu.memory_space<vmem>>, vector<8x128xf32>
    %633 = arith.truncf %610 : vector<8x32xf32> to vector<8x32xbf16>
    %cst_207 = arith.constant dense<0.000000e+00> : vector<8x128xf32>
    %634 = tpu.matmul %633, %370, %cst_207 {dimension_numbers = #tpu.dot_dimension_numbers<[1], [0], [0], [1], [0, 0, 1, 1], [], []>} : vector<8x32xbf16>, vector<32x128xbf16>, vector<8x128xf32> -> vector<8x128xf32>
    %635 = arith.addf %632, %634 : vector<8x128xf32>
    %636 = arith.negf %635 : vector<8x128xf32>
    %637 = math.exp %636 : vector<8x128xf32>
    %cst_208 = arith.constant 1.000000e+00 : f32
    %638 = vector.broadcast %cst_208 : f32 to vector<8x128xf32>
    %639 = arith.addf %638, %637 : vector<8x128xf32>
    %640 = arith.divf %638, %639 : vector<8x128xf32>
    %641 = math.tanh %635 : vector<8x128xf32>
    %642 = vector.extract_strided_slice %640 {offsets = [0, 0], sizes = [8, 32], strides = [1, 1]} : vector<8x128xf32> to vector<8x32xf32>
    %643 = vector.extract_strided_slice %640 {offsets = [0, 32], sizes = [8, 32], strides = [1, 1]} : vector<8x128xf32> to vector<8x32xf32>
    %644 = vector.extract_strided_slice %641 {offsets = [0, 64], sizes = [8, 32], strides = [1, 1]} : vector<8x128xf32> to vector<8x32xf32>
    %645 = vector.extract_strided_slice %640 {offsets = [0, 96], sizes = [8, 32], strides = [1, 1]} : vector<8x128xf32> to vector<8x32xf32>
    %646 = arith.mulf %643, %608 : vector<8x32xf32>
    %647 = arith.mulf %642, %644 : vector<8x32xf32>
    %648 = arith.addf %646, %647 : vector<8x32xf32>
    %649 = math.tanh %648 : vector<8x32xf32>
    %650 = arith.mulf %645, %649 : vector<8x32xf32>
    %c8_209 = arith.constant 8 : index
    %c0_210 = arith.constant 0 : index
    %651 = vector.load %arg6[%c8_209, %c0_210] : memref<64x32xf32, #tpu.memory_space<vmem>>, vector<8x32xf32>
    tpu.vector_store %arg6[%c8_209, %c0_210], %650 {strides = array<i32>} : memref<64x32xf32, #tpu.memory_space<vmem>>, vector<8x32xf32>,
    %c56_211 = arith.constant 56 : index
    %c0_212 = arith.constant 0 : index
    %652 = vector.load %arg3[%c56_211, %c0_212] : memref<64x128xf32, #tpu.memory_space<vmem>>, vector<8x128xf32>
    %653 = arith.truncf %630 : vector<8x32xf32> to vector<8x32xbf16>
    %cst_213 = arith.constant dense<0.000000e+00> : vector<8x128xf32>
    %654 = tpu.matmul %653, %368, %cst_213 {dimension_numbers = #tpu.dot_dimension_numbers<[1], [0], [0], [1], [0, 0, 1, 1], [], []>} : vector<8x32xbf16>, vector<32x128xbf16>, vector<8x128xf32> -> vector<8x128xf32>
    %655 = arith.addf %652, %654 : vector<8x128xf32>
    %656 = arith.negf %655 : vector<8x128xf32>
    %657 = math.exp %656 : vector<8x128xf32>
    %cst_214 = arith.constant 1.000000e+00 : f32
    %658 = vector.broadcast %cst_214 : f32 to vector<8x128xf32>
    %659 = arith.addf %658, %657 : vector<8x128xf32>
    %660 = arith.divf %658, %659 : vector<8x128xf32>
    %661 = math.tanh %655 : vector<8x128xf32>
    %662 = vector.extract_strided_slice %660 {offsets = [0, 0], sizes = [8, 32], strides = [1, 1]} : vector<8x128xf32> to vector<8x32xf32>
    %663 = vector.extract_strided_slice %660 {offsets = [0, 32], sizes = [8, 32], strides = [1, 1]} : vector<8x128xf32> to vector<8x32xf32>
    %664 = vector.extract_strided_slice %661 {offsets = [0, 64], sizes = [8, 32], strides = [1, 1]} : vector<8x128xf32> to vector<8x32xf32>
    %665 = vector.extract_strided_slice %660 {offsets = [0, 96], sizes = [8, 32], strides = [1, 1]} : vector<8x128xf32> to vector<8x32xf32>
    %666 = arith.mulf %663, %628 : vector<8x32xf32>
    %667 = arith.mulf %662, %664 : vector<8x32xf32>
    %668 = arith.addf %666, %667 : vector<8x32xf32>
    %669 = math.tanh %668 : vector<8x32xf32>
    %670 = arith.mulf %665, %669 : vector<8x32xf32>
    %c56_215 = arith.constant 56 : index
    %c0_216 = arith.constant 0 : index
    %671 = vector.load %arg5[%c56_215, %c0_216] : memref<64x32xf32, #tpu.memory_space<vmem>>, vector<8x32xf32>
    tpu.vector_store %arg5[%c56_215, %c0_216], %670 {strides = array<i32>} : memref<64x32xf32, #tpu.memory_space<vmem>>, vector<8x32xf32>,
    %c0_217 = arith.constant 0 : index
    %c0_218 = arith.constant 0 : index
    %672 = vector.load %arg4[%c0_217, %c0_218] : memref<64x128xf32, #tpu.memory_space<vmem>>, vector<8x128xf32>
    %673 = arith.truncf %650 : vector<8x32xf32> to vector<8x32xbf16>
    %cst_219 = arith.constant dense<0.000000e+00> : vector<8x128xf32>
    %674 = tpu.matmul %673, %370, %cst_219 {dimension_numbers = #tpu.dot_dimension_numbers<[1], [0], [0], [1], [0, 0, 1, 1], [], []>} : vector<8x32xbf16>, vector<32x128xbf16>, vector<8x128xf32> -> vector<8x128xf32>
    %675 = arith.addf %672, %674 : vector<8x128xf32>
    %676 = arith.negf %675 : vector<8x128xf32>
    %677 = math.exp %676 : vector<8x128xf32>
    %cst_220 = arith.constant 1.000000e+00 : f32
    %678 = vector.broadcast %cst_220 : f32 to vector<8x128xf32>
    %679 = arith.addf %678, %677 : vector<8x128xf32>
    %680 = arith.divf %678, %679 : vector<8x128xf32>
    %681 = math.tanh %675 : vector<8x128xf32>
    %682 = vector.extract_strided_slice %680 {offsets = [0, 0], sizes = [8, 32], strides = [1, 1]} : vector<8x128xf32> to vector<8x32xf32>
    %683 = vector.extract_strided_slice %680 {offsets = [0, 32], sizes = [8, 32], strides = [1, 1]} : vector<8x128xf32> to vector<8x32xf32>
    %684 = vector.extract_strided_slice %681 {offsets = [0, 64], sizes = [8, 32], strides = [1, 1]} : vector<8x128xf32> to vector<8x32xf32>
    %685 = vector.extract_strided_slice %680 {offsets = [0, 96], sizes = [8, 32], strides = [1, 1]} : vector<8x128xf32> to vector<8x32xf32>
    %686 = arith.mulf %683, %648 : vector<8x32xf32>
    %687 = arith.mulf %682, %684 : vector<8x32xf32>
    %688 = arith.addf %686, %687 : vector<8x32xf32>
    %689 = math.tanh %688 : vector<8x32xf32>
    %690 = arith.mulf %685, %689 : vector<8x32xf32>
    %c0_221 = arith.constant 0 : index
    %c0_222 = arith.constant 0 : index
    %691 = vector.load %arg6[%c0_221, %c0_222] : memref<64x32xf32, #tpu.memory_space<vmem>>, vector<8x32xf32>
    tpu.vector_store %arg6[%c0_221, %c0_222], %690 {strides = array<i32>} : memref<64x32xf32, #tpu.memory_space<vmem>>, vector<8x32xf32>,
    %c0_223 = arith.constant 0 : index
    %c0_224 = arith.constant 0 : index
    %692 = vector.load %arg5[%c0_223, %c0_224] : memref<64x32xf32, #tpu.memory_space<vmem>>, vector<64x32xf32>
    %c0_225 = arith.constant 0 : index
    %c0_226 = arith.constant 0 : index
    %693 = vector.load %arg6[%c0_225, %c0_226] : memref<64x32xf32, #tpu.memory_space<vmem>>, vector<64x32xf32>
    %694 = arith.truncf %692 : vector<64x32xf32> to vector<64x32xbf16>
    %c272 = arith.constant 272 : index
    %c0_227 = arith.constant 0 : index
    %695 = vector.load %arg1[%c272, %c0_227] : memref<352x128xf32, #tpu.memory_space<vmem>>, vector<32x128xf32>
    %696 = arith.truncf %695 : vector<32x128xf32> to vector<32x128xbf16>
    %cst_228 = arith.constant dense<0.000000e+00> : vector<64x128xf32>
    %697 = tpu.matmul %694, %696, %cst_228 {dimension_numbers = #tpu.dot_dimension_numbers<[1], [0], [0], [1], [0, 0, 1, 1], [], []>} : vector<64x32xbf16>, vector<32x128xbf16>, vector<64x128xf32> -> vector<64x128xf32>
    %698 = arith.truncf %693 : vector<64x32xf32> to vector<64x32xbf16>
    %c304 = arith.constant 304 : index
    %c0_229 = arith.constant 0 : index
    %699 = vector.load %arg1[%c304, %c0_229] : memref<352x128xf32, #tpu.memory_space<vmem>>, vector<32x128xf32>
    %700 = arith.truncf %699 : vector<32x128xf32> to vector<32x128xbf16>
    %cst_230 = arith.constant dense<0.000000e+00> : vector<64x128xf32>
    %701 = tpu.matmul %698, %700, %cst_230 {dimension_numbers = #tpu.dot_dimension_numbers<[1], [0], [0], [1], [0, 0, 1, 1], [], []>} : vector<64x32xbf16>, vector<32x128xbf16>, vector<64x128xf32> -> vector<64x128xf32>
    %702 = arith.addf %697, %701 : vector<64x128xf32>
    %c340 = arith.constant 340 : index
    %c0_231 = arith.constant 0 : index
    %703 = vector.load %arg1[%c340, %c0_231] : memref<352x128xf32, #tpu.memory_space<vmem>>, vector<1x128xf32>
    %704 = vector.broadcast %703 : vector<1x128xf32> to vector<64x128xf32>
    %705 = arith.addf %702, %704 : vector<64x128xf32>
    %706 = math.tanh %705 : vector<64x128xf32>
    %c341 = arith.constant 341 : index
    %c0_232 = arith.constant 0 : index
    %707 = vector.load %arg1[%c341, %c0_232] : memref<352x128xf32, #tpu.memory_space<vmem>>, vector<1x128xf32>
    %708 = vector.broadcast %707 : vector<1x128xf32> to vector<64x128xf32>
    %709 = arith.mulf %706, %708 : vector<64x128xf32>
    %cst_233 = arith.constant dense<0.000000e+00> : vector<64xf32>
    %710 = vector.multi_reduction <add>, %709, %cst_233 [1] : vector<64x128xf32> to vector<64xf32>
    %711 = vector.shape_cast %710 : vector<64xf32> to vector<64x1xf32>
    %712 = vector.extract_strided_slice %711 {offsets = [0, 0], sizes = [8, 1], strides = [1, 1]} : vector<64x1xf32> to vector<8x1xf32>
    %713 = vector.extract_strided_slice %711 {offsets = [8, 0], sizes = [8, 1], strides = [1, 1]} : vector<64x1xf32> to vector<8x1xf32>
    %714 = vector.extract_strided_slice %711 {offsets = [16, 0], sizes = [8, 1], strides = [1, 1]} : vector<64x1xf32> to vector<8x1xf32>
    %715 = vector.extract_strided_slice %711 {offsets = [24, 0], sizes = [8, 1], strides = [1, 1]} : vector<64x1xf32> to vector<8x1xf32>
    %716 = vector.extract_strided_slice %711 {offsets = [32, 0], sizes = [8, 1], strides = [1, 1]} : vector<64x1xf32> to vector<8x1xf32>
    %717 = vector.extract_strided_slice %711 {offsets = [40, 0], sizes = [8, 1], strides = [1, 1]} : vector<64x1xf32> to vector<8x1xf32>
    %718 = vector.extract_strided_slice %711 {offsets = [48, 0], sizes = [8, 1], strides = [1, 1]} : vector<64x1xf32> to vector<8x1xf32>
    %719 = vector.extract_strided_slice %711 {offsets = [56, 0], sizes = [8, 1], strides = [1, 1]} : vector<64x1xf32> to vector<8x1xf32>
    %720 = arith.maximumf %712, %713 : vector<8x1xf32>
    %721 = arith.maximumf %720, %714 : vector<8x1xf32>
    %722 = arith.maximumf %721, %715 : vector<8x1xf32>
    %723 = arith.maximumf %722, %716 : vector<8x1xf32>
    %724 = arith.maximumf %723, %717 : vector<8x1xf32>
    %725 = arith.maximumf %724, %718 : vector<8x1xf32>
    %726 = arith.maximumf %725, %719 : vector<8x1xf32>
    %727 = arith.subf %712, %726 : vector<8x1xf32>
    %728 = math.exp %727 : vector<8x1xf32>
    %729 = arith.subf %713, %726 : vector<8x1xf32>
    %730 = math.exp %729 : vector<8x1xf32>
    %731 = arith.subf %714, %726 : vector<8x1xf32>
    %732 = math.exp %731 : vector<8x1xf32>
    %733 = arith.subf %715, %726 : vector<8x1xf32>
    %734 = math.exp %733 : vector<8x1xf32>
    %735 = arith.subf %716, %726 : vector<8x1xf32>
    %736 = math.exp %735 : vector<8x1xf32>
    %737 = arith.subf %717, %726 : vector<8x1xf32>
    %738 = math.exp %737 : vector<8x1xf32>
    %739 = arith.subf %718, %726 : vector<8x1xf32>
    %740 = math.exp %739 : vector<8x1xf32>
    %741 = arith.subf %719, %726 : vector<8x1xf32>
    %742 = math.exp %741 : vector<8x1xf32>
    %743 = arith.addf %728, %730 : vector<8x1xf32>
    %744 = arith.addf %743, %732 : vector<8x1xf32>
    %745 = arith.addf %744, %734 : vector<8x1xf32>
    %746 = arith.addf %745, %736 : vector<8x1xf32>
    %747 = arith.addf %746, %738 : vector<8x1xf32>
    %748 = arith.addf %747, %740 : vector<8x1xf32>
    %749 = arith.addf %748, %742 : vector<8x1xf32>
    %cst_234 = arith.constant 1.000000e+00 : f32
    %750 = vector.broadcast %cst_234 : f32 to vector<8x1xf32>
    %751 = arith.divf %750, %749 : vector<8x1xf32>
    %752 = vector.extract_strided_slice %692 {offsets = [0, 0], sizes = [8, 32], strides = [1, 1]} : vector<64x32xf32> to vector<8x32xf32>
    %753 = vector.broadcast %728 : vector<8x1xf32> to vector<8x32xf32>
    %754 = arith.mulf %753, %752 : vector<8x32xf32>
    %755 = vector.extract_strided_slice %693 {offsets = [0, 0], sizes = [8, 32], strides = [1, 1]} : vector<64x32xf32> to vector<8x32xf32>
    %756 = vector.broadcast %728 : vector<8x1xf32> to vector<8x32xf32>
    %757 = arith.mulf %756, %755 : vector<8x32xf32>
    %758 = vector.extract_strided_slice %692 {offsets = [8, 0], sizes = [8, 32], strides = [1, 1]} : vector<64x32xf32> to vector<8x32xf32>
    %759 = vector.broadcast %730 : vector<8x1xf32> to vector<8x32xf32>
    %760 = arith.mulf %759, %758 : vector<8x32xf32>
    %761 = arith.addf %754, %760 : vector<8x32xf32>
    %762 = vector.extract_strided_slice %693 {offsets = [8, 0], sizes = [8, 32], strides = [1, 1]} : vector<64x32xf32> to vector<8x32xf32>
    %763 = vector.broadcast %730 : vector<8x1xf32> to vector<8x32xf32>
    %764 = arith.mulf %763, %762 : vector<8x32xf32>
    %765 = arith.addf %757, %764 : vector<8x32xf32>
    %766 = vector.extract_strided_slice %692 {offsets = [16, 0], sizes = [8, 32], strides = [1, 1]} : vector<64x32xf32> to vector<8x32xf32>
    %767 = vector.broadcast %732 : vector<8x1xf32> to vector<8x32xf32>
    %768 = arith.mulf %767, %766 : vector<8x32xf32>
    %769 = arith.addf %761, %768 : vector<8x32xf32>
    %770 = vector.extract_strided_slice %693 {offsets = [16, 0], sizes = [8, 32], strides = [1, 1]} : vector<64x32xf32> to vector<8x32xf32>
    %771 = vector.broadcast %732 : vector<8x1xf32> to vector<8x32xf32>
    %772 = arith.mulf %771, %770 : vector<8x32xf32>
    %773 = arith.addf %765, %772 : vector<8x32xf32>
    %774 = vector.extract_strided_slice %692 {offsets = [24, 0], sizes = [8, 32], strides = [1, 1]} : vector<64x32xf32> to vector<8x32xf32>
    %775 = vector.broadcast %734 : vector<8x1xf32> to vector<8x32xf32>
    %776 = arith.mulf %775, %774 : vector<8x32xf32>
    %777 = arith.addf %769, %776 : vector<8x32xf32>
    %778 = vector.extract_strided_slice %693 {offsets = [24, 0], sizes = [8, 32], strides = [1, 1]} : vector<64x32xf32> to vector<8x32xf32>
    %779 = vector.broadcast %734 : vector<8x1xf32> to vector<8x32xf32>
    %780 = arith.mulf %779, %778 : vector<8x32xf32>
    %781 = arith.addf %773, %780 : vector<8x32xf32>
    %782 = vector.extract_strided_slice %692 {offsets = [32, 0], sizes = [8, 32], strides = [1, 1]} : vector<64x32xf32> to vector<8x32xf32>
    %783 = vector.broadcast %736 : vector<8x1xf32> to vector<8x32xf32>
    %784 = arith.mulf %783, %782 : vector<8x32xf32>
    %785 = arith.addf %777, %784 : vector<8x32xf32>
    %786 = vector.extract_strided_slice %693 {offsets = [32, 0], sizes = [8, 32], strides = [1, 1]} : vector<64x32xf32> to vector<8x32xf32>
    %787 = vector.broadcast %736 : vector<8x1xf32> to vector<8x32xf32>
    %788 = arith.mulf %787, %786 : vector<8x32xf32>
    %789 = arith.addf %781, %788 : vector<8x32xf32>
    %790 = vector.extract_strided_slice %692 {offsets = [40, 0], sizes = [8, 32], strides = [1, 1]} : vector<64x32xf32> to vector<8x32xf32>
    %791 = vector.broadcast %738 : vector<8x1xf32> to vector<8x32xf32>
    %792 = arith.mulf %791, %790 : vector<8x32xf32>
    %793 = arith.addf %785, %792 : vector<8x32xf32>
    %794 = vector.extract_strided_slice %693 {offsets = [40, 0], sizes = [8, 32], strides = [1, 1]} : vector<64x32xf32> to vector<8x32xf32>
    %795 = vector.broadcast %738 : vector<8x1xf32> to vector<8x32xf32>
    %796 = arith.mulf %795, %794 : vector<8x32xf32>
    %797 = arith.addf %789, %796 : vector<8x32xf32>
    %798 = vector.extract_strided_slice %692 {offsets = [48, 0], sizes = [8, 32], strides = [1, 1]} : vector<64x32xf32> to vector<8x32xf32>
    %799 = vector.broadcast %740 : vector<8x1xf32> to vector<8x32xf32>
    %800 = arith.mulf %799, %798 : vector<8x32xf32>
    %801 = arith.addf %793, %800 : vector<8x32xf32>
    %802 = vector.extract_strided_slice %693 {offsets = [48, 0], sizes = [8, 32], strides = [1, 1]} : vector<64x32xf32> to vector<8x32xf32>
    %803 = vector.broadcast %740 : vector<8x1xf32> to vector<8x32xf32>
    %804 = arith.mulf %803, %802 : vector<8x32xf32>
    %805 = arith.addf %797, %804 : vector<8x32xf32>
    %806 = vector.extract_strided_slice %692 {offsets = [56, 0], sizes = [8, 32], strides = [1, 1]} : vector<64x32xf32> to vector<8x32xf32>
    %807 = vector.broadcast %742 : vector<8x1xf32> to vector<8x32xf32>
    %808 = arith.mulf %807, %806 : vector<8x32xf32>
    %809 = arith.addf %801, %808 : vector<8x32xf32>
    %810 = vector.extract_strided_slice %693 {offsets = [56, 0], sizes = [8, 32], strides = [1, 1]} : vector<64x32xf32> to vector<8x32xf32>
    %811 = vector.broadcast %742 : vector<8x1xf32> to vector<8x32xf32>
    %812 = arith.mulf %811, %810 : vector<8x32xf32>
    %813 = arith.addf %805, %812 : vector<8x32xf32>
    %814 = vector.broadcast %751 : vector<8x1xf32> to vector<8x32xf32>
    %815 = arith.mulf %809, %814 : vector<8x32xf32>
    %816 = vector.broadcast %751 : vector<8x1xf32> to vector<8x32xf32>
    %817 = arith.mulf %813, %816 : vector<8x32xf32>
    %c342 = arith.constant 342 : index
    %c0_235 = arith.constant 0 : index
    %818 = vector.load %arg1[%c342, %c0_235] : memref<352x128xf32, #tpu.memory_space<vmem>>, vector<1x128xf32>
    %819 = vector.extract_strided_slice %818 {offsets = [0, 0], sizes = [1, 32], strides = [1, 1]} : vector<1x128xf32> to vector<1x32xf32>
    %c343 = arith.constant 343 : index
    %c0_236 = arith.constant 0 : index
    %820 = vector.load %arg1[%c343, %c0_236] : memref<352x128xf32, #tpu.memory_space<vmem>>, vector<1x128xf32>
    %821 = vector.extract_strided_slice %820 {offsets = [0, 0], sizes = [1, 32], strides = [1, 1]} : vector<1x128xf32> to vector<1x32xf32>
    %822 = vector.broadcast %819 : vector<1x32xf32> to vector<8x32xf32>
    %823 = arith.mulf %815, %822 : vector<8x32xf32>
    %824 = vector.broadcast %821 : vector<1x32xf32> to vector<8x32xf32>
    %825 = arith.mulf %817, %824 : vector<8x32xf32>
    %826 = arith.addf %823, %825 : vector<8x32xf32>
    %cst_237 = arith.constant dense<0.000000e+00> : vector<8xf32>
    %827 = vector.multi_reduction <add>, %826, %cst_237 [1] : vector<8x32xf32> to vector<8xf32>
    %828 = vector.shape_cast %827 : vector<8xf32> to vector<8x1xf32>
    %c344 = arith.constant 344 : index
    %c0_238 = arith.constant 0 : index
    %829 = vector.load %arg1[%c344, %c0_238] : memref<352x128xf32, #tpu.memory_space<vmem>>, vector<1x128xf32>
    %830 = vector.extract_strided_slice %829 {offsets = [0, 0], sizes = [1, 1], strides = [1, 1]} : vector<1x128xf32> to vector<1x1xf32>
    %831 = vector.broadcast %830 : vector<1x1xf32> to vector<8x1xf32>
    %832 = arith.addf %828, %831 : vector<8x1xf32>
    %c0_239 = arith.constant 0 : index
    %c0_240 = arith.constant 0 : index
    %833 = vector.load %arg2[%c0_239, %c0_240] : memref<8x1xf32, #tpu.memory_space<vmem>>, vector<8x1xf32>
    tpu.vector_store %arg2[%c0_239, %c0_240], %832 {strides = array<i32>} : memref<8x1xf32, #tpu.memory_space<vmem>>, vector<8x1xf32>,
    return
  }
}

</mosaic_0001>

<llo_original>
// kernel: crypto_lstm_forward.1
$region0: #{crypto_lstm_forward.1}
  #allocation0 [shape = 'u32[]', space=smem, size = 0x4, offset = 0x4, fixed_abs, tag = 'smem constant byte address 0x4 - core index']
  #allocation1 [shape = 'u32[144,128]{1,0:T(1,128)}', space=vmem, size = 0x12000, scoped, tag = 'internal scratch']
  #allocation2 [shape = 'f32[64,128]{1,0:T(8,128)}', space=vmem, size = 0x8000, scoped, tag = 'scratch operand']
  #allocation3 [shape = 'f32[64,128]{1,0:T(8,128)}', space=vmem, size = 0x8000, scoped, tag = 'scratch operand']
  #allocation4 [shape = 'f32[64,32]{1,0:T(8,128)}', space=vmem, size = 0x8000, scoped, tag = 'scratch operand']
  #allocation5 [shape = 'f32[64,32]{1,0:T(8,128)}', space=vmem, size = 0x8000, scoped, tag = 'scratch operand']
  %s0 = inlined_call_operand.vmem [shape: f32[64,8], index: 0, kind: input, shape index: {}]
  %s1 = inlined_call_operand.hbm [shape: f32[352,128], index: 1, kind: input, shape index: {}]
  %s2 = inlined_call_operand.vmem [shape: f32[8,1], index: 2, kind: output, shape index: {}]
  %s3 = sld [smem:[#allocation0]]
  $region22: #{crypto_lstm_forward.1} parent=0
    _
  %s5 = ssub.s32 1, %s3
  %s6 = scalar_select 0, %s5, %s3
  $region1: #{crypto_lstm_forward.1} parent=0
    #allocation6 [shape = 'u8[180224]{0}', space=vmem, size = 0x2c000, scoped, tag = 'input window, operand 1, single buffered']
    #allocation7 [shape = 's32[1]{0}', space=sflag, size = 0x4, scoped, tag = 'scoped memory for crypto_lstm_forward.1']
    %7 = vsyncpa [#allocation7], 0
    // Predicated region
    $region2: #{crypto_lstm_forward.1} parent=1 // pred_check
      _
    $region3: #{crypto_lstm_forward.1} parent=1 // pred_check_branch
      %9 = sbr.rel (0) target = $region5
    $region4: #{crypto_lstm_forward.1} parent=1 // pred_region
      _
    $region5: #{crypto_lstm_forward.1} parent=1 // pred_fallthru
      _
    // Predicated region
    $region6: #{crypto_lstm_forward.1} parent=1 // pred_check
      _
    $region7: #{crypto_lstm_forward.1} parent=1 // pred_check_branch
      %11 = sbr.rel (0) target = $region9
    $region8: #{crypto_lstm_forward.1} parent=1 // pred_region
      %s13 = ssub.s32 5632, 5632
      %14 = vsyncadd [#allocation7], %s13
      %s15 = sshll.u32 [#allocation6], 4
      %s16 = int_to_ptr.vmem [resolvable:$true] %s15
      %21 = dma.hbm_to_vmem [thread:$0]  %s1, 5632, %s16, [#allocation7], 128, 128, 8
    $region9: #{crypto_lstm_forward.1} parent=1 // pred_fallthru
      _
    // Predicated region
    $region10: #{crypto_lstm_forward.1} parent=1 // pred_check
      _
    $region11: #{crypto_lstm_forward.1} parent=1 // pred_check_branch
      %23 = sbr.rel (0) target = $region13
    $region12: #{crypto_lstm_forward.1} parent=1 // pred_region
      %24 = dma.done [#allocation7], 5632
    $region13: #{crypto_lstm_forward.1} parent=1 // pred_fallthru
      _
    %v26 = vld [vmem:[%s0] sm:$0xff]
    %v27 = vld [vmem:[%s0 + $0x8] sm:$0xff]
    %v28 = vld [vmem:[%s0 + $0x10] sm:$0xff]
    %v29 = vld [vmem:[%s0 + $0x18] sm:$0xff]
    %v30 = vld [vmem:[%s0 + $0x20] sm:$0xff]
    %v31 = vld [vmem:[%s0 + $0x28] sm:$0xff]
    %v32 = vld [vmem:[%s0 + $0x30] sm:$0xff]
    %v33 = vld [vmem:[%s0 + $0x38] sm:$0xff]
    %v34 = vpack.c.bf16 %v27, %v26
    %v35 = vpack.c.bf16 %v29, %v28
    %v36 = vpack.c.bf16 %v31, %v30
    %v37 = vpack.c.bf16 %v33, %v32
    %v38 = vld [vmem:[#allocation6] sm:$0xff]
    %v39 = vpack.c.bf16 %v38, %v38
    %v40 = vld [vmem:[#allocation6 + $0x150] sm:$0x1]
    %v41 = vlaneseq
    %v42 = vshrl.u32 %v41, 7
    %v43 = vsub.s32 0, %v42
    %v44 = vrot.slane %v40, %v43
    %vm45 = vcmask 64512
    %v47 = vsel %vm45, %v34, 0
    %v50 = vsel %vm45, %v35, 0
    %v53 = vsel %vm45, %v36, 0
    %v56 = vsel %vm45, %v37, 0
    %vm58 = vcmask 1043456
    %v60 = vsel %vm58, %v39, 0
    %62 = vmatprep.subr.bf16.mxu0 0
    %63 = vmatpush1.bf16.msra.mxu0 0
    %64 = vmatprep.subr.bf16.mxu0 0
    %65 = vmatpush1.bf16.msra.mxu0 0
    %66 = vmatprep.subr.bf16.mxu0 0
    %67 = vmatpush1.bf16.msra.mxu0 0
    %68 = vmatprep.subr.bf16.mxu0 0
    %69 = vmatpush1.bf16.msra.mxu0 0
    %70 = vmatprep.subr.bf16.mxu0 0
    %71 = vmatpush1.bf16.msra.mxu0 0
    %72 = vmatprep.subr.bf16.mxu0 0
    %73 = vmatpush1.bf16.msra.mxu0 0
    %74 = vmatprep.subr.bf16.mxu0 0
    %75 = vmatpush1.bf16.msra.mxu0 0
    %76 = vmatprep.subr.bf16.mxu0 0
    %77 = vmatpush1.bf16.msra.mxu0 %v60
    %78 = vmatprep.subr.bf16.mxu0 0
    %79 = vmatpush2.bf16.msra.mxu0 0
    %80 = vmatprep.subr.bf16.mxu0 0
    %81 = vmatpush2.bf16.msra.mxu0 0
    %82 = vmatprep.subr.bf16.mxu0 0
    %83 = vmatpush2.bf16.msra.mxu0 0
    %84 = vmatprep.subr.bf16.mxu0 0
    %85 = vmatpush2.bf16.msra.mxu0 0
    %86 = vmatprep.subr.bf16.mxu0 0
    %87 = vmatpush2.bf16.msra.mxu0 0
    %88 = vmatprep.subr.bf16.mxu0 0
    %89 = vmatpush2.bf16.msra.mxu0 0
    %90 = vmatprep.subr.bf16.mxu0 0
    %91 = vmatpush2.bf16.msra.mxu0 0
    %92 = vmatprep.subr.bf16.mxu0 0
    %93 = vmatpush2.bf16.msra.mxu0 0
    %94 = vmatprep.mubr.bf16.mxu0 0
    %95 = vmatmul.mubr.bf16.gmra.mxu0 %v47
    %v96 = vpop.f32.mrf.mxu0
    %v97 = vadd.f32 %v44, %v96
    %v98 = vpop.f32.mrf.mxu0
    %v99 = vpop.f32.mrf.mxu0
    %v100 = vadd.f32 %v44, %v99
    %v101 = vpop.f32.mrf.mxu0
    %102 = vmatprep.mubr.bf16.mxu0 0
    %103 = vmatmul.mubr.bf16.gmra.mxu0 %v50
    %v104 = vpop.f32.mrf.mxu0
    %v105 = vadd.f32 %v44, %v104
    %v106 = vpop.f32.mrf.mxu0
    %v107 = vpop.f32.mrf.mxu0
    %v108 = vadd.f32 %v44, %v107
    %v109 = vpop.f32.mrf.mxu0
    %110 = vmatprep.mubr.bf16.mxu0 0
    %111 = vmatmul.mubr.bf16.gmra.mxu0 %v53
    %v112 = vpop.f32.mrf.mxu0
    %v113 = vadd.f32 %v44, %v112
    %v114 = vpop.f32.mrf.mxu0
    %v115 = vpop.f32.mrf.mxu0
    %v116 = vadd.f32 %v44, %v115
    %v117 = vpop.f32.mrf.mxu0
    %118 = vmatprep.mubr.bf16.mxu0 0
    %119 = vmatmul.mubr.bf16.gmra.mxu0 %v56
    %v120 = vpop.f32.mrf.mxu0
    %v121 = vadd.f32 %v44, %v120
    %v122 = vpop.f32.mrf.mxu0
    %v123 = vpop.f32.mrf.mxu0
    %v124 = vadd.f32 %v44, %v123
    %v125 = vpop.f32.mrf.mxu0
    %126 = vdwg.mxu0
    %127 = vst [vmem:[#allocation2] sm:$0xff] %v97
    %128 = vst [vmem:[#allocation2 + $0x8] sm:$0xff] %v100
    %129 = vst [vmem:[#allocation2 + $0x10] sm:$0xff] %v105
    %130 = vst [vmem:[#allocation2 + $0x18] sm:$0xff] %v108
    %131 = vst [vmem:[#allocation2 + $0x20] sm:$0xff] %v113
    %132 = vst [vmem:[#allocation2 + $0x28] sm:$0xff] %v116
    %133 = vst [vmem:[#allocation2 + $0x30] sm:$0xff] %v121
    %134 = vst [vmem:[#allocation2 + $0x38] sm:$0xff] %v124
    %v135 = vld [vmem:[#allocation6 + $0x8] sm:$0xff]
    %v136 = vpack.c.bf16 %v135, %v135
    %v137 = vld [vmem:[#allocation6 + $0x151] sm:$0x1]
    %v138 = vlaneseq
    %v139 = vshrl.u32 %v138, 7
    %v140 = vsub.s32 0, %v139
    %v141 = vrot.slane %v137, %v140
    %v143 = vsel %vm58, %v136, 0
    %145 = vmatprep.subr.bf16.mxu0 0
    %146 = vmatpush1.bf16.msra.mxu0 0
    %147 = vmatprep.subr.bf16.mxu0 0
    %148 = vmatpush1.bf16.msra.mxu0 0
    %149 = vmatprep.subr.bf16.mxu0 0
    %150 = vmatpush1.bf16.msra.mxu0 0
    %151 = vmatprep.subr.bf16.mxu0 0
    %152 = vmatpush1.bf16.msra.mxu0 0
    %153 = vmatprep.subr.bf16.mxu0 0
    %154 = vmatpush1.bf16.msra.mxu0 0
    %155 = vmatprep.subr.bf16.mxu0 0
    %156 = vmatpush1.bf16.msra.mxu0 0
    %157 = vmatprep.subr.bf16.mxu0 0
    %158 = vmatpush1.bf16.msra.mxu0 0
    %159 = vmatprep.subr.bf16.mxu0 0
    %160 = vmatpush1.bf16.msra.mxu0 %v143
    %161 = vmatprep.subr.bf16.mxu0 0
    %162 = vmatpush2.bf16.msra.mxu0 0
    %163 = vmatprep.subr.bf16.mxu0 0
    %164 = vmatpush2.bf16.msra.mxu0 0
    %165 = vmatprep.subr.bf16.mxu0 0
    %166 = vmatpush2.bf16.msra.mxu0 0
    %167 = vmatprep.subr.bf16.mxu0 0
    %168 = vmatpush2.bf16.msra.mxu0 0
    %169 = vmatprep.subr.bf16.mxu0 0
    %170 = vmatpush2.bf16.msra.mxu0 0
    %171 = vmatprep.subr.bf16.mxu0 0
    %172 = vmatpush2.bf16.msra.mxu0 0
    %173 = vmatprep.subr.bf16.mxu0 0
    %174 = vmatpush2.bf16.msra.mxu0 0
    %175 = vmatprep.subr.bf16.mxu0 0
    %176 = vmatpush2.bf16.msra.mxu0 0
    %177 = vmatprep.mubr.bf16.mxu0 0
    %178 = vmatmul.mubr.bf16.gmra.mxu0 %v47
    %v179 = vpop.f32.mrf.mxu0
    %v180 = vadd.f32 %v141, %v179
    %v181 = vpop.f32.mrf.mxu0
    %v182 = vpop.f32.mrf.mxu0
    %v183 = vadd.f32 %v141, %v182
    %v184 = vpop.f32.mrf.mxu0
    %185 = vmatprep.mubr.bf16.mxu0 0
    %186 = vmatmul.mubr.bf16.gmra.mxu0 %v50
    %v187 = vpop.f32.mrf.mxu0
    %v188 = vadd.f32 %v141, %v187
    %v189 = vpop.f32.mrf.mxu0
    %v190 = vpop.f32.mrf.mxu0
    %v191 = vadd.f32 %v141, %v190
    %v192 = vpop.f32.mrf.mxu0
    %193 = vmatprep.mubr.bf16.mxu0 0
    %194 = vmatmul.mubr.bf16.gmra.mxu0 %v53
    %v195 = vpop.f32.mrf.mxu0
    %v196 = vadd.f32 %v141, %v195
    %v197 = vpop.f32.mrf.mxu0
    %v198 = vpop.f32.mrf.mxu0
    %v199 = vadd.f32 %v141, %v198
    %v200 = vpop.f32.mrf.mxu0
    %201 = vmatprep.mubr.bf16.mxu0 0
    %202 = vmatmul.mubr.bf16.gmra.mxu0 %v56
    %v203 = vpop.f32.mrf.mxu0
    %v204 = vadd.f32 %v141, %v203
    %v205 = vpop.f32.mrf.mxu0
    %v206 = vpop.f32.mrf.mxu0
    %v207 = vadd.f32 %v141, %v206
    %v208 = vpop.f32.mrf.mxu0
    %209 = vdwg.mxu0
    %210 = vst [vmem:[#allocation3] sm:$0xff] %v180
    %211 = vst [vmem:[#allocation3 + $0x8] sm:$0xff] %v183
    %212 = vst [vmem:[#allocation3 + $0x10] sm:$0xff] %v188
    %213 = vst [vmem:[#allocation3 + $0x18] sm:$0xff] %v191
    %214 = vst [vmem:[#allocation3 + $0x20] sm:$0xff] %v196
    %215 = vst [vmem:[#allocation3 + $0x28] sm:$0xff] %v199
    %216 = vst [vmem:[#allocation3 + $0x30] sm:$0xff] %v204
    %217 = vst [vmem:[#allocation3 + $0x38] sm:$0xff] %v207
    %v218 = vld [vmem:[#allocation6 + $0x10] sm:$0xff]
    %v219 = vld [vmem:[#allocation6 + $0x18] sm:$0xff]
    %v220 = vld [vmem:[#allocation6 + $0x20] sm:$0xff]
    %v221 = vld [vmem:[#allocation6 + $0x28] sm:$0xff]
    %v222 = vpack.c.bf16 %v219, %v218
    %v223 = vpack.c.bf16 %v221, %v220
    %v224 = vld [vmem:[#allocation6 + $0x30] sm:$0xff]
    %v225 = vld [vmem:[#allocation6 + $0x38] sm:$0xff]
    %v226 = vld [vmem:[#allocation6 + $0x40] sm:$0xff]
    %v227 = vld [vmem:[#allocation6 + $0x48] sm:$0xff]
    %v228 = vpack.c.bf16 %v225, %v224
    %v229 = vpack.c.bf16 %v227, %v226
    %v230 = vld [vmem:[#allocation2] sm:$0xff]
    %vm231 = vcmask 261120
    %v233 = vsel %vm231, 0, 0
    %235 = vmatprep.subr.bf16.mxu0 0
    %236 = vmatpush1.bf16.msra.mxu0 0
    %237 = vmatprep.subr.bf16.mxu0 0
    %238 = vmatpush1.bf16.msra.mxu0 0
    %239 = vmatprep.subr.bf16.mxu0 0
    %240 = vmatpush1.bf16.msra.mxu0 0
    %241 = vmatprep.subr.bf16.mxu0 0
    %242 = vmatpush1.bf16.msra.mxu0 0
    %243 = vmatprep.subr.bf16.mxu0 0
    %244 = vmatpush1.bf16.msra.mxu0 0
    %245 = vmatprep.subr.bf16.mxu0 0
    %246 = vmatpush1.bf16.msra.mxu0 0
    %247 = vmatprep.subr.bf16.mxu0 0
    %248 = vmatpush1.bf16.msra.mxu0 %v223
    %249 = vmatprep.subr.bf16.mxu0 0
    %250 = vmatpush1.bf16.msra.mxu0 %v222
    %251 = vmatprep.subr.bf16.mxu0 0
    %252 = vmatpush2.bf16.msra.mxu0 0
    %253 = vmatprep.subr.bf16.mxu0 0
    %254 = vmatpush2.bf16.msra.mxu0 0
    %255 = vmatprep.subr.bf16.mxu0 0
    %256 = vmatpush2.bf16.msra.mxu0 0
    %257 = vmatprep.subr.bf16.mxu0 0
    %258 = vmatpush2.bf16.msra.mxu0 0
    %259 = vmatprep.subr.bf16.mxu0 0
    %260 = vmatpush2.bf16.msra.mxu0 0
    %261 = vmatprep.subr.bf16.mxu0 0
    %262 = vmatpush2.bf16.msra.mxu0 0
    %263 = vmatprep.subr.bf16.mxu0 0
    %264 = vmatpush2.bf16.msra.mxu0 0
    %265 = vmatprep.subr.bf16.mxu0 0
    %266 = vmatpush2.bf16.msra.mxu0 0
    %267 = vmatprep.mubr.bf16.mxu0 0
    %268 = vmatmul.mubr.bf16.gmra.mxu0 %v233
    %v269 = vpop.f32.mrf.mxu0
    %v270 = vadd.f32 0.0, %v269
    %v271 = vpop.f32.mrf.mxu0
    %v272 = vpop.f32.mrf.mxu0
    %v273 = vpop.f32.mrf.mxu0
    %274 = vdwg.mxu0
    %v275 = vadd.f32 %v230, %v270
    %v276 = vxor.u32 %v275, 2147483648
    %v277 = vmul.f32 %v276, 1.442695
    %v278 = vpow.pop %v277
    %v279 = vadd.f32 %v278, 1.0
    %v280 = vrcp.pop %v279
    %v281 = vmul.f32 1.0, %v280
    %v282 = vtanh.pop %v275
    %v283 = vmul.f32 %v281, 0.0
    %285 = vrot.lane.b32.xlu0 %v282, 64
    %v286 = vpop.permute.xlu0 %285
    %v288 = vmul.f32 %v281, %v286
    %290 = vrot.lane.b32.xlu0 %v288, 32
    %v291 = vpop.permute.xlu0 %290
    %v293 = vadd.f32 %v283, %v291
    %v294 = vtanh.pop %v293
    %296 = vrot.lane.b32.xlu0 %v294, 64
    %v297 = vpop.permute.xlu0 %296
    %v299 = vmul.f32 %v281, %v297
    %301 = vrot.lane.b32.xlu0 %v299, 32
    %v302 = vpop.permute.xlu0 %301
    %304 = vst.msk [vmem:[#allocation4] sm:$0xff] %vm231, %v302
    %v305 = vld [vmem:[#allocation3 + $0x38] sm:$0xff]
    %306 = vmatprep.subr.bf16.mxu0 0
    %307 = vmatpush1.bf16.msra.mxu0 0
    %308 = vmatprep.subr.bf16.mxu0 0
    %309 = vmatpush1.bf16.msra.mxu0 0
    %310 = vmatprep.subr.bf16.mxu0 0
    %311 = vmatpush1.bf16.msra.mxu0 0
    %312 = vmatprep.subr.bf16.mxu0 0
    %313 = vmatpush1.bf16.msra.mxu0 0
    %314 = vmatprep.subr.bf16.mxu0 0
    %315 = vmatpush1.bf16.msra.mxu0 0
    %316 = vmatprep.subr.bf16.mxu0 0
    %317 = vmatpush1.bf16.msra.mxu0 0
    %318 = vmatprep.subr.bf16.mxu0 0
    %319 = vmatpush1.bf16.msra.mxu0 %v229
    %320 = vmatprep.subr.bf16.mxu0 0
    %321 = vmatpush1.bf16.msra.mxu0 %v228
    %322 = vmatprep.subr.bf16.mxu0 0
    %323 = vmatpush2.bf16.msra.mxu0 0
    %324 = vmatprep.subr.bf16.mxu0 0
    %325 = vmatpush2.bf16.msra.mxu0 0
    %326 = vmatprep.subr.bf16.mxu0 0
    %327 = vmatpush2.bf16.msra.mxu0 0
    %328 = vmatprep.subr.bf16.mxu0 0
    %329 = vmatpush2.bf16.msra.mxu0 0
    %330 = vmatprep.subr.bf16.mxu0 0
    %331 = vmatpush2.bf16.msra.mxu0 0
    %332 = vmatprep.subr.bf16.mxu0 0
    %333 = vmatpush2.bf16.msra.mxu0 0
    %334 = vmatprep.subr.bf16.mxu0 0
    %335 = vmatpush2.bf16.msra.mxu0 0
    %336 = vmatprep.subr.bf16.mxu0 0
    %337 = vmatpush2.bf16.msra.mxu0 0
    %338 = vmatprep.mubr.bf16.mxu0 0
    %339 = vmatmul.mubr.bf16.gmra.mxu0 %v233
    %v340 = vpop.f32.mrf.mxu0
    %v341 = vadd.f32 0.0, %v340
    %v342 = vpop.f32.mrf.mxu0
    %v343 = vpop.f32.mrf.mxu0
    %v344 = vpop.f32.mrf.mxu0
    %345 = vdwg.mxu0
    %v346 = vadd.f32 %v305, %v341
    %v347 = vxor.u32 %v346, 2147483648
    %v348 = vmul.f32 %v347, 1.442695
    %v349 = vpow.pop %v348
    %v350 = vadd.f32 %v349, 1.0
    %v351 = vrcp.pop %v350
    %v352 = vmul.f32 1.0, %v351
    %v353 = vtanh.pop %v346
    %v354 = vmul.f32 %v352, 0.0
    %356 = vrot.lane.b32.xlu0 %v353, 64
    %v357 = vpop.permute.xlu0 %356
    %v359 = vmul.f32 %v352, %v357
    %361 = vrot.lane.b32.xlu0 %v359, 32
    %v362 = vpop.permute.xlu0 %361
    %v364 = vadd.f32 %v354, %v362
    %v365 = vtanh.pop %v364
    %367 = vrot.lane.b32.xlu0 %v365, 64
    %v368 = vpop.permute.xlu0 %367
    %v370 = vmul.f32 %v352, %v368
    %372 = vrot.lane.b32.xlu0 %v370, 32
    %v373 = vpop.permute.xlu0 %372
    %375 = vst.msk [vmem:[#allocation5 + $0x38] sm:$0xff] %vm231, %v373
    %v376 = vld [vmem:[#allocation2 + $0x8] sm:$0xff]
    %v377 = vpack.c.bf16 %v299, %v299
    %379 = vrot.lane.b32.xlu0 %v377, 32
    %v380 = vpop.permute.xlu0 %379
    %v382 = vsel %vm231, %v380, 0
    %384 = vmatprep.subr.bf16.mxu0 0
    %385 = vmatpush1.bf16.msra.mxu0 0
    %386 = vmatprep.subr.bf16.mxu0 0
    %387 = vmatpush1.bf16.msra.mxu0 0
    %388 = vmatprep.subr.bf16.mxu0 0
    %389 = vmatpush1.bf16.msra.mxu0 0
    %390 = vmatprep.subr.bf16.mxu0 0
    %391 = vmatpush1.bf16.msra.mxu0 0
    %392 = vmatprep.subr.bf16.mxu0 0
    %393 = vmatpush1.bf16.msra.mxu0 0
    %394 = vmatprep.subr.bf16.mxu0 0
    %395 = vmatpush1.bf16.msra.mxu0 0
    %396 = vmatprep.subr.bf16.mxu0 0
    %397 = vmatpush1.bf16.msra.mxu0 %v223
    %398 = vmatprep.subr.bf16.mxu0 0
    %399 = vmatpush1.bf16.msra.mxu0 %v222
    %400 = vmatprep.subr.bf16.mxu0 0
    %401 = vmatpush2.bf16.msra.mxu0 0
    %402 = vmatprep.subr.bf16.mxu0 0
    %403 = vmatpush2.bf16.msra.mxu0 0
    %404 = vmatprep.subr.bf16.mxu0 0
    %405 = vmatpush2.bf16.msra.mxu0 0
    %406 = vmatprep.subr.bf16.mxu0 0
    %407 = vmatpush2.bf16.msra.mxu0 0
    %408 = vmatprep.subr.bf16.mxu0 0
    %409 = vmatpush2.bf16.msra.mxu0 0
    %410 = vmatprep.subr.bf16.mxu0 0
    %411 = vmatpush2.bf16.msra.mxu0 0
    %412 = vmatprep.subr.bf16.mxu0 0
    %413 = vmatpush2.bf16.msra.mxu0 0
    %414 = vmatprep.subr.bf16.mxu0 0
    %415 = vmatpush2.bf16.msra.mxu0 0
    %416 = vmatprep.mubr.bf16.mxu0 0
    %417 = vmatmul.mubr.bf16.gmra.mxu0 %v382
    %v418 = vpop.f32.mrf.mxu0
    %v419 = vadd.f32 0.0, %v418
    %v420 = vpop.f32.mrf.mxu0
    %v421 = vpop.f32.mrf.mxu0
    %v422 = vpop.f32.mrf.mxu0
    %423 = vdwg.mxu0
    %v424 = vadd.f32 %v376, %v419
    %v425 = vxor.u32 %v424, 2147483648
    %v426 = vmul.f32 %v425, 1.442695
    %v427 = vpow.pop %v426
    %v428 = vadd.f32 %v427, 1.0
    %v429 = vrcp.pop %v428
    %v430 = vmul.f32 1.0, %v429
    %v431 = vtanh.pop %v424
    %v432 = vmul.f32 %v430, %v293
    %434 = vrot.lane.b32.xlu0 %v431, 64
    %v435 = vpop.permute.xlu0 %434
    %v437 = vmul.f32 %v430, %v435
    %439 = vrot.lane.b32.xlu0 %v437, 32
    %v440 = vpop.permute.xlu0 %439
    %v442 = vadd.f32 %v432, %v440
    %v443 = vtanh.pop %v442
    %445 = vrot.lane.b32.xlu0 %v443, 64
    %v446 = vpop.permute.xlu0 %445
    %v448 = vmul.f32 %v430, %v446
    %450 = vrot.lane.b32.xlu0 %v448, 32
    %v451 = vpop.permute.xlu0 %450
    %453 = vst.msk [vmem:[#allocation4 + $0x8] sm:$0xff] %vm231, %v451
    %v454 = vld [vmem:[#allocation3 + $0x30] sm:$0xff]
    %v455 = vpack.c.bf16 %v370, %v370
    %457 = vrot.lane.b32.xlu0 %v455, 32
    %v458 = vpop.permute.xlu0 %457
    %v460 = vsel %vm231, %v458, 0
    %462 = vmatprep.subr.bf16.mxu0 0
    %463 = vmatpush1.bf16.msra.mxu0 0
    %464 = vmatprep.subr.bf16.mxu0 0
    %465 = vmatpush1.bf16.msra.mxu0 0
    %466 = vmatprep.subr.bf16.mxu0 0
    %467 = vmatpush1.bf16.msra.mxu0 0
    %468 = vmatprep.subr.bf16.mxu0 0
    %469 = vmatpush1.bf16.msra.mxu0 0
    %470 = vmatprep.subr.bf16.mxu0 0
    %471 = vmatpush1.bf16.msra.mxu0 0
    %472 = vmatprep.subr.bf16.mxu0 0
    %473 = vmatpush1.bf16.msra.mxu0 0
    %474 = vmatprep.subr.bf16.mxu0 0
    %475 = vmatpush1.bf16.msra.mxu0 %v229
    %476 = vmatprep.subr.bf16.mxu0 0
    %477 = vmatpush1.bf16.msra.mxu0 %v228
    %478 = vmatprep.subr.bf16.mxu0 0
    %479 = vmatpush2.bf16.msra.mxu0 0
    %480 = vmatprep.subr.bf16.mxu0 0
    %481 = vmatpush2.bf16.msra.mxu0 0
    %482 = vmatprep.subr.bf16.mxu0 0
    %483 = vmatpush2.bf16.msra.mxu0 0
    %484 = vmatprep.subr.bf16.mxu0 0
    %485 = vmatpush2.bf16.msra.mxu0 0
    %486 = vmatprep.subr.bf16.mxu0 0
    %487 = vmatpush2.bf16.msra.mxu0 0
    %488 = vmatprep.subr.bf16.mxu0 0
    %489 = vmatpush2.bf16.msra.mxu0 0
    %490 = vmatprep.subr.bf16.mxu0 0
    %491 = vmatpush2.bf16.msra.mxu0 0
    %492 = vmatprep.subr.bf16.mxu0 0
    %493 = vmatpush2.bf16.msra.mxu0 0
    %494 = vmatprep.mubr.bf16.mxu0 0
    %495 = vmatmul.mubr.bf16.gmra.mxu0 %v460
    %v496 = vpop.f32.mrf.mxu0
    %v497 = vadd.f32 0.0, %v496
    %v498 = vpop.f32.mrf.mxu0
    %v499 = vpop.f32.mrf.mxu0
    %v500 = vpop.f32.mrf.mxu0
    %501 = vdwg.mxu0
    %v502 = vadd.f32 %v454, %v497
    %v503 = vxor.u32 %v502, 2147483648
    %v504 = vmul.f32 %v503, 1.442695
    %v505 = vpow.pop %v504
    %v506 = vadd.f32 %v505, 1.0
    %v507 = vrcp.pop %v506
    %v508 = vmul.f32 1.0, %v507
    %v509 = vtanh.pop %v502
    %v510 = vmul.f32 %v508, %v364
    %512 = vrot.lane.b32.xlu0 %v509, 64
    %v513 = vpop.permute.xlu0 %512
    %v515 = vmul.f32 %v508, %v513
    %517 = vrot.lane.b32.xlu0 %v515, 32
    %v518 = vpop.permute.xlu0 %517
    %v520 = vadd.f32 %v510, %v518
    %v521 = vtanh.pop %v520
    %523 = vrot.lane.b32.xlu0 %v521, 64
    %v524 = vpop.permute.xlu0 %523
    %v526 = vmul.f32 %v508, %v524
    %528 = vrot.lane.b32.xlu0 %v526, 32
    %v529 = vpop.permute.xlu0 %528
    %531 = vst.msk [vmem:[#allocation5 + $0x30] sm:$0xff] %vm231, %v529
    %v532 = vld [vmem:[#allocation2 + $0x10] sm:$0xff]
    %v533 = vpack.c.bf16 %v448, %v448
    %535 = vrot.lane.b32.xlu0 %v533, 32
    %v536 = vpop.permute.xlu0 %535
    %v538 = vsel %vm231, %v536, 0
    %540 = vmatprep.subr.bf16.mxu0 0
    %541 = vmatpush1.bf16.msra.mxu0 0
    %542 = vmatprep.subr.bf16.mxu0 0
    %543 = vmatpush1.bf16.msra.mxu0 0
    %544 = vmatprep.subr.bf16.mxu0 0
    %545 = vmatpush1.bf16.msra.mxu0 0
    %546 = vmatprep.subr.bf16.mxu0 0
    %547 = vmatpush1.bf16.msra.mxu0 0
    %548 = vmatprep.subr.bf16.mxu0 0
    %549 = vmatpush1.bf16.msra.mxu0 0
    %550 = vmatprep.subr.bf16.mxu0 0
    %551 = vmatpush1.bf16.msra.mxu0 0
    %552 = vmatprep.subr.bf16.mxu0 0
    %553 = vmatpush1.bf16.msra.mxu0 %v223
    %554 = vmatprep.subr.bf16.mxu0 0
    %555 = vmatpush1.bf16.msra.mxu0 %v222
    %556 = vmatprep.subr.bf16.mxu0 0
    %557 = vmatpush2.bf16.msra.mxu0 0
    %558 = vmatprep.subr.bf16.mxu0 0
    %559 = vmatpush2.bf16.msra.mxu0 0
    %560 = vmatprep.subr.bf16.mxu0 0
    %561 = vmatpush2.bf16.msra.mxu0 0
    %562 = vmatprep.subr.bf16.mxu0 0
    %563 = vmatpush2.bf16.msra.mxu0 0
    %564 = vmatprep.subr.bf16.mxu0 0
    %565 = vmatpush2.bf16.msra.mxu0 0
    %566 = vmatprep.subr.bf16.mxu0 0
    %567 = vmatpush2.bf16.msra.mxu0 0
    %568 = vmatprep.subr.bf16.mxu0 0
    %569 = vmatpush2.bf16.msra.mxu0 0
    %570 = vmatprep.subr.bf16.mxu0 0
    %571 = vmatpush2.bf16.msra.mxu0 0
    %572 = vmatprep.mubr.bf16.mxu0 0
    %573 = vmatmul.mubr.bf16.gmra.mxu0 %v538
    %v574 = vpop.f32.mrf.mxu0
    %v575 = vadd.f32 0.0, %v574
    %v576 = vpop.f32.mrf.mxu0
    %v577 = vpop.f32.mrf.mxu0
    %v578 = vpop.f32.mrf.mxu0
    %579 = vdwg.mxu0
    %v580 = vadd.f32 %v532, %v575
    %v581 = vxor.u32 %v580, 2147483648
    %v582 = vmul.f32 %v581, 1.442695
    %v583 = vpow.pop %v582
    %v584 = vadd.f32 %v583, 1.0
    %v585 = vrcp.pop %v584
    %v586 = vmul.f32 1.0, %v585
    %v587 = vtanh.pop %v580
    %v588 = vmul.f32 %v586, %v442
    %590 = vrot.lane.b32.xlu0 %v587, 64
    %v591 = vpop.permute.xlu0 %590
    %v593 = vmul.f32 %v586, %v591
    %595 = vrot.lane.b32.xlu0 %v593, 32
    %v596 = vpop.permute.xlu0 %595
    %v598 = vadd.f32 %v588, %v596
    %v599 = vtanh.pop %v598
    %601 = vrot.lane.b32.xlu0 %v599, 64
    %v602 = vpop.permute.xlu0 %601
    %v604 = vmul.f32 %v586, %v602
    %606 = vrot.lane.b32.xlu0 %v604, 32
    %v607 = vpop.permute.xlu0 %606
    %609 = vst.msk [vmem:[#allocation4 + $0x10] sm:$0xff] %vm231, %v607
    %v610 = vld [vmem:[#allocation3 + $0x28] sm:$0xff]
    %v611 = vpack.c.bf16 %v526, %v526
    %613 = vrot.lane.b32.xlu0 %v611, 32
    %v614 = vpop.permute.xlu0 %613
    %v616 = vsel %vm231, %v614, 0
    %618 = vmatprep.subr.bf16.mxu0 0
    %619 = vmatpush1.bf16.msra.mxu0 0
    %620 = vmatprep.subr.bf16.mxu0 0
    %621 = vmatpush1.bf16.msra.mxu0 0
    %622 = vmatprep.subr.bf16.mxu0 0
    %623 = vmatpush1.bf16.msra.mxu0 0
    %624 = vmatprep.subr.bf16.mxu0 0
    %625 = vmatpush1.bf16.msra.mxu0 0
    %626 = vmatprep.subr.bf16.mxu0 0
    %627 = vmatpush1.bf16.msra.mxu0 0
    %628 = vmatprep.subr.bf16.mxu0 0
    %629 = vmatpush1.bf16.msra.mxu0 0
    %630 = vmatprep.subr.bf16.mxu0 0
    %631 = vmatpush1.bf16.msra.mxu0 %v229
    %632 = vmatprep.subr.bf16.mxu0 0
    %633 = vmatpush1.bf16.msra.mxu0 %v228
    %634 = vmatprep.subr.bf16.mxu0 0
    %635 = vmatpush2.bf16.msra.mxu0 0
    %636 = vmatprep.subr.bf16.mxu0 0
    %637 = vmatpush2.bf16.msra.mxu0 0
    %638 = vmatprep.subr.bf16.mxu0 0
    %639 = vmatpush2.bf16.msra.mxu0 0
    %640 = vmatprep.subr.bf16.mxu0 0
    %641 = vmatpush2.bf16.msra.mxu0 0
    %642 = vmatprep.subr.bf16.mxu0 0
    %643 = vmatpush2.bf16.msra.mxu0 0
    %644 = vmatprep.subr.bf16.mxu0 0
    %645 = vmatpush2.bf16.msra.mxu0 0
    %646 = vmatprep.subr.bf16.mxu0 0
    %647 = vmatpush2.bf16.msra.mxu0 0
    %648 = vmatprep.subr.bf16.mxu0 0
    %649 = vmatpush2.bf16.msra.mxu0 0
    %650 = vmatprep.mubr.bf16.mxu0 0
    %651 = vmatmul.mubr.bf16.gmra.mxu0 %v616
    %v652 = vpop.f32.mrf.mxu0
    %v653 = vadd.f32 0.0, %v652
    %v654 = vpop.f32.mrf.mxu0
    %v655 = vpop.f32.mrf.mxu0
    %v656 = vpop.f32.mrf.mxu0
    %657 = vdwg.mxu0
    %v658 = vadd.f32 %v610, %v653
    %v659 = vxor.u32 %v658, 2147483648
    %v660 = vmul.f32 %v659, 1.442695
    %v661 = vpow.pop %v660
    %v662 = vadd.f32 %v661, 1.0
    %v663 = vrcp.pop %v662
    %v664 = vmul.f32 1.0, %v663
    %v665 = vtanh.pop %v658
    %v666 = vmul.f32 %v664, %v520
    %668 = vrot.lane.b32.xlu0 %v665, 64
    %v669 = vpop.permute.xlu0 %668
    %v671 = vmul.f32 %v664, %v669
    %673 = vrot.lane.b32.xlu0 %v671, 32
    %v674 = vpop.permute.xlu0 %673
    %v676 = vadd.f32 %v666, %v674
    %v677 = vtanh.pop %v676
    %679 = vrot.lane.b32.xlu0 %v677, 64
    %v680 = vpop.permute.xlu0 %679
    %v682 = vmul.f32 %v664, %v680
    %684 = vrot.lane.b32.xlu0 %v682, 32
    %v685 = vpop.permute.xlu0 %684
    %687 = vst.msk [vmem:[#allocation5 + $0x28] sm:$0xff] %vm231, %v685
    %v688 = vld [vmem:[#allocation2 + $0x18] sm:$0xff]
    %v689 = vpack.c.bf16 %v604, %v604
    %691 = vrot.lane.b32.xlu0 %v689, 32
    %v692 = vpop.permute.xlu0 %691
    %v694 = vsel %vm231, %v692, 0
    %696 = vmatprep.subr.bf16.mxu0 0
    %697 = vmatpush1.bf16.msra.mxu0 0
    %698 = vmatprep.subr.bf16.mxu0 0
    %699 = vmatpush1.bf16.msra.mxu0 0
    %700 = vmatprep.subr.bf16.mxu0 0
    %701 = vmatpush1.bf16.msra.mxu0 0
    %702 = vmatprep.subr.bf16.mxu0 0
    %703 = vmatpush1.bf16.msra.mxu0 0
    %704 = vmatprep.subr.bf16.mxu0 0
    %705 = vmatpush1.bf16.msra.mxu0 0
    %706 = vmatprep.subr.bf16.mxu0 0
    %707 = vmatpush1.bf16.msra.mxu0 0
    %708 = vmatprep.subr.bf16.mxu0 0
    %709 = vmatpush1.bf16.msra.mxu0 %v223
    %710 = vmatprep.subr.bf16.mxu0 0
    %711 = vmatpush1.bf16.msra.mxu0 %v222
    %712 = vmatprep.subr.bf16.mxu0 0
    %713 = vmatpush2.bf16.msra.mxu0 0
    %714 = vmatprep.subr.bf16.mxu0 0
    %715 = vmatpush2.bf16.msra.mxu0 0
    %716 = vmatprep.subr.bf16.mxu0 0
    %717 = vmatpush2.bf16.msra.mxu0 0
    %718 = vmatprep.subr.bf16.mxu0 0
    %719 = vmatpush2.bf16.msra.mxu0 0
    %720 = vmatprep.subr.bf16.mxu0 0
    %721 = vmatpush2.bf16.msra.mxu0 0
    %722 = vmatprep.subr.bf16.mxu0 0
    %723 = vmatpush2.bf16.msra.mxu0 0
    %724 = vmatprep.subr.bf16.mxu0 0
    %725 = vmatpush2.bf16.msra.mxu0 0
    %726 = vmatprep.subr.bf16.mxu0 0
    %727 = vmatpush2.bf16.msra.mxu0 0
    %728 = vmatprep.mubr.bf16.mxu0 0
    %729 = vmatmul.mubr.bf16.gmra.mxu0 %v694
    %v730 = vpop.f32.mrf.mxu0
    %v731 = vadd.f32 0.0, %v730
    %v732 = vpop.f32.mrf.mxu0
    %v733 = vpop.f32.mrf.mxu0
    %v734 = vpop.f32.mrf.mxu0
    %735 = vdwg.mxu0
    %v736 = vadd.f32 %v688, %v731
    %v737 = vxor.u32 %v736, 2147483648
    %v738 = vmul.f32 %v737, 1.442695
    %v739 = vpow.pop %v738
    %v740 = vadd.f32 %v739, 1.0
    %v741 = vrcp.pop %v740
    %v742 = vmul.f32 1.0, %v741
    %v743 = vtanh.pop %v736
    %v744 = vmul.f32 %v742, %v598
    %746 = vrot.lane.b32.xlu0 %v743, 64
    %v747 = vpop.permute.xlu0 %746
    %v749 = vmul.f32 %v742, %v747
    %751 = vrot.lane.b32.xlu0 %v749, 32
    %v752 = vpop.permute.xlu0 %751
    %v754 = vadd.f32 %v744, %v752
    %v755 = vtanh.pop %v754
    %757 = vrot.lane.b32.xlu0 %v755, 64
    %v758 = vpop.permute.xlu0 %757
    %v760 = vmul.f32 %v742, %v758
    %762 = vrot.lane.b32.xlu0 %v760, 32
    %v763 = vpop.permute.xlu0 %762
    %765 = vst.msk [vmem:[#allocation4 + $0x18] sm:$0xff] %vm231, %v763
    %v766 = vld [vmem:[#allocation3 + $0x20] sm:$0xff]
    %v767 = vpack.c.bf16 %v682, %v682
    %769 = vrot.lane.b32.xlu0 %v767, 32
    %v770 = vpop.permute.xlu0 %769
    %v772 = vsel %vm231, %v770, 0
    %774 = vmatprep.subr.bf16.mxu0 0
    %775 = vmatpush1.bf16.msra.mxu0 0
    %776 = vmatprep.subr.bf16.mxu0 0
    %777 = vmatpush1.bf16.msra.mxu0 0
    %778 = vmatprep.subr.bf16.mxu0 0
    %779 = vmatpush1.bf16.msra.mxu0 0
    %780 = vmatprep.subr.bf16.mxu0 0
    %781 = vmatpush1.bf16.msra.mxu0 0
    %782 = vmatprep.subr.bf16.mxu0 0
    %783 = vmatpush1.bf16.msra.mxu0 0
    %784 = vmatprep.subr.bf16.mxu0 0
    %785 = vmatpush1.bf16.msra.mxu0 0
    %786 = vmatprep.subr.bf16.mxu0 0
    %787 = vmatpush1.bf16.msra.mxu0 %v229
    %788 = vmatprep.subr.bf16.mxu0 0
    %789 = vmatpush1.bf16.msra.mxu0 %v228
    %790 = vmatprep.subr.bf16.mxu0 0
    %791 = vmatpush2.bf16.msra.mxu0 0
    %792 = vmatprep.subr.bf16.mxu0 0
    %793 = vmatpush2.bf16.msra.mxu0 0
    %794 = vmatprep.subr.bf16.mxu0 0
    %795 = vmatpush2.bf16.msra.mxu0 0
    %796 = vmatprep.subr.bf16.mxu0 0
    %797 = vmatpush2.bf16.msra.mxu0 0
    %798 = vmatprep.subr.bf16.mxu0 0
    %799 = vmatpush2.bf16.msra.mxu0 0
    %800 = vmatprep.subr.bf16.mxu0 0
    %801 = vmatpush2.bf16.msra.mxu0 0
    %802 = vmatprep.subr.bf16.mxu0 0
    %803 = vmatpush2.bf16.msra.mxu0 0
    %804 = vmatprep.subr.bf16.mxu0 0
    %805 = vmatpush2.bf16.msra.mxu0 0
    %806 = vmatprep.mubr.bf16.mxu0 0
    %807 = vmatmul.mubr.bf16.gmra.mxu0 %v772
    %v808 = vpop.f32.mrf.mxu0
    %v809 = vadd.f32 0.0, %v808
    %v810 = vpop.f32.mrf.mxu0
    %v811 = vpop.f32.mrf.mxu0
    %v812 = vpop.f32.mrf.mxu0
    %813 = vdwg.mxu0
    %v814 = vadd.f32 %v766, %v809
    %v815 = vxor.u32 %v814, 2147483648
    %v816 = vmul.f32 %v815, 1.442695
    %v817 = vpow.pop %v816
    %v818 = vadd.f32 %v817, 1.0
    %v819 = vrcp.pop %v818
    %v820 = vmul.f32 1.0, %v819
    %v821 = vtanh.pop %v814
    %v822 = vmul.f32 %v820, %v676
    %824 = vrot.lane.b32.xlu0 %v821, 64
    %v825 = vpop.permute.xlu0 %824
    %v827 = vmul.f32 %v820, %v825
    %829 = vrot.lane.b32.xlu0 %v827, 32
    %v830 = vpop.permute.xlu0 %829
    %v832 = vadd.f32 %v822, %v830
    %v833 = vtanh.pop %v832
    %835 = vrot.lane.b32.xlu0 %v833, 64
    %v836 = vpop.permute.xlu0 %835
    %v838 = vmul.f32 %v820, %v836
    %840 = vrot.lane.b32.xlu0 %v838, 32
    %v841 = vpop.permute.xlu0 %840
    %843 = vst.msk [vmem:[#allocation5 + $0x20] sm:$0xff] %vm231, %v841
    %v844 = vld [vmem:[#allocation2 + $0x20] sm:$0xff]
    %v845 = vpack.c.bf16 %v760, %v760
    %847 = vrot.lane.b32.xlu0 %v845, 32
    %v848 = vpop.permute.xlu0 %847
    %v850 = vsel %vm231, %v848, 0
    %852 = vmatprep.subr.bf16.mxu0 0
    %853 = vmatpush1.bf16.msra.mxu0 0
    %854 = vmatprep.subr.bf16.mxu0 0
    %855 = vmatpush1.bf16.msra.mxu0 0
    %856 = vmatprep.subr.bf16.mxu0 0
    %857 = vmatpush1.bf16.msra.mxu0 0
    %858 = vmatprep.subr.bf16.mxu0 0
    %859 = vmatpush1.bf16.msra.mxu0 0
    %860 = vmatprep.subr.bf16.mxu0 0
    %861 = vmatpush1.bf16.msra.mxu0 0
    %862 = vmatprep.subr.bf16.mxu0 0
    %863 = vmatpush1.bf16.msra.mxu0 0
    %864 = vmatprep.subr.bf16.mxu0 0
    %865 = vmatpush1.bf16.msra.mxu0 %v223
    %866 = vmatprep.subr.bf16.mxu0 0
    %867 = vmatpush1.bf16.msra.mxu0 %v222
    %868 = vmatprep.subr.bf16.mxu0 0
    %869 = vmatpush2.bf16.msra.mxu0 0
    %870 = vmatprep.subr.bf16.mxu0 0
    %871 = vmatpush2.bf16.msra.mxu0 0
    %872 = vmatprep.subr.bf16.mxu0 0
    %873 = vmatpush2.bf16.msra.mxu0 0
    %874 = vmatprep.subr.bf16.mxu0 0
    %875 = vmatpush2.bf16.msra.mxu0 0
    %876 = vmatprep.subr.bf16.mxu0 0
    %877 = vmatpush2.bf16.msra.mxu0 0
    %878 = vmatprep.subr.bf16.mxu0 0
    %879 = vmatpush2.bf16.msra.mxu0 0
    %880 = vmatprep.subr.bf16.mxu0 0
    %881 = vmatpush2.bf16.msra.mxu0 0
    %882 = vmatprep.subr.bf16.mxu0 0
    %883 = vmatpush2.bf16.msra.mxu0 0
    %884 = vmatprep.mubr.bf16.mxu0 0
    %885 = vmatmul.mubr.bf16.gmra.mxu0 %v850
    %v886 = vpop.f32.mrf.mxu0
    %v887 = vadd.f32 0.0, %v886
    %v888 = vpop.f32.mrf.mxu0
    %v889 = vpop.f32.mrf.mxu0
    %v890 = vpop.f32.mrf.mxu0
    %891 = vdwg.mxu0
    %v892 = vadd.f32 %v844, %v887
    %v893 = vxor.u32 %v892, 2147483648
    %v894 = vmul.f32 %v893, 1.442695
    %v895 = vpow.pop %v894
    %v896 = vadd.f32 %v895, 1.0
    %v897 = vrcp.pop %v896
    %v898 = vmul.f32 1.0, %v897
    %v899 = vtanh.pop %v892
    %v900 = vmul.f32 %v898, %v754
    %902 = vrot.lane.b32.xlu0 %v899, 64
    %v903 = vpop.permute.xlu0 %902
    %v905 = vmul.f32 %v898, %v903
    %907 = vrot.lane.b32.xlu0 %v905, 32
    %v908 = vpop.permute.xlu0 %907
    %v910 = vadd.f32 %v900, %v908
    %v911 = vtanh.pop %v910
    %913 = vrot.lane.b32.xlu0 %v911, 64
    %v914 = vpop.permute.xlu0 %913
    %v916 = vmul.f32 %v898, %v914
    %918 = vrot.lane.b32.xlu0 %v916, 32
    %v919 = vpop.permute.xlu0 %918
    %921 = vst.msk [vmem:[#allocation4 + $0x20] sm:$0xff] %vm231, %v919
    %v922 = vld [vmem:[#allocation3 + $0x18] sm:$0xff]
    %v923 = vpack.c.bf16 %v838, %v838
    %925 = vrot.lane.b32.xlu0 %v923, 32
    %v926 = vpop.permute.xlu0 %925
    %v928 = vsel %vm231, %v926, 0
    %930 = vmatprep.subr.bf16.mxu0 0
    %931 = vmatpush1.bf16.msra.mxu0 0
    %932 = vmatprep.subr.bf16.mxu0 0
    %933 = vmatpush1.bf16.msra.mxu0 0
    %934 = vmatprep.subr.bf16.mxu0 0
    %935 = vmatpush1.bf16.msra.mxu0 0
    %936 = vmatprep.subr.bf16.mxu0 0
    %937 = vmatpush1.bf16.msra.mxu0 0
    %938 = vmatprep.subr.bf16.mxu0 0
    %939 = vmatpush1.bf16.msra.mxu0 0
    %940 = vmatprep.subr.bf16.mxu0 0
    %941 = vmatpush1.bf16.msra.mxu0 0
    %942 = vmatprep.subr.bf16.mxu0 0
    %943 = vmatpush1.bf16.msra.mxu0 %v229
    %944 = vmatprep.subr.bf16.mxu0 0
    %945 = vmatpush1.bf16.msra.mxu0 %v228
    %946 = vmatprep.subr.bf16.mxu0 0
    %947 = vmatpush2.bf16.msra.mxu0 0
    %948 = vmatprep.subr.bf16.mxu0 0
    %949 = vmatpush2.bf16.msra.mxu0 0
    %950 = vmatprep.subr.bf16.mxu0 0
    %951 = vmatpush2.bf16.msra.mxu0 0
    %952 = vmatprep.subr.bf16.mxu0 0
    %953 = vmatpush2.bf16.msra.mxu0 0
    %954 = vmatprep.subr.bf16.mxu0 0
    %955 = vmatpush2.bf16.msra.mxu0 0
    %956 = vmatprep.subr.bf16.mxu0 0
    %957 = vmatpush2.bf16.msra.mxu0 0
    %958 = vmatprep.subr.bf16.mxu0 0
    %959 = vmatpush2.bf16.msra.mxu0 0
    %960 = vmatprep.subr.bf16.mxu0 0
    %961 = vmatpush2.bf16.msra.mxu0 0
    %962 = vmatprep.mubr.bf16.mxu0 0
    %963 = vmatmul.mubr.bf16.gmra.mxu0 %v928
    %v964 = vpop.f32.mrf.mxu0
    %v965 = vadd.f32 0.0, %v964
    %v966 = vpop.f32.mrf.mxu0
    %v967 = vpop.f32.mrf.mxu0
    %v968 = vpop.f32.mrf.mxu0
    %969 = vdwg.mxu0
    %v970 = vadd.f32 %v922, %v965
    %v971 = vxor.u32 %v970, 2147483648
    %v972 = vmul.f32 %v971, 1.442695
    %v973 = vpow.pop %v972
    %v974 = vadd.f32 %v973, 1.0
    %v975 = vrcp.pop %v974
    %v976 = vmul.f32 1.0, %v975
    %v977 = vtanh.pop %v970
    %v978 = vmul.f32 %v976, %v832
    %980 = vrot.lane.b32.xlu0 %v977, 64
    %v981 = vpop.permute.xlu0 %980
    %v983 = vmul.f32 %v976, %v981
    %985 = vrot.lane.b32.xlu0 %v983, 32
    %v986 = vpop.permute.xlu0 %985
    %v988 = vadd.f32 %v978, %v986
    %v989 = vtanh.pop %v988
    %991 = vrot.lane.b32.xlu0 %v989, 64
    %v992 = vpop.permute.xlu0 %991
    %v994 = vmul.f32 %v976, %v992
    %996 = vrot.lane.b32.xlu0 %v994, 32
    %v997 = vpop.permute.xlu0 %996
    %999 = vst.msk [vmem:[#allocation5 + $0x18] sm:$0xff] %vm231, %v997
    %v1000 = vld [vmem:[#allocation2 + $0x28] sm:$0xff]
    %v1001 = vpack.c.bf16 %v916, %v916
    %1003 = vrot.lane.b32.xlu0 %v1001, 32
    %v1004 = vpop.permute.xlu0 %1003
    %v1006 = vsel %vm231, %v1004, 0
    %1008 = vmatprep.subr.bf16.mxu0 0
    %1009 = vmatpush1.bf16.msra.mxu0 0
    %1010 = vmatprep.subr.bf16.mxu0 0
    %1011 = vmatpush1.bf16.msra.mxu0 0
    %1012 = vmatprep.subr.bf16.mxu0 0
    %1013 = vmatpush1.bf16.msra.mxu0 0
    %1014 = vmatprep.subr.bf16.mxu0 0
    %1015 = vmatpush1.bf16.msra.mxu0 0
    %1016 = vmatprep.subr.bf16.mxu0 0
    %1017 = vmatpush1.bf16.msra.mxu0 0
    %1018 = vmatprep.subr.bf16.mxu0 0
    %1019 = vmatpush1.bf16.msra.mxu0 0
    %1020 = vmatprep.subr.bf16.mxu0 0
    %1021 = vmatpush1.bf16.msra.mxu0 %v223
    %1022 = vmatprep.subr.bf16.mxu0 0
    %1023 = vmatpush1.bf16.msra.mxu0 %v222
    %1024 = vmatprep.subr.bf16.mxu0 0
    %1025 = vmatpush2.bf16.msra.mxu0 0
    %1026 = vmatprep.subr.bf16.mxu0 0
    %1027 = vmatpush2.bf16.msra.mxu0 0
    %1028 = vmatprep.subr.bf16.mxu0 0
    %1029 = vmatpush2.bf16.msra.mxu0 0
    %1030 = vmatprep.subr.bf16.mxu0 0
    %1031 = vmatpush2.bf16.msra.mxu0 0
    %1032 = vmatprep.subr.bf16.mxu0 0
    %1033 = vmatpush2.bf16.msra.mxu0 0
    %1034 = vmatprep.subr.bf16.mxu0 0
    %1035 = vmatpush2.bf16.msra.mxu0 0
    %1036 = vmatprep.subr.bf16.mxu0 0
    %1037 = vmatpush2.bf16.msra.mxu0 0
    %1038 = vmatprep.subr.bf16.mxu0 0
    %1039 = vmatpush2.bf16.msra.mxu0 0
    %1040 = vmatprep.mubr.bf16.mxu0 0
    %1041 = vmatmul.mubr.bf16.gmra.mxu0 %v1006
    %v1042 = vpop.f32.mrf.mxu0
    %v1043 = vadd.f32 0.0, %v1042
    %v1044 = vpop.f32.mrf.mxu0
    %v1045 = vpop.f32.mrf.mxu0
    %v1046 = vpop.f32.mrf.mxu0
    %1047 = vdwg.mxu0
    %v1048 = vadd.f32 %v1000, %v1043
    %v1049 = vxor.u32 %v1048, 2147483648
    %v1050 = vmul.f32 %v1049, 1.442695
    %v1051 = vpow.pop %v1050
    %v1052 = vadd.f32 %v1051, 1.0
    %v1053 = vrcp.pop %v1052
    %v1054 = vmul.f32 1.0, %v1053
    %v1055 = vtanh.pop %v1048
    %v1056 = vmul.f32 %v1054, %v910
    %1058 = vrot.lane.b32.xlu0 %v1055, 64
    %v1059 = vpop.permute.xlu0 %1058
    %v1061 = vmul.f32 %v1054, %v1059
    %1063 = vrot.lane.b32.xlu0 %v1061, 32
    %v1064 = vpop.permute.xlu0 %1063
    %v1066 = vadd.f32 %v1056, %v1064
    %v1067 = vtanh.pop %v1066
    %1069 = vrot.lane.b32.xlu0 %v1067, 64
    %v1070 = vpop.permute.xlu0 %1069
    %v1072 = vmul.f32 %v1054, %v1070
    %1074 = vrot.lane.b32.xlu0 %v1072, 32
    %v1075 = vpop.permute.xlu0 %1074
    %1077 = vst.msk [vmem:[#allocation4 + $0x28] sm:$0xff] %vm231, %v1075
    %v1078 = vld [vmem:[#allocation3 + $0x10] sm:$0xff]
    %v1079 = vpack.c.bf16 %v994, %v994
    %1081 = vrot.lane.b32.xlu0 %v1079, 32
    %v1082 = vpop.permute.xlu0 %1081
    %v1084 = vsel %vm231, %v1082, 0
    %1086 = vmatprep.subr.bf16.mxu0 0
    %1087 = vmatpush1.bf16.msra.mxu0 0
    %1088 = vmatprep.subr.bf16.mxu0 0
    %1089 = vmatpush1.bf16.msra.mxu0 0
    %1090 = vmatprep.subr.bf16.mxu0 0
    %1091 = vmatpush1.bf16.msra.mxu0 0
    %1092 = vmatprep.subr.bf16.mxu0 0
    %1093 = vmatpush1.bf16.msra.mxu0 0
    %1094 = vmatprep.subr.bf16.mxu0 0
    %1095 = vmatpush1.bf16.msra.mxu0 0
    %1096 = vmatprep.subr.bf16.mxu0 0
    %1097 = vmatpush1.bf16.msra.mxu0 0
    %1098 = vmatprep.subr.bf16.mxu0 0
    %1099 = vmatpush1.bf16.msra.mxu0 %v229
    %1100 = vmatprep.subr.bf16.mxu0 0
    %1101 = vmatpush1.bf16.msra.mxu0 %v228
    %1102 = vmatprep.subr.bf16.mxu0 0
    %1103 = vmatpush2.bf16.msra.mxu0 0
    %1104 = vmatprep.subr.bf16.mxu0 0
    %1105 = vmatpush2.bf16.msra.mxu0 0
    %1106 = vmatprep.subr.bf16.mxu0 0
    %1107 = vmatpush2.bf16.msra.mxu0 0
    %1108 = vmatprep.subr.bf16.mxu0 0
    %1109 = vmatpush2.bf16.msra.mxu0 0
    %1110 = vmatprep.subr.bf16.mxu0 0
    %1111 = vmatpush2.bf16.msra.mxu0 0
    %1112 = vmatprep.subr.bf16.mxu0 0
    %1113 = vmatpush2.bf16.msra.mxu0 0
    %1114 = vmatprep.subr.bf16.mxu0 0
    %1115 = vmatpush2.bf16.msra.mxu0 0
    %1116 = vmatprep.subr.bf16.mxu0 0
    %1117 = vmatpush2.bf16.msra.mxu0 0
    %1118 = vmatprep.mubr.bf16.mxu0 0
    %1119 = vmatmul.mubr.bf16.gmra.mxu0 %v1084
    %v1120 = vpop.f32.mrf.mxu0
    %v1121 = vadd.f32 0.0, %v1120
    %v1122 = vpop.f32.mrf.mxu0
    %v1123 = vpop.f32.mrf.mxu0
    %v1124 = vpop.f32.mrf.mxu0
    %1125 = vdwg.mxu0
    %v1126 = vadd.f32 %v1078, %v1121
    %v1127 = vxor.u32 %v1126, 2147483648
    %v1128 = vmul.f32 %v1127, 1.442695
    %v1129 = vpow.pop %v1128
    %v1130 = vadd.f32 %v1129, 1.0
    %v1131 = vrcp.pop %v1130
    %v1132 = vmul.f32 1.0, %v1131
    %v1133 = vtanh.pop %v1126
    %v1134 = vmul.f32 %v1132, %v988
    %1136 = vrot.lane.b32.xlu0 %v1133, 64
    %v1137 = vpop.permute.xlu0 %1136
    %v1139 = vmul.f32 %v1132, %v1137
    %1141 = vrot.lane.b32.xlu0 %v1139, 32
    %v1142 = vpop.permute.xlu0 %1141
    %v1144 = vadd.f32 %v1134, %v1142
    %v1145 = vtanh.pop %v1144
    %1147 = vrot.lane.b32.xlu0 %v1145, 64
    %v1148 = vpop.permute.xlu0 %1147
    %v1150 = vmul.f32 %v1132, %v1148
    %1152 = vrot.lane.b32.xlu0 %v1150, 32
    %v1153 = vpop.permute.xlu0 %1152
    %1155 = vst.msk [vmem:[#allocation5 + $0x10] sm:$0xff] %vm231, %v1153
    %v1156 = vld [vmem:[#allocation2 + $0x30] sm:$0xff]
    %v1157 = vpack.c.bf16 %v1072, %v1072
    %1159 = vrot.lane.b32.xlu0 %v1157, 32
    %v1160 = vpop.permute.xlu0 %1159
    %v1162 = vsel %vm231, %v1160, 0
    %1164 = vmatprep.subr.bf16.mxu0 0
    %1165 = vmatpush1.bf16.msra.mxu0 0
    %1166 = vmatprep.subr.bf16.mxu0 0
    %1167 = vmatpush1.bf16.msra.mxu0 0
    %1168 = vmatprep.subr.bf16.mxu0 0
    %1169 = vmatpush1.bf16.msra.mxu0 0
    %1170 = vmatprep.subr.bf16.mxu0 0
    %1171 = vmatpush1.bf16.msra.mxu0 0
    %1172 = vmatprep.subr.bf16.mxu0 0
    %1173 = vmatpush1.bf16.msra.mxu0 0
    %1174 = vmatprep.subr.bf16.mxu0 0
    %1175 = vmatpush1.bf16.msra.mxu0 0
    %1176 = vmatprep.subr.bf16.mxu0 0
    %1177 = vmatpush1.bf16.msra.mxu0 %v223
    %1178 = vmatprep.subr.bf16.mxu0 0
    %1179 = vmatpush1.bf16.msra.mxu0 %v222
    %1180 = vmatprep.subr.bf16.mxu0 0
    %1181 = vmatpush2.bf16.msra.mxu0 0
    %1182 = vmatprep.subr.bf16.mxu0 0
    %1183 = vmatpush2.bf16.msra.mxu0 0
    %1184 = vmatprep.subr.bf16.mxu0 0
    %1185 = vmatpush2.bf16.msra.mxu0 0
    %1186 = vmatprep.subr.bf16.mxu0 0
    %1187 = vmatpush2.bf16.msra.mxu0 0
    %1188 = vmatprep.subr.bf16.mxu0 0
    %1189 = vmatpush2.bf16.msra.mxu0 0
    %1190 = vmatprep.subr.bf16.mxu0 0
    %1191 = vmatpush2.bf16.msra.mxu0 0
    %1192 = vmatprep.subr.bf16.mxu0 0
    %1193 = vmatpush2.bf16.msra.mxu0 0
    %1194 = vmatprep.subr.bf16.mxu0 0
    %1195 = vmatpush2.bf16.msra.mxu0 0
    %1196 = vmatprep.mubr.bf16.mxu0 0
    %1197 = vmatmul.mubr.bf16.gmra.mxu0 %v1162
    %v1198 = vpop.f32.mrf.mxu0
    %v1199 = vadd.f32 0.0, %v1198
    %v1200 = vpop.f32.mrf.mxu0
    %v1201 = vpop.f32.mrf.mxu0
    %v1202 = vpop.f32.mrf.mxu0
    %1203 = vdwg.mxu0
    %v1204 = vadd.f32 %v1156, %v1199
    %v1205 = vxor.u32 %v1204, 2147483648
    %v1206 = vmul.f32 %v1205, 1.442695
    %v1207 = vpow.pop %v1206
    %v1208 = vadd.f32 %v1207, 1.0
    %v1209 = vrcp.pop %v1208
    %v1210 = vmul.f32 1.0, %v1209
    %v1211 = vtanh.pop %v1204
    %v1212 = vmul.f32 %v1210, %v1066
    %1214 = vrot.lane.b32.xlu0 %v1211, 64
    %v1215 = vpop.permute.xlu0 %1214
    %v1217 = vmul.f32 %v1210, %v1215
    %1219 = vrot.lane.b32.xlu0 %v1217, 32
    %v1220 = vpop.permute.xlu0 %1219
    %v1222 = vadd.f32 %v1212, %v1220
    %v1223 = vtanh.pop %v1222
    %1225 = vrot.lane.b32.xlu0 %v1223, 64
    %v1226 = vpop.permute.xlu0 %1225
    %v1228 = vmul.f32 %v1210, %v1226
    %1230 = vrot.lane.b32.xlu0 %v1228, 32
    %v1231 = vpop.permute.xlu0 %1230
    %1233 = vst.msk [vmem:[#allocation4 + $0x30] sm:$0xff] %vm231, %v1231
    %v1234 = vld [vmem:[#allocation3 + $0x8] sm:$0xff]
    %v1235 = vpack.c.bf16 %v1150, %v1150
    %1237 = vrot.lane.b32.xlu0 %v1235, 32
    %v1238 = vpop.permute.xlu0 %1237
    %v1240 = vsel %vm231, %v1238, 0
    %1242 = vmatprep.subr.bf16.mxu0 0
    %1243 = vmatpush1.bf16.msra.mxu0 0
    %1244 = vmatprep.subr.bf16.mxu0 0
    %1245 = vmatpush1.bf16.msra.mxu0 0
    %1246 = vmatprep.subr.bf16.mxu0 0
    %1247 = vmatpush1.bf16.msra.mxu0 0
    %1248 = vmatprep.subr.bf16.mxu0 0
    %1249 = vmatpush1.bf16.msra.mxu0 0
    %1250 = vmatprep.subr.bf16.mxu0 0
    %1251 = vmatpush1.bf16.msra.mxu0 0
    %1252 = vmatprep.subr.bf16.mxu0 0
    %1253 = vmatpush1.bf16.msra.mxu0 0
    %1254 = vmatprep.subr.bf16.mxu0 0
    %1255 = vmatpush1.bf16.msra.mxu0 %v229
    %1256 = vmatprep.subr.bf16.mxu0 0
    %1257 = vmatpush1.bf16.msra.mxu0 %v228
    %1258 = vmatprep.subr.bf16.mxu0 0
    %1259 = vmatpush2.bf16.msra.mxu0 0
    %1260 = vmatprep.subr.bf16.mxu0 0
    %1261 = vmatpush2.bf16.msra.mxu0 0
    %1262 = vmatprep.subr.bf16.mxu0 0
    %1263 = vmatpush2.bf16.msra.mxu0 0
    %1264 = vmatprep.subr.bf16.mxu0 0
    %1265 = vmatpush2.bf16.msra.mxu0 0
    %1266 = vmatprep.subr.bf16.mxu0 0
    %1267 = vmatpush2.bf16.msra.mxu0 0
    %1268 = vmatprep.subr.bf16.mxu0 0
    %1269 = vmatpush2.bf16.msra.mxu0 0
    %1270 = vmatprep.subr.bf16.mxu0 0
    %1271 = vmatpush2.bf16.msra.mxu0 0
    %1272 = vmatprep.subr.bf16.mxu0 0
    %1273 = vmatpush2.bf16.msra.mxu0 0
    %1274 = vmatprep.mubr.bf16.mxu0 0
    %1275 = vmatmul.mubr.bf16.gmra.mxu0 %v1240
    %v1276 = vpop.f32.mrf.mxu0
    %v1277 = vadd.f32 0.0, %v1276
    %v1278 = vpop.f32.mrf.mxu0
    %v1279 = vpop.f32.mrf.mxu0
    %v1280 = vpop.f32.mrf.mxu0
    %1281 = vdwg.mxu0
    %v1282 = vadd.f32 %v1234, %v1277
    %v1283 = vxor.u32 %v1282, 2147483648
    %v1284 = vmul.f32 %v1283, 1.442695
    %v1285 = vpow.pop %v1284
    %v1286 = vadd.f32 %v1285, 1.0
    %v1287 = vrcp.pop %v1286
    %v1288 = vmul.f32 1.0, %v1287
    %v1289 = vtanh.pop %v1282
    %v1290 = vmul.f32 %v1288, %v1144
    %1292 = vrot.lane.b32.xlu0 %v1289, 64
    %v1293 = vpop.permute.xlu0 %1292
    %v1295 = vmul.f32 %v1288, %v1293
    %1297 = vrot.lane.b32.xlu0 %v1295, 32
    %v1298 = vpop.permute.xlu0 %1297
    %v1300 = vadd.f32 %v1290, %v1298
    %v1301 = vtanh.pop %v1300
    %1303 = vrot.lane.b32.xlu0 %v1301, 64
    %v1304 = vpop.permute.xlu0 %1303
    %v1306 = vmul.f32 %v1288, %v1304
    %1308 = vrot.lane.b32.xlu0 %v1306, 32
    %v1309 = vpop.permute.xlu0 %1308
    %1311 = vst.msk [vmem:[#allocation5 + $0x8] sm:$0xff] %vm231, %v1309
    %v1312 = vld [vmem:[#allocation2 + $0x38] sm:$0xff]
    %v1313 = vpack.c.bf16 %v1228, %v1228
    %1315 = vrot.lane.b32.xlu0 %v1313, 32
    %v1316 = vpop.permute.xlu0 %1315
    %v1318 = vsel %vm231, %v1316, 0
    %1320 = vmatprep.subr.bf16.mxu0 0
    %1321 = vmatpush1.bf16.msra.mxu0 0
    %1322 = vmatprep.subr.bf16.mxu0 0
    %1323 = vmatpush1.bf16.msra.mxu0 0
    %1324 = vmatprep.subr.bf16.mxu0 0
    %1325 = vmatpush1.bf16.msra.mxu0 0
    %1326 = vmatprep.subr.bf16.mxu0 0
    %1327 = vmatpush1.bf16.msra.mxu0 0
    %1328 = vmatprep.subr.bf16.mxu0 0
    %1329 = vmatpush1.bf16.msra.mxu0 0
    %1330 = vmatprep.subr.bf16.mxu0 0
    %1331 = vmatpush1.bf16.msra.mxu0 0
    %1332 = vmatprep.subr.bf16.mxu0 0
    %1333 = vmatpush1.bf16.msra.mxu0 %v223
    %1334 = vmatprep.subr.bf16.mxu0 0
    %1335 = vmatpush1.bf16.msra.mxu0 %v222
    %1336 = vmatprep.subr.bf16.mxu0 0
    %1337 = vmatpush2.bf16.msra.mxu0 0
    %1338 = vmatprep.subr.bf16.mxu0 0
    %1339 = vmatpush2.bf16.msra.mxu0 0
    %1340 = vmatprep.subr.bf16.mxu0 0
    %1341 = vmatpush2.bf16.msra.mxu0 0
    %1342 = vmatprep.subr.bf16.mxu0 0
    %1343 = vmatpush2.bf16.msra.mxu0 0
    %1344 = vmatprep.subr.bf16.mxu0 0
    %1345 = vmatpush2.bf16.msra.mxu0 0
    %1346 = vmatprep.subr.bf16.mxu0 0
    %1347 = vmatpush2.bf16.msra.mxu0 0
    %1348 = vmatprep.subr.bf16.mxu0 0
    %1349 = vmatpush2.bf16.msra.mxu0 0
    %1350 = vmatprep.subr.bf16.mxu0 0
    %1351 = vmatpush2.bf16.msra.mxu0 0
    %1352 = vmatprep.mubr.bf16.mxu0 0
    %1353 = vmatmul.mubr.bf16.gmra.mxu0 %v1318
    %v1354 = vpop.f32.mrf.mxu0
    %v1355 = vadd.f32 0.0, %v1354
    %v1356 = vpop.f32.mrf.mxu0
    %v1357 = vpop.f32.mrf.mxu0
    %v1358 = vpop.f32.mrf.mxu0
    %1359 = vdwg.mxu0
    %v1360 = vadd.f32 %v1312, %v1355
    %v1361 = vxor.u32 %v1360, 2147483648
    %v1362 = vmul.f32 %v1361, 1.442695
    %v1363 = vpow.pop %v1362
    %v1364 = vadd.f32 %v1363, 1.0
    %v1365 = vrcp.pop %v1364
    %v1366 = vmul.f32 1.0, %v1365
    %v1367 = vtanh.pop %v1360
    %v1368 = vmul.f32 %v1366, %v1222
    %1370 = vrot.lane.b32.xlu0 %v1367, 64
    %v1371 = vpop.permute.xlu0 %1370
    %v1373 = vmul.f32 %v1366, %v1371
    %1375 = vrot.lane.b32.xlu0 %v1373, 32
    %v1376 = vpop.permute.xlu0 %1375
    %v1378 = vadd.f32 %v1368, %v1376
    %v1379 = vtanh.pop %v1378
    %1381 = vrot.lane.b32.xlu0 %v1379, 64
    %v1382 = vpop.permute.xlu0 %1381
    %v1384 = vmul.f32 %v1366, %v1382
    %1386 = vrot.lane.b32.xlu0 %v1384, 32
    %v1387 = vpop.permute.xlu0 %1386
    %1389 = vst.msk [vmem:[#allocation4 + $0x38] sm:$0xff] %vm231, %v1387
    %v1390 = vld [vmem:[#allocation3] sm:$0xff]
    %v1391 = vpack.c.bf16 %v1306, %v1306
    %1393 = vrot.lane.b32.xlu0 %v1391, 32
    %v1394 = vpop.permute.xlu0 %1393
    %v1396 = vsel %vm231, %v1394, 0
    %1398 = vmatprep.subr.bf16.mxu0 0
    %1399 = vmatpush1.bf16.msra.mxu0 0
    %1400 = vmatprep.subr.bf16.mxu0 0
    %1401 = vmatpush1.bf16.msra.mxu0 0
    %1402 = vmatprep.subr.bf16.mxu0 0
    %1403 = vmatpush1.bf16.msra.mxu0 0
    %1404 = vmatprep.subr.bf16.mxu0 0
    %1405 = vmatpush1.bf16.msra.mxu0 0
    %1406 = vmatprep.subr.bf16.mxu0 0
    %1407 = vmatpush1.bf16.msra.mxu0 0
    %1408 = vmatprep.subr.bf16.mxu0 0
    %1409 = vmatpush1.bf16.msra.mxu0 0
    %1410 = vmatprep.subr.bf16.mxu0 0
    %1411 = vmatpush1.bf16.msra.mxu0 %v229
    %1412 = vmatprep.subr.bf16.mxu0 0
    %1413 = vmatpush1.bf16.msra.mxu0 %v228
    %1414 = vmatprep.subr.bf16.mxu0 0
    %1415 = vmatpush2.bf16.msra.mxu0 0
    %1416 = vmatprep.subr.bf16.mxu0 0
    %1417 = vmatpush2.bf16.msra.mxu0 0
    %1418 = vmatprep.subr.bf16.mxu0 0
    %1419 = vmatpush2.bf16.msra.mxu0 0
    %1420 = vmatprep.subr.bf16.mxu0 0
    %1421 = vmatpush2.bf16.msra.mxu0 0
    %1422 = vmatprep.subr.bf16.mxu0 0
    %1423 = vmatpush2.bf16.msra.mxu0 0
    %1424 = vmatprep.subr.bf16.mxu0 0
    %1425 = vmatpush2.bf16.msra.mxu0 0
    %1426 = vmatprep.subr.bf16.mxu0 0
    %1427 = vmatpush2.bf16.msra.mxu0 0
    %1428 = vmatprep.subr.bf16.mxu0 0
    %1429 = vmatpush2.bf16.msra.mxu0 0
    %1430 = vmatprep.mubr.bf16.mxu0 0
    %1431 = vmatmul.mubr.bf16.gmra.mxu0 %v1396
    %v1432 = vpop.f32.mrf.mxu0
    %v1433 = vadd.f32 0.0, %v1432
    %v1434 = vpop.f32.mrf.mxu0
    %v1435 = vpop.f32.mrf.mxu0
    %v1436 = vpop.f32.mrf.mxu0
    %1437 = vdwg.mxu0
    %v1438 = vadd.f32 %v1390, %v1433
    %v1439 = vxor.u32 %v1438, 2147483648
    %v1440 = vmul.f32 %v1439, 1.442695
    %v1441 = vpow.pop %v1440
    %v1442 = vadd.f32 %v1441, 1.0
    %v1443 = vrcp.pop %v1442
    %v1444 = vmul.f32 1.0, %v1443
    %v1445 = vtanh.pop %v1438
    %v1446 = vmul.f32 %v1444, %v1300
    %1448 = vrot.lane.b32.xlu0 %v1445, 64
    %v1449 = vpop.permute.xlu0 %1448
    %v1451 = vmul.f32 %v1444, %v1449
    %1453 = vrot.lane.b32.xlu0 %v1451, 32
    %v1454 = vpop.permute.xlu0 %1453
    %v1456 = vadd.f32 %v1446, %v1454
    %v1457 = vtanh.pop %v1456
    %1459 = vrot.lane.b32.xlu0 %v1457, 64
    %v1460 = vpop.permute.xlu0 %1459
    %v1462 = vmul.f32 %v1444, %v1460
    %1464 = vrot.lane.b32.xlu0 %v1462, 32
    %v1465 = vpop.permute.xlu0 %1464
    %1467 = vst.msk [vmem:[#allocation5] sm:$0xff] %vm231, %v1465
    %v1468 = vld [vmem:[#allocation4] sm:$0xff]
    %v1469 = vld [vmem:[#allocation4 + $0x8] sm:$0xff]
    %v1470 = vld [vmem:[#allocation4 + $0x10] sm:$0xff]
    %v1471 = vld [vmem:[#allocation4 + $0x18] sm:$0xff]
    %v1472 = vld [vmem:[#allocation4 + $0x20] sm:$0xff]
    %v1473 = vld [vmem:[#allocation4 + $0x28] sm:$0xff]
    %v1474 = vld [vmem:[#allocation4 + $0x30] sm:$0xff]
    %v1475 = vld [vmem:[#allocation4 + $0x38] sm:$0xff]
    %v1476 = vpack.c.bf16 %v1469, %v1468
    %v1477 = vpack.c.bf16 %v1471, %v1470
    %v1478 = vpack.c.bf16 %v1473, %v1472
    %v1479 = vpack.c.bf16 %v1475, %v1474
    %v1480 = vld [vmem:[#allocation5] sm:$0xff]
    %v1481 = vld [vmem:[#allocation5 + $0x8] sm:$0xff]
    %v1482 = vld [vmem:[#allocation5 + $0x10] sm:$0xff]
    %v1483 = vld [vmem:[#allocation5 + $0x18] sm:$0xff]
    %v1484 = vld [vmem:[#allocation5 + $0x20] sm:$0xff]
    %v1485 = vld [vmem:[#allocation5 + $0x28] sm:$0xff]
    %v1486 = vld [vmem:[#allocation5 + $0x30] sm:$0xff]
    %v1487 = vld [vmem:[#allocation5 + $0x38] sm:$0xff]
    %v1488 = vpack.c.bf16 %v1481, %v1480
    %v1489 = vpack.c.bf16 %v1483, %v1482
    %v1490 = vpack.c.bf16 %v1485, %v1484
    %v1491 = vpack.c.bf16 %v1487, %v1486
    %v1492 = vld [vmem:[#allocation6 + $0x50] sm:$0xff]
    %v1493 = vld [vmem:[#allocation6 + $0x58] sm:$0xff]
    %v1494 = vld [vmem:[#allocation6 + $0x60] sm:$0xff]
    %v1495 = vld [vmem:[#allocation6 + $0x68] sm:$0xff]
    %v1496 = vpack.c.bf16 %v1493, %v1492
    %v1497 = vpack.c.bf16 %v1495, %v1494
    %v1498 = vld [vmem:[#allocation6 + $0x70] sm:$0xff]
    %v1499 = vld [vmem:[#allocation6 + $0x78] sm:$0xff]
    %v1500 = vld [vmem:[#allocation6 + $0x80] sm:$0xff]
    %v1501 = vld [vmem:[#allocation6 + $0x88] sm:$0xff]
    %v1502 = vpack.c.bf16 %v1499, %v1498
    %v1503 = vpack.c.bf16 %v1501, %v1500
    %v1505 = vsel %vm231, %v1488, 0
    %v1508 = vsel %vm231, %v1489, 0
    %v1511 = vsel %vm231, %v1490, 0
    %v1514 = vsel %vm231, %v1491, 0
    %1516 = vmatprep.subr.bf16.mxu0 0
    %1517 = vmatpush1.bf16.msra.mxu0 0
    %1518 = vmatprep.subr.bf16.mxu0 0
    %1519 = vmatpush1.bf16.msra.mxu0 0
    %1520 = vmatprep.subr.bf16.mxu0 0
    %1521 = vmatpush1.bf16.msra.mxu0 0
    %1522 = vmatprep.subr.bf16.mxu0 0
    %1523 = vmatpush1.bf16.msra.mxu0 0
    %1524 = vmatprep.subr.bf16.mxu0 0
    %1525 = vmatpush1.bf16.msra.mxu0 0
    %1526 = vmatprep.subr.bf16.mxu0 0
    %1527 = vmatpush1.bf16.msra.mxu0 0
    %1528 = vmatprep.subr.bf16.mxu0 0
    %1529 = vmatpush1.bf16.msra.mxu0 %v1503
    %1530 = vmatprep.subr.bf16.mxu0 0
    %1531 = vmatpush1.bf16.msra.mxu0 %v1502
    %1532 = vmatprep.subr.bf16.mxu0 0
    %1533 = vmatpush2.bf16.msra.mxu0 0
    %1534 = vmatprep.subr.bf16.mxu0 0
    %1535 = vmatpush2.bf16.msra.mxu0 0
    %1536 = vmatprep.subr.bf16.mxu0 0
    %1537 = vmatpush2.bf16.msra.mxu0 0
    %1538 = vmatprep.subr.bf16.mxu0 0
    %1539 = vmatpush2.bf16.msra.mxu0 0
    %1540 = vmatprep.subr.bf16.mxu0 0
    %1541 = vmatpush2.bf16.msra.mxu0 0
    %1542 = vmatprep.subr.bf16.mxu0 0
    %1543 = vmatpush2.bf16.msra.mxu0 0
    %1544 = vmatprep.subr.bf16.mxu0 0
    %1545 = vmatpush2.bf16.msra.mxu0 0
    %1546 = vmatprep.subr.bf16.mxu0 0
    %1547 = vmatpush2.bf16.msra.mxu0 0
    %1548 = vmatprep.mubr.bf16.mxu0 0
    %1549 = vmatmul.mubr.bf16.gmra.mxu0 %v1505
    %v1550 = vpop.f32.mrf.mxu0
    %v1551 = vadd.f32 0.0, %v1550
    %v1552 = vpop.f32.mrf.mxu0
    %v1553 = vpop.f32.mrf.mxu0
    %v1554 = vadd.f32 0.0, %v1553
    %v1555 = vpop.f32.mrf.mxu0
    %1556 = vmatprep.mubr.bf16.mxu0 0
    %1557 = vmatmul.mubr.bf16.gmra.mxu0 %v1508
    %v1558 = vpop.f32.mrf.mxu0
    %v1559 = vadd.f32 0.0, %v1558
    %v1560 = vpop.f32.mrf.mxu0
    %v1561 = vpop.f32.mrf.mxu0
    %v1562 = vadd.f32 0.0, %v1561
    %v1563 = vpop.f32.mrf.mxu0
    %1564 = vmatprep.mubr.bf16.mxu0 0
    %1565 = vmatmul.mubr.bf16.gmra.mxu0 %v1511
    %v1566 = vpop.f32.mrf.mxu0
    %v1567 = vadd.f32 0.0, %v1566
    %v1568 = vpop.f32.mrf.mxu0
    %v1569 = vpop.f32.mrf.mxu0
    %v1570 = vadd.f32 0.0, %v1569
    %v1571 = vpop.f32.mrf.mxu0
    %1572 = vmatprep.mubr.bf16.mxu0 0
    %1573 = vmatmul.mubr.bf16.gmra.mxu0 %v1514
    %v1574 = vpop.f32.mrf.mxu0
    %v1575 = vadd.f32 0.0, %v1574
    %v1576 = vpop.f32.mrf.mxu0
    %v1577 = vpop.f32.mrf.mxu0
    %v1578 = vadd.f32 0.0, %v1577
    %v1579 = vpop.f32.mrf.mxu0
    %1580 = vdwg.mxu0
    %v1582 = vsel %vm231, %v1476, 0
    %v1585 = vsel %vm231, %v1477, 0
    %v1588 = vsel %vm231, %v1478, 0
    %v1591 = vsel %vm231, %v1479, 0
    %1593 = vmatprep.subr.bf16.mxu0 0
    %1594 = vmatpush1.bf16.msra.mxu0 0
    %1595 = vmatprep.subr.bf16.mxu0 0
    %1596 = vmatpush1.bf16.msra.mxu0 0
    %1597 = vmatprep.subr.bf16.mxu0 0
    %1598 = vmatpush1.bf16.msra.mxu0 0
    %1599 = vmatprep.subr.bf16.mxu0 0
    %1600 = vmatpush1.bf16.msra.mxu0 0
    %1601 = vmatprep.subr.bf16.mxu0 0
    %1602 = vmatpush1.bf16.msra.mxu0 0
    %1603 = vmatprep.subr.bf16.mxu0 0
    %1604 = vmatpush1.bf16.msra.mxu0 0
    %1605 = vmatprep.subr.bf16.mxu0 0
    %1606 = vmatpush1.bf16.msra.mxu0 %v1497
    %1607 = vmatprep.subr.bf16.mxu0 0
    %1608 = vmatpush1.bf16.msra.mxu0 %v1496
    %1609 = vmatprep.subr.bf16.mxu0 0
    %1610 = vmatpush2.bf16.msra.mxu0 0
    %1611 = vmatprep.subr.bf16.mxu0 0
    %1612 = vmatpush2.bf16.msra.mxu0 0
    %1613 = vmatprep.subr.bf16.mxu0 0
    %1614 = vmatpush2.bf16.msra.mxu0 0
    %1615 = vmatprep.subr.bf16.mxu0 0
    %1616 = vmatpush2.bf16.msra.mxu0 0
    %1617 = vmatprep.subr.bf16.mxu0 0
    %1618 = vmatpush2.bf16.msra.mxu0 0
    %1619 = vmatprep.subr.bf16.mxu0 0
    %1620 = vmatpush2.bf16.msra.mxu0 0
    %1621 = vmatprep.subr.bf16.mxu0 0
    %1622 = vmatpush2.bf16.msra.mxu0 0
    %1623 = vmatprep.subr.bf16.mxu0 0
    %1624 = vmatpush2.bf16.msra.mxu0 0
    %1625 = vmatprep.mubr.bf16.mxu0 0
    %1626 = vmatmul.mubr.bf16.gmra.mxu0 %v1582
    %v1627 = vpop.f32.mrf.mxu0
    %v1628 = vadd.f32 %v1551, %v1627
    %v1629 = vpop.f32.mrf.mxu0
    %v1630 = vpop.f32.mrf.mxu0
    %v1631 = vadd.f32 %v1554, %v1630
    %v1632 = vpop.f32.mrf.mxu0
    %1633 = vmatprep.mubr.bf16.mxu0 0
    %1634 = vmatmul.mubr.bf16.gmra.mxu0 %v1585
    %v1635 = vpop.f32.mrf.mxu0
    %v1636 = vadd.f32 %v1559, %v1635
    %v1637 = vpop.f32.mrf.mxu0
    %v1638 = vpop.f32.mrf.mxu0
    %v1639 = vadd.f32 %v1562, %v1638
    %v1640 = vpop.f32.mrf.mxu0
    %1641 = vmatprep.mubr.bf16.mxu0 0
    %1642 = vmatmul.mubr.bf16.gmra.mxu0 %v1588
    %v1643 = vpop.f32.mrf.mxu0
    %v1644 = vadd.f32 %v1567, %v1643
    %v1645 = vpop.f32.mrf.mxu0
    %v1646 = vpop.f32.mrf.mxu0
    %v1647 = vadd.f32 %v1570, %v1646
    %v1648 = vpop.f32.mrf.mxu0
    %1649 = vmatprep.mubr.bf16.mxu0 0
    %1650 = vmatmul.mubr.bf16.gmra.mxu0 %v1591
    %v1651 = vpop.f32.mrf.mxu0
    %v1652 = vadd.f32 %v1575, %v1651
    %v1653 = vpop.f32.mrf.mxu0
    %v1654 = vpop.f32.mrf.mxu0
    %v1655 = vadd.f32 %v1578, %v1654
    %v1656 = vpop.f32.mrf.mxu0
    %1657 = vdwg.mxu0
    %v1658 = vld [vmem:[#allocation6 + $0x152] sm:$0x1]
    %v1659 = vlaneseq
    %v1660 = vshrl.u32 %v1659, 7
    %v1661 = vsub.s32 0, %v1660
    %v1662 = vrot.slane %v1658, %v1661
    %v1663 = vadd.f32 %v1628, %v1662
    %v1664 = vadd.f32 %v1631, %v1662
    %v1665 = vadd.f32 %v1636, %v1662
    %v1666 = vadd.f32 %v1639, %v1662
    %v1667 = vadd.f32 %v1644, %v1662
    %v1668 = vadd.f32 %v1647, %v1662
    %v1669 = vadd.f32 %v1652, %v1662
    %v1670 = vadd.f32 %v1655, %v1662
    %1671 = vst [vmem:[#allocation2] sm:$0xff] %v1663
    %1672 = vst [vmem:[#allocation2 + $0x8] sm:$0xff] %v1664
    %1673 = vst [vmem:[#allocation2 + $0x10] sm:$0xff] %v1665
    %1674 = vst [vmem:[#allocation2 + $0x18] sm:$0xff] %v1666
    %1675 = vst [vmem:[#allocation2 + $0x20] sm:$0xff] %v1667
    %1676 = vst [vmem:[#allocation2 + $0x28] sm:$0xff] %v1668
    %1677 = vst [vmem:[#allocation2 + $0x30] sm:$0xff] %v1669
    %1678 = vst [vmem:[#allocation2 + $0x38] sm:$0xff] %v1670
    %v1679 = vld [vmem:[#allocation6 + $0x90] sm:$0xff]
    %v1680 = vld [vmem:[#allocation6 + $0x98] sm:$0xff]
    %v1681 = vld [vmem:[#allocation6 + $0xa0] sm:$0xff]
    %v1682 = vld [vmem:[#allocation6 + $0xa8] sm:$0xff]
    %v1683 = vpack.c.bf16 %v1680, %v1679
    %v1684 = vpack.c.bf16 %v1682, %v1681
    %v1685 = vld [vmem:[#allocation6 + $0xb0] sm:$0xff]
    %v1686 = vld [vmem:[#allocation6 + $0xb8] sm:$0xff]
    %v1687 = vld [vmem:[#allocation6 + $0xc0] sm:$0xff]
    %v1688 = vld [vmem:[#allocation6 + $0xc8] sm:$0xff]
    %v1689 = vpack.c.bf16 %v1686, %v1685
    %v1690 = vpack.c.bf16 %v1688, %v1687
    %1691 = vmatprep.subr.bf16.mxu0 0
    %1692 = vmatpush1.bf16.msra.mxu0 0
    %1693 = vmatprep.subr.bf16.mxu0 0
    %1694 = vmatpush1.bf16.msra.mxu0 0
    %1695 = vmatprep.subr.bf16.mxu0 0
    %1696 = vmatpush1.bf16.msra.mxu0 0
    %1697 = vmatprep.subr.bf16.mxu0 0
    %1698 = vmatpush1.bf16.msra.mxu0 0
    %1699 = vmatprep.subr.bf16.mxu0 0
    %1700 = vmatpush1.bf16.msra.mxu0 0
    %1701 = vmatprep.subr.bf16.mxu0 0
    %1702 = vmatpush1.bf16.msra.mxu0 0
    %1703 = vmatprep.subr.bf16.mxu0 0
    %1704 = vmatpush1.bf16.msra.mxu0 %v1690
    %1705 = vmatprep.subr.bf16.mxu0 0
    %1706 = vmatpush1.bf16.msra.mxu0 %v1689
    %1707 = vmatprep.subr.bf16.mxu0 0
    %1708 = vmatpush2.bf16.msra.mxu0 0
    %1709 = vmatprep.subr.bf16.mxu0 0
    %1710 = vmatpush2.bf16.msra.mxu0 0
    %1711 = vmatprep.subr.bf16.mxu0 0
    %1712 = vmatpush2.bf16.msra.mxu0 0
    %1713 = vmatprep.subr.bf16.mxu0 0
    %1714 = vmatpush2.bf16.msra.mxu0 0
    %1715 = vmatprep.subr.bf16.mxu0 0
    %1716 = vmatpush2.bf16.msra.mxu0 0
    %1717 = vmatprep.subr.bf16.mxu0 0
    %1718 = vmatpush2.bf16.msra.mxu0 0
    %1719 = vmatprep.subr.bf16.mxu0 0
    %1720 = vmatpush2.bf16.msra.mxu0 0
    %1721 = vmatprep.subr.bf16.mxu0 0
    %1722 = vmatpush2.bf16.msra.mxu0 0
    %1723 = vmatprep.mubr.bf16.mxu0 0
    %1724 = vmatmul.mubr.bf16.gmra.mxu0 %v1505
    %v1725 = vpop.f32.mrf.mxu0
    %v1726 = vadd.f32 0.0, %v1725
    %v1727 = vpop.f32.mrf.mxu0
    %v1728 = vpop.f32.mrf.mxu0
    %v1729 = vadd.f32 0.0, %v1728
    %v1730 = vpop.f32.mrf.mxu0
    %1731 = vmatprep.mubr.bf16.mxu0 0
    %1732 = vmatmul.mubr.bf16.gmra.mxu0 %v1508
    %v1733 = vpop.f32.mrf.mxu0
    %v1734 = vadd.f32 0.0, %v1733
    %v1735 = vpop.f32.mrf.mxu0
    %v1736 = vpop.f32.mrf.mxu0
    %v1737 = vadd.f32 0.0, %v1736
    %v1738 = vpop.f32.mrf.mxu0
    %1739 = vmatprep.mubr.bf16.mxu0 0
    %1740 = vmatmul.mubr.bf16.gmra.mxu0 %v1511
    %v1741 = vpop.f32.mrf.mxu0
    %v1742 = vadd.f32 0.0, %v1741
    %v1743 = vpop.f32.mrf.mxu0
    %v1744 = vpop.f32.mrf.mxu0
    %v1745 = vadd.f32 0.0, %v1744
    %v1746 = vpop.f32.mrf.mxu0
    %1747 = vmatprep.mubr.bf16.mxu0 0
    %1748 = vmatmul.mubr.bf16.gmra.mxu0 %v1514
    %v1749 = vpop.f32.mrf.mxu0
    %v1750 = vadd.f32 0.0, %v1749
    %v1751 = vpop.f32.mrf.mxu0
    %v1752 = vpop.f32.mrf.mxu0
    %v1753 = vadd.f32 0.0, %v1752
    %v1754 = vpop.f32.mrf.mxu0
    %1755 = vdwg.mxu0
    %1756 = vmatprep.subr.bf16.mxu0 0
    %1757 = vmatpush1.bf16.msra.mxu0 0
    %1758 = vmatprep.subr.bf16.mxu0 0
    %1759 = vmatpush1.bf16.msra.mxu0 0
    %1760 = vmatprep.subr.bf16.mxu0 0
    %1761 = vmatpush1.bf16.msra.mxu0 0
    %1762 = vmatprep.subr.bf16.mxu0 0
    %1763 = vmatpush1.bf16.msra.mxu0 0
    %1764 = vmatprep.subr.bf16.mxu0 0
    %1765 = vmatpush1.bf16.msra.mxu0 0
    %1766 = vmatprep.subr.bf16.mxu0 0
    %1767 = vmatpush1.bf16.msra.mxu0 0
    %1768 = vmatprep.subr.bf16.mxu0 0
    %1769 = vmatpush1.bf16.msra.mxu0 %v1684
    %1770 = vmatprep.subr.bf16.mxu0 0
    %1771 = vmatpush1.bf16.msra.mxu0 %v1683
    %1772 = vmatprep.subr.bf16.mxu0 0
    %1773 = vmatpush2.bf16.msra.mxu0 0
    %1774 = vmatprep.subr.bf16.mxu0 0
    %1775 = vmatpush2.bf16.msra.mxu0 0
    %1776 = vmatprep.subr.bf16.mxu0 0
    %1777 = vmatpush2.bf16.msra.mxu0 0
    %1778 = vmatprep.subr.bf16.mxu0 0
    %1779 = vmatpush2.bf16.msra.mxu0 0
    %1780 = vmatprep.subr.bf16.mxu0 0
    %1781 = vmatpush2.bf16.msra.mxu0 0
    %1782 = vmatprep.subr.bf16.mxu0 0
    %1783 = vmatpush2.bf16.msra.mxu0 0
    %1784 = vmatprep.subr.bf16.mxu0 0
    %1785 = vmatpush2.bf16.msra.mxu0 0
    %1786 = vmatprep.subr.bf16.mxu0 0
    %1787 = vmatpush2.bf16.msra.mxu0 0
    %1788 = vmatprep.mubr.bf16.mxu0 0
    %1789 = vmatmul.mubr.bf16.gmra.mxu0 %v1582
    %v1790 = vpop.f32.mrf.mxu0
    %v1791 = vadd.f32 %v1726, %v1790
    %v1792 = vpop.f32.mrf.mxu0
    %v1793 = vpop.f32.mrf.mxu0
    %v1794 = vadd.f32 %v1729, %v1793
    %v1795 = vpop.f32.mrf.mxu0
    %1796 = vmatprep.mubr.bf16.mxu0 0
    %1797 = vmatmul.mubr.bf16.gmra.mxu0 %v1585
    %v1798 = vpop.f32.mrf.mxu0
    %v1799 = vadd.f32 %v1734, %v1798
    %v1800 = vpop.f32.mrf.mxu0
    %v1801 = vpop.f32.mrf.mxu0
    %v1802 = vadd.f32 %v1737, %v1801
    %v1803 = vpop.f32.mrf.mxu0
    %1804 = vmatprep.mubr.bf16.mxu0 0
    %1805 = vmatmul.mubr.bf16.gmra.mxu0 %v1588
    %v1806 = vpop.f32.mrf.mxu0
    %v1807 = vadd.f32 %v1742, %v1806
    %v1808 = vpop.f32.mrf.mxu0
    %v1809 = vpop.f32.mrf.mxu0
    %v1810 = vadd.f32 %v1745, %v1809
    %v1811 = vpop.f32.mrf.mxu0
    %1812 = vmatprep.mubr.bf16.mxu0 0
    %1813 = vmatmul.mubr.bf16.gmra.mxu0 %v1591
    %v1814 = vpop.f32.mrf.mxu0
    %v1815 = vadd.f32 %v1750, %v1814
    %v1816 = vpop.f32.mrf.mxu0
    %v1817 = vpop.f32.mrf.mxu0
    %v1818 = vadd.f32 %v1753, %v1817
    %v1819 = vpop.f32.mrf.mxu0
    %1820 = vdwg.mxu0
    %v1821 = vld [vmem:[#allocation6 + $0x153] sm:$0x1]
    %v1822 = vlaneseq
    %v1823 = vshrl.u32 %v1822, 7
    %v1824 = vsub.s32 0, %v1823
    %v1825 = vrot.slane %v1821, %v1824
    %v1826 = vadd.f32 %v1791, %v1825
    %v1827 = vadd.f32 %v1794, %v1825
    %v1828 = vadd.f32 %v1799, %v1825
    %v1829 = vadd.f32 %v1802, %v1825
    %v1830 = vadd.f32 %v1807, %v1825
    %v1831 = vadd.f32 %v1810, %v1825
    %v1832 = vadd.f32 %v1815, %v1825
    %v1833 = vadd.f32 %v1818, %v1825
    %1834 = vst [vmem:[#allocation3] sm:$0xff] %v1826
    %1835 = vst [vmem:[#allocation3 + $0x8] sm:$0xff] %v1827
    %1836 = vst [vmem:[#allocation3 + $0x10] sm:$0xff] %v1828
    %1837 = vst [vmem:[#allocation3 + $0x18] sm:$0xff] %v1829
    %1838 = vst [vmem:[#allocation3 + $0x20] sm:$0xff] %v1830
    %1839 = vst [vmem:[#allocation3 + $0x28] sm:$0xff] %v1831
    %1840 = vst [vmem:[#allocation3 + $0x30] sm:$0xff] %v1832
    %1841 = vst [vmem:[#allocation3 + $0x38] sm:$0xff] %v1833
    %v1842 = vld [vmem:[#allocation6 + $0xd0] sm:$0xff]
    %v1843 = vld [vmem:[#allocation6 + $0xd8] sm:$0xff]
    %v1844 = vld [vmem:[#allocation6 + $0xe0] sm:$0xff]
    %v1845 = vld [vmem:[#allocation6 + $0xe8] sm:$0xff]
    %v1846 = vpack.c.bf16 %v1843, %v1842
    %v1847 = vpack.c.bf16 %v1845, %v1844
    %v1848 = vld [vmem:[#allocation6 + $0xf0] sm:$0xff]
    %v1849 = vld [vmem:[#allocation6 + $0xf8] sm:$0xff]
    %v1850 = vld [vmem:[#allocation6 + $0x100] sm:$0xff]
    %v1851 = vld [vmem:[#allocation6 + $0x108] sm:$0xff]
    %v1852 = vpack.c.bf16 %v1849, %v1848
    %v1853 = vpack.c.bf16 %v1851, %v1850
    %v1854 = vld [vmem:[#allocation2] sm:$0xff]
    %1855 = vmatprep.subr.bf16.mxu0 0
    %1856 = vmatpush1.bf16.msra.mxu0 0
    %1857 = vmatprep.subr.bf16.mxu0 0
    %1858 = vmatpush1.bf16.msra.mxu0 0
    %1859 = vmatprep.subr.bf16.mxu0 0
    %1860 = vmatpush1.bf16.msra.mxu0 0
    %1861 = vmatprep.subr.bf16.mxu0 0
    %1862 = vmatpush1.bf16.msra.mxu0 0
    %1863 = vmatprep.subr.bf16.mxu0 0
    %1864 = vmatpush1.bf16.msra.mxu0 0
    %1865 = vmatprep.subr.bf16.mxu0 0
    %1866 = vmatpush1.bf16.msra.mxu0 0
    %1867 = vmatprep.subr.bf16.mxu0 0
    %1868 = vmatpush1.bf16.msra.mxu0 %v1847
    %1869 = vmatprep.subr.bf16.mxu0 0
    %1870 = vmatpush1.bf16.msra.mxu0 %v1846
    %1871 = vmatprep.subr.bf16.mxu0 0
    %1872 = vmatpush2.bf16.msra.mxu0 0
    %1873 = vmatprep.subr.bf16.mxu0 0
    %1874 = vmatpush2.bf16.msra.mxu0 0
    %1875 = vmatprep.subr.bf16.mxu0 0
    %1876 = vmatpush2.bf16.msra.mxu0 0
    %1877 = vmatprep.subr.bf16.mxu0 0
    %1878 = vmatpush2.bf16.msra.mxu0 0
    %1879 = vmatprep.subr.bf16.mxu0 0
    %1880 = vmatpush2.bf16.msra.mxu0 0
    %1881 = vmatprep.subr.bf16.mxu0 0
    %1882 = vmatpush2.bf16.msra.mxu0 0
    %1883 = vmatprep.subr.bf16.mxu0 0
    %1884 = vmatpush2.bf16.msra.mxu0 0
    %1885 = vmatprep.subr.bf16.mxu0 0
    %1886 = vmatpush2.bf16.msra.mxu0 0
    %1887 = vmatprep.mubr.bf16.mxu0 0
    %1888 = vmatmul.mubr.bf16.gmra.mxu0 %v233
    %v1889 = vpop.f32.mrf.mxu0
    %v1890 = vadd.f32 0.0, %v1889
    %v1891 = vpop.f32.mrf.mxu0
    %v1892 = vpop.f32.mrf.mxu0
    %v1893 = vpop.f32.mrf.mxu0
    %1894 = vdwg.mxu0
    %v1895 = vadd.f32 %v1854, %v1890
    %v1896 = vxor.u32 %v1895, 2147483648
    %v1897 = vmul.f32 %v1896, 1.442695
    %v1898 = vpow.pop %v1897
    %v1899 = vadd.f32 %v1898, 1.0
    %v1900 = vrcp.pop %v1899
    %v1901 = vmul.f32 1.0, %v1900
    %v1902 = vtanh.pop %v1895
    %v1903 = vmul.f32 %v1901, 0.0
    %1905 = vrot.lane.b32.xlu0 %v1902, 64
    %v1906 = vpop.permute.xlu0 %1905
    %v1908 = vmul.f32 %v1901, %v1906
    %1910 = vrot.lane.b32.xlu0 %v1908, 32
    %v1911 = vpop.permute.xlu0 %1910
    %v1913 = vadd.f32 %v1903, %v1911
    %v1914 = vtanh.pop %v1913
    %1916 = vrot.lane.b32.xlu0 %v1914, 64
    %v1917 = vpop.permute.xlu0 %1916
    %v1919 = vmul.f32 %v1901, %v1917
    %1921 = vrot.lane.b32.xlu0 %v1919, 32
    %v1922 = vpop.permute.xlu0 %1921
    %1924 = vst.msk [vmem:[#allocation4] sm:$0xff] %vm231, %v1922
    %v1925 = vld [vmem:[#allocation3 + $0x38] sm:$0xff]
    %1926 = vmatprep.subr.bf16.mxu0 0
    %1927 = vmatpush1.bf16.msra.mxu0 0
    %1928 = vmatprep.subr.bf16.mxu0 0
    %1929 = vmatpush1.bf16.msra.mxu0 0
    %1930 = vmatprep.subr.bf16.mxu0 0
    %1931 = vmatpush1.bf16.msra.mxu0 0
    %1932 = vmatprep.subr.bf16.mxu0 0
    %1933 = vmatpush1.bf16.msra.mxu0 0
    %1934 = vmatprep.subr.bf16.mxu0 0
    %1935 = vmatpush1.bf16.msra.mxu0 0
    %1936 = vmatprep.subr.bf16.mxu0 0
    %1937 = vmatpush1.bf16.msra.mxu0 0
    %1938 = vmatprep.subr.bf16.mxu0 0
    %1939 = vmatpush1.bf16.msra.mxu0 %v1853
    %1940 = vmatprep.subr.bf16.mxu0 0
    %1941 = vmatpush1.bf16.msra.mxu0 %v1852
    %1942 = vmatprep.subr.bf16.mxu0 0
    %1943 = vmatpush2.bf16.msra.mxu0 0
    %1944 = vmatprep.subr.bf16.mxu0 0
    %1945 = vmatpush2.bf16.msra.mxu0 0
    %1946 = vmatprep.subr.bf16.mxu0 0
    %1947 = vmatpush2.bf16.msra.mxu0 0
    %1948 = vmatprep.subr.bf16.mxu0 0
    %1949 = vmatpush2.bf16.msra.mxu0 0
    %1950 = vmatprep.subr.bf16.mxu0 0
    %1951 = vmatpush2.bf16.msra.mxu0 0
    %1952 = vmatprep.subr.bf16.mxu0 0
    %1953 = vmatpush2.bf16.msra.mxu0 0
    %1954 = vmatprep.subr.bf16.mxu0 0
    %1955 = vmatpush2.bf16.msra.mxu0 0
    %1956 = vmatprep.subr.bf16.mxu0 0
    %1957 = vmatpush2.bf16.msra.mxu0 0
    %1958 = vmatprep.mubr.bf16.mxu0 0
    %1959 = vmatmul.mubr.bf16.gmra.mxu0 %v233
    %v1960 = vpop.f32.mrf.mxu0
    %v1961 = vadd.f32 0.0, %v1960
    %v1962 = vpop.f32.mrf.mxu0
    %v1963 = vpop.f32.mrf.mxu0
    %v1964 = vpop.f32.mrf.mxu0
    %1965 = vdwg.mxu0
    %v1966 = vadd.f32 %v1925, %v1961
    %v1967 = vxor.u32 %v1966, 2147483648
    %v1968 = vmul.f32 %v1967, 1.442695
    %v1969 = vpow.pop %v1968
    %v1970 = vadd.f32 %v1969, 1.0
    %v1971 = vrcp.pop %v1970
    %v1972 = vmul.f32 1.0, %v1971
    %v1973 = vtanh.pop %v1966
    %v1974 = vmul.f32 %v1972, 0.0
    %1976 = vrot.lane.b32.xlu0 %v1973, 64
    %v1977 = vpop.permute.xlu0 %1976
    %v1979 = vmul.f32 %v1972, %v1977
    %1981 = vrot.lane.b32.xlu0 %v1979, 32
    %v1982 = vpop.permute.xlu0 %1981
    %v1984 = vadd.f32 %v1974, %v1982
    %v1985 = vtanh.pop %v1984
    %1987 = vrot.lane.b32.xlu0 %v1985, 64
    %v1988 = vpop.permute.xlu0 %1987
    %v1990 = vmul.f32 %v1972, %v1988
    %1992 = vrot.lane.b32.xlu0 %v1990, 32
    %v1993 = vpop.permute.xlu0 %1992
    %1995 = vst.msk [vmem:[#allocation5 + $0x38] sm:$0xff] %vm231, %v1993
    %v1996 = vld [vmem:[#allocation2 + $0x8] sm:$0xff]
    %v1997 = vpack.c.bf16 %v1919, %v1919
    %1999 = vrot.lane.b32.xlu0 %v1997, 32
    %v2000 = vpop.permute.xlu0 %1999
    %v2002 = vsel %vm231, %v2000, 0
    %2004 = vmatprep.subr.bf16.mxu0 0
    %2005 = vmatpush1.bf16.msra.mxu0 0
    %2006 = vmatprep.subr.bf16.mxu0 0
    %2007 = vmatpush1.bf16.msra.mxu0 0
    %2008 = vmatprep.subr.bf16.mxu0 0
    %2009 = vmatpush1.bf16.msra.mxu0 0
    %2010 = vmatprep.subr.bf16.mxu0 0
    %2011 = vmatpush1.bf16.msra.mxu0 0
    %2012 = vmatprep.subr.bf16.mxu0 0
    %2013 = vmatpush1.bf16.msra.mxu0 0
    %2014 = vmatprep.subr.bf16.mxu0 0
    %2015 = vmatpush1.bf16.msra.mxu0 0
    %2016 = vmatprep.subr.bf16.mxu0 0
    %2017 = vmatpush1.bf16.msra.mxu0 %v1847
    %2018 = vmatprep.subr.bf16.mxu0 0
    %2019 = vmatpush1.bf16.msra.mxu0 %v1846
    %2020 = vmatprep.subr.bf16.mxu0 0
    %2021 = vmatpush2.bf16.msra.mxu0 0
    %2022 = vmatprep.subr.bf16.mxu0 0
    %2023 = vmatpush2.bf16.msra.mxu0 0
    %2024 = vmatprep.subr.bf16.mxu0 0
    %2025 = vmatpush2.bf16.msra.mxu0 0
    %2026 = vmatprep.subr.bf16.mxu0 0
    %2027 = vmatpush2.bf16.msra.mxu0 0
    %2028 = vmatprep.subr.bf16.mxu0 0
    %2029 = vmatpush2.bf16.msra.mxu0 0
    %2030 = vmatprep.subr.bf16.mxu0 0
    %2031 = vmatpush2.bf16.msra.mxu0 0
    %2032 = vmatprep.subr.bf16.mxu0 0
    %2033 = vmatpush2.bf16.msra.mxu0 0
    %2034 = vmatprep.subr.bf16.mxu0 0
    %2035 = vmatpush2.bf16.msra.mxu0 0
    %2036 = vmatprep.mubr.bf16.mxu0 0
    %2037 = vmatmul.mubr.bf16.gmra.mxu0 %v2002
    %v2038 = vpop.f32.mrf.mxu0
    %v2039 = vadd.f32 0.0, %v2038
    %v2040 = vpop.f32.mrf.mxu0
    %v2041 = vpop.f32.mrf.mxu0
    %v2042 = vpop.f32.mrf.mxu0
    %2043 = vdwg.mxu0
    %v2044 = vadd.f32 %v1996, %v2039
    %v2045 = vxor.u32 %v2044, 2147483648
    %v2046 = vmul.f32 %v2045, 1.442695
    %v2047 = vpow.pop %v2046
    %v2048 = vadd.f32 %v2047, 1.0
    %v2049 = vrcp.pop %v2048
    %v2050 = vmul.f32 1.0, %v2049
    %v2051 = vtanh.pop %v2044
    %v2052 = vmul.f32 %v2050, %v1913
    %2054 = vrot.lane.b32.xlu0 %v2051, 64
    %v2055 = vpop.permute.xlu0 %2054
    %v2057 = vmul.f32 %v2050, %v2055
    %2059 = vrot.lane.b32.xlu0 %v2057, 32
    %v2060 = vpop.permute.xlu0 %2059
    %v2062 = vadd.f32 %v2052, %v2060
    %v2063 = vtanh.pop %v2062
    %2065 = vrot.lane.b32.xlu0 %v2063, 64
    %v2066 = vpop.permute.xlu0 %2065
    %v2068 = vmul.f32 %v2050, %v2066
    %2070 = vrot.lane.b32.xlu0 %v2068, 32
    %v2071 = vpop.permute.xlu0 %2070
    %2073 = vst.msk [vmem:[#allocation4 + $0x8] sm:$0xff] %vm231, %v2071
    %v2074 = vld [vmem:[#allocation3 + $0x30] sm:$0xff]
    %v2075 = vpack.c.bf16 %v1990, %v1990
    %2077 = vrot.lane.b32.xlu0 %v2075, 32
    %v2078 = vpop.permute.xlu0 %2077
    %v2080 = vsel %vm231, %v2078, 0
    %2082 = vmatprep.subr.bf16.mxu0 0
    %2083 = vmatpush1.bf16.msra.mxu0 0
    %2084 = vmatprep.subr.bf16.mxu0 0
    %2085 = vmatpush1.bf16.msra.mxu0 0
    %2086 = vmatprep.subr.bf16.mxu0 0
    %2087 = vmatpush1.bf16.msra.mxu0 0
    %2088 = vmatprep.subr.bf16.mxu0 0
    %2089 = vmatpush1.bf16.msra.mxu0 0
    %2090 = vmatprep.subr.bf16.mxu0 0
    %2091 = vmatpush1.bf16.msra.mxu0 0
    %2092 = vmatprep.subr.bf16.mxu0 0
    %2093 = vmatpush1.bf16.msra.mxu0 0
    %2094 = vmatprep.subr.bf16.mxu0 0
    %2095 = vmatpush1.bf16.msra.mxu0 %v1853
    %2096 = vmatprep.subr.bf16.mxu0 0
    %2097 = vmatpush1.bf16.msra.mxu0 %v1852
    %2098 = vmatprep.subr.bf16.mxu0 0
    %2099 = vmatpush2.bf16.msra.mxu0 0
    %2100 = vmatprep.subr.bf16.mxu0 0
    %2101 = vmatpush2.bf16.msra.mxu0 0
    %2102 = vmatprep.subr.bf16.mxu0 0
    %2103 = vmatpush2.bf16.msra.mxu0 0
    %2104 = vmatprep.subr.bf16.mxu0 0
    %2105 = vmatpush2.bf16.msra.mxu0 0
    %2106 = vmatprep.subr.bf16.mxu0 0
    %2107 = vmatpush2.bf16.msra.mxu0 0
    %2108 = vmatprep.subr.bf16.mxu0 0
    %2109 = vmatpush2.bf16.msra.mxu0 0
    %2110 = vmatprep.subr.bf16.mxu0 0
    %2111 = vmatpush2.bf16.msra.mxu0 0
    %2112 = vmatprep.subr.bf16.mxu0 0
    %2113 = vmatpush2.bf16.msra.mxu0 0
    %2114 = vmatprep.mubr.bf16.mxu0 0
    %2115 = vmatmul.mubr.bf16.gmra.mxu0 %v2080
    %v2116 = vpop.f32.mrf.mxu0
    %v2117 = vadd.f32 0.0, %v2116
    %v2118 = vpop.f32.mrf.mxu0
    %v2119 = vpop.f32.mrf.mxu0
    %v2120 = vpop.f32.mrf.mxu0
    %2121 = vdwg.mxu0
    %v2122 = vadd.f32 %v2074, %v2117
    %v2123 = vxor.u32 %v2122, 2147483648
    %v2124 = vmul.f32 %v2123, 1.442695
    %v2125 = vpow.pop %v2124
    %v2126 = vadd.f32 %v2125, 1.0
    %v2127 = vrcp.pop %v2126
    %v2128 = vmul.f32 1.0, %v2127
    %v2129 = vtanh.pop %v2122
    %v2130 = vmul.f32 %v2128, %v1984
    %2132 = vrot.lane.b32.xlu0 %v2129, 64
    %v2133 = vpop.permute.xlu0 %2132
    %v2135 = vmul.f32 %v2128, %v2133
    %2137 = vrot.lane.b32.xlu0 %v2135, 32
    %v2138 = vpop.permute.xlu0 %2137
    %v2140 = vadd.f32 %v2130, %v2138
    %v2141 = vtanh.pop %v2140
    %2143 = vrot.lane.b32.xlu0 %v2141, 64
    %v2144 = vpop.permute.xlu0 %2143
    %v2146 = vmul.f32 %v2128, %v2144
    %2148 = vrot.lane.b32.xlu0 %v2146, 32
    %v2149 = vpop.permute.xlu0 %2148
    %2151 = vst.msk [vmem:[#allocation5 + $0x30] sm:$0xff] %vm231, %v2149
    %v2152 = vld [vmem:[#allocation2 + $0x10] sm:$0xff]
    %v2153 = vpack.c.bf16 %v2068, %v2068
    %2155 = vrot.lane.b32.xlu0 %v2153, 32
    %v2156 = vpop.permute.xlu0 %2155
    %v2158 = vsel %vm231, %v2156, 0
    %2160 = vmatprep.subr.bf16.mxu0 0
    %2161 = vmatpush1.bf16.msra.mxu0 0
    %2162 = vmatprep.subr.bf16.mxu0 0
    %2163 = vmatpush1.bf16.msra.mxu0 0
    %2164 = vmatprep.subr.bf16.mxu0 0
    %2165 = vmatpush1.bf16.msra.mxu0 0
    %2166 = vmatprep.subr.bf16.mxu0 0
    %2167 = vmatpush1.bf16.msra.mxu0 0
    %2168 = vmatprep.subr.bf16.mxu0 0
    %2169 = vmatpush1.bf16.msra.mxu0 0
    %2170 = vmatprep.subr.bf16.mxu0 0
    %2171 = vmatpush1.bf16.msra.mxu0 0
    %2172 = vmatprep.subr.bf16.mxu0 0
    %2173 = vmatpush1.bf16.msra.mxu0 %v1847
    %2174 = vmatprep.subr.bf16.mxu0 0
    %2175 = vmatpush1.bf16.msra.mxu0 %v1846
    %2176 = vmatprep.subr.bf16.mxu0 0
    %2177 = vmatpush2.bf16.msra.mxu0 0
    %2178 = vmatprep.subr.bf16.mxu0 0
    %2179 = vmatpush2.bf16.msra.mxu0 0
    %2180 = vmatprep.subr.bf16.mxu0 0
    %2181 = vmatpush2.bf16.msra.mxu0 0
    %2182 = vmatprep.subr.bf16.mxu0 0
    %2183 = vmatpush2.bf16.msra.mxu0 0
    %2184 = vmatprep.subr.bf16.mxu0 0
    %2185 = vmatpush2.bf16.msra.mxu0 0
    %2186 = vmatprep.subr.bf16.mxu0 0
    %2187 = vmatpush2.bf16.msra.mxu0 0
    %2188 = vmatprep.subr.bf16.mxu0 0
    %2189 = vmatpush2.bf16.msra.mxu0 0
    %2190 = vmatprep.subr.bf16.mxu0 0
    %2191 = vmatpush2.bf16.msra.mxu0 0
    %2192 = vmatprep.mubr.bf16.mxu0 0
    %2193 = vmatmul.mubr.bf16.gmra.mxu0 %v2158
    %v2194 = vpop.f32.mrf.mxu0
    %v2195 = vadd.f32 0.0, %v2194
    %v2196 = vpop.f32.mrf.mxu0
    %v2197 = vpop.f32.mrf.mxu0
    %v2198 = vpop.f32.mrf.mxu0
    %2199 = vdwg.mxu0
    %v2200 = vadd.f32 %v2152, %v2195
    %v2201 = vxor.u32 %v2200, 2147483648
    %v2202 = vmul.f32 %v2201, 1.442695
    %v2203 = vpow.pop %v2202
    %v2204 = vadd.f32 %v2203, 1.0
    %v2205 = vrcp.pop %v2204
    %v2206 = vmul.f32 1.0, %v2205
    %v2207 = vtanh.pop %v2200
    %v2208 = vmul.f32 %v2206, %v2062
    %2210 = vrot.lane.b32.xlu0 %v2207, 64
    %v2211 = vpop.permute.xlu0 %2210
    %v2213 = vmul.f32 %v2206, %v2211
    %2215 = vrot.lane.b32.xlu0 %v2213, 32
    %v2216 = vpop.permute.xlu0 %2215
    %v2218 = vadd.f32 %v2208, %v2216
    %v2219 = vtanh.pop %v2218
    %2221 = vrot.lane.b32.xlu0 %v2219, 64
    %v2222 = vpop.permute.xlu0 %2221
    %v2224 = vmul.f32 %v2206, %v2222
    %2226 = vrot.lane.b32.xlu0 %v2224, 32
    %v2227 = vpop.permute.xlu0 %2226
    %2229 = vst.msk [vmem:[#allocation4 + $0x10] sm:$0xff] %vm231, %v2227
    %v2230 = vld [vmem:[#allocation3 + $0x28] sm:$0xff]
    %v2231 = vpack.c.bf16 %v2146, %v2146
    %2233 = vrot.lane.b32.xlu0 %v2231, 32
    %v2234 = vpop.permute.xlu0 %2233
    %v2236 = vsel %vm231, %v2234, 0
    %2238 = vmatprep.subr.bf16.mxu0 0
    %2239 = vmatpush1.bf16.msra.mxu0 0
    %2240 = vmatprep.subr.bf16.mxu0 0
    %2241 = vmatpush1.bf16.msra.mxu0 0
    %2242 = vmatprep.subr.bf16.mxu0 0
    %2243 = vmatpush1.bf16.msra.mxu0 0
    %2244 = vmatprep.subr.bf16.mxu0 0
    %2245 = vmatpush1.bf16.msra.mxu0 0
    %2246 = vmatprep.subr.bf16.mxu0 0
    %2247 = vmatpush1.bf16.msra.mxu0 0
    %2248 = vmatprep.subr.bf16.mxu0 0
    %2249 = vmatpush1.bf16.msra.mxu0 0
    %2250 = vmatprep.subr.bf16.mxu0 0
    %2251 = vmatpush1.bf16.msra.mxu0 %v1853
    %2252 = vmatprep.subr.bf16.mxu0 0
    %2253 = vmatpush1.bf16.msra.mxu0 %v1852
    %2254 = vmatprep.subr.bf16.mxu0 0
    %2255 = vmatpush2.bf16.msra.mxu0 0
    %2256 = vmatprep.subr.bf16.mxu0 0
    %2257 = vmatpush2.bf16.msra.mxu0 0
    %2258 = vmatprep.subr.bf16.mxu0 0
    %2259 = vmatpush2.bf16.msra.mxu0 0
    %2260 = vmatprep.subr.bf16.mxu0 0
    %2261 = vmatpush2.bf16.msra.mxu0 0
    %2262 = vmatprep.subr.bf16.mxu0 0
    %2263 = vmatpush2.bf16.msra.mxu0 0
    %2264 = vmatprep.subr.bf16.mxu0 0
    %2265 = vmatpush2.bf16.msra.mxu0 0
    %2266 = vmatprep.subr.bf16.mxu0 0
    %2267 = vmatpush2.bf16.msra.mxu0 0
    %2268 = vmatprep.subr.bf16.mxu0 0
    %2269 = vmatpush2.bf16.msra.mxu0 0
    %2270 = vmatprep.mubr.bf16.mxu0 0
    %2271 = vmatmul.mubr.bf16.gmra.mxu0 %v2236
    %v2272 = vpop.f32.mrf.mxu0
    %v2273 = vadd.f32 0.0, %v2272
    %v2274 = vpop.f32.mrf.mxu0
    %v2275 = vpop.f32.mrf.mxu0
    %v2276 = vpop.f32.mrf.mxu0
    %2277 = vdwg.mxu0
    %v2278 = vadd.f32 %v2230, %v2273
    %v2279 = vxor.u32 %v2278, 2147483648
    %v2280 = vmul.f32 %v2279, 1.442695
    %v2281 = vpow.pop %v2280
    %v2282 = vadd.f32 %v2281, 1.0
    %v2283 = vrcp.pop %v2282
    %v2284 = vmul.f32 1.0, %v2283
    %v2285 = vtanh.pop %v2278
    %v2286 = vmul.f32 %v2284, %v2140
    %2288 = vrot.lane.b32.xlu0 %v2285, 64
    %v2289 = vpop.permute.xlu0 %2288
    %v2291 = vmul.f32 %v2284, %v2289
    %2293 = vrot.lane.b32.xlu0 %v2291, 32
    %v2294 = vpop.permute.xlu0 %2293
    %v2296 = vadd.f32 %v2286, %v2294
    %v2297 = vtanh.pop %v2296
    %2299 = vrot.lane.b32.xlu0 %v2297, 64
    %v2300 = vpop.permute.xlu0 %2299
    %v2302 = vmul.f32 %v2284, %v2300
    %2304 = vrot.lane.b32.xlu0 %v2302, 32
    %v2305 = vpop.permute.xlu0 %2304
    %2307 = vst.msk [vmem:[#allocation5 + $0x28] sm:$0xff] %vm231, %v2305
    %v2308 = vld [vmem:[#allocation2 + $0x18] sm:$0xff]
    %v2309 = vpack.c.bf16 %v2224, %v2224
    %2311 = vrot.lane.b32.xlu0 %v2309, 32
    %v2312 = vpop.permute.xlu0 %2311
    %v2314 = vsel %vm231, %v2312, 0
    %2316 = vmatprep.subr.bf16.mxu0 0
    %2317 = vmatpush1.bf16.msra.mxu0 0
    %2318 = vmatprep.subr.bf16.mxu0 0
    %2319 = vmatpush1.bf16.msra.mxu0 0
    %2320 = vmatprep.subr.bf16.mxu0 0
    %2321 = vmatpush1.bf16.msra.mxu0 0
    %2322 = vmatprep.subr.bf16.mxu0 0
    %2323 = vmatpush1.bf16.msra.mxu0 0
    %2324 = vmatprep.subr.bf16.mxu0 0
    %2325 = vmatpush1.bf16.msra.mxu0 0
    %2326 = vmatprep.subr.bf16.mxu0 0
    %2327 = vmatpush1.bf16.msra.mxu0 0
    %2328 = vmatprep.subr.bf16.mxu0 0
    %2329 = vmatpush1.bf16.msra.mxu0 %v1847
    %2330 = vmatprep.subr.bf16.mxu0 0
    %2331 = vmatpush1.bf16.msra.mxu0 %v1846
    %2332 = vmatprep.subr.bf16.mxu0 0
    %2333 = vmatpush2.bf16.msra.mxu0 0
    %2334 = vmatprep.subr.bf16.mxu0 0
    %2335 = vmatpush2.bf16.msra.mxu0 0
    %2336 = vmatprep.subr.bf16.mxu0 0
    %2337 = vmatpush2.bf16.msra.mxu0 0
    %2338 = vmatprep.subr.bf16.mxu0 0
    %2339 = vmatpush2.bf16.msra.mxu0 0
    %2340 = vmatprep.subr.bf16.mxu0 0
    %2341 = vmatpush2.bf16.msra.mxu0 0
    %2342 = vmatprep.subr.bf16.mxu0 0
    %2343 = vmatpush2.bf16.msra.mxu0 0
    %2344 = vmatprep.subr.bf16.mxu0 0
    %2345 = vmatpush2.bf16.msra.mxu0 0
    %2346 = vmatprep.subr.bf16.mxu0 0
    %2347 = vmatpush2.bf16.msra.mxu0 0
    %2348 = vmatprep.mubr.bf16.mxu0 0
    %2349 = vmatmul.mubr.bf16.gmra.mxu0 %v2314
    %v2350 = vpop.f32.mrf.mxu0
    %v2351 = vadd.f32 0.0, %v2350
    %v2352 = vpop.f32.mrf.mxu0
    %v2353 = vpop.f32.mrf.mxu0
    %v2354 = vpop.f32.mrf.mxu0
    %2355 = vdwg.mxu0
    %v2356 = vadd.f32 %v2308, %v2351
    %v2357 = vxor.u32 %v2356, 2147483648
    %v2358 = vmul.f32 %v2357, 1.442695
    %v2359 = vpow.pop %v2358
    %v2360 = vadd.f32 %v2359, 1.0
    %v2361 = vrcp.pop %v2360
    %v2362 = vmul.f32 1.0, %v2361
    %v2363 = vtanh.pop %v2356
    %v2364 = vmul.f32 %v2362, %v2218
    %2366 = vrot.lane.b32.xlu0 %v2363, 64
    %v2367 = vpop.permute.xlu0 %2366
    %v2369 = vmul.f32 %v2362, %v2367
    %2371 = vrot.lane.b32.xlu0 %v2369, 32
    %v2372 = vpop.permute.xlu0 %2371
    %v2374 = vadd.f32 %v2364, %v2372
    %v2375 = vtanh.pop %v2374
    %2377 = vrot.lane.b32.xlu0 %v2375, 64
    %v2378 = vpop.permute.xlu0 %2377
    %v2380 = vmul.f32 %v2362, %v2378
    %2382 = vrot.lane.b32.xlu0 %v2380, 32
    %v2383 = vpop.permute.xlu0 %2382
    %2385 = vst.msk [vmem:[#allocation4 + $0x18] sm:$0xff] %vm231, %v2383
    %v2386 = vld [vmem:[#allocation3 + $0x20] sm:$0xff]
    %v2387 = vpack.c.bf16 %v2302, %v2302
    %2389 = vrot.lane.b32.xlu0 %v2387, 32
    %v2390 = vpop.permute.xlu0 %2389
    %v2392 = vsel %vm231, %v2390, 0
    %2394 = vmatprep.subr.bf16.mxu0 0
    %2395 = vmatpush1.bf16.msra.mxu0 0
    %2396 = vmatprep.subr.bf16.mxu0 0
    %2397 = vmatpush1.bf16.msra.mxu0 0
    %2398 = vmatprep.subr.bf16.mxu0 0
    %2399 = vmatpush1.bf16.msra.mxu0 0
    %2400 = vmatprep.subr.bf16.mxu0 0
    %2401 = vmatpush1.bf16.msra.mxu0 0
    %2402 = vmatprep.subr.bf16.mxu0 0
    %2403 = vmatpush1.bf16.msra.mxu0 0
    %2404 = vmatprep.subr.bf16.mxu0 0
    %2405 = vmatpush1.bf16.msra.mxu0 0
    %2406 = vmatprep.subr.bf16.mxu0 0
    %2407 = vmatpush1.bf16.msra.mxu0 %v1853
    %2408 = vmatprep.subr.bf16.mxu0 0
    %2409 = vmatpush1.bf16.msra.mxu0 %v1852
    %2410 = vmatprep.subr.bf16.mxu0 0
    %2411 = vmatpush2.bf16.msra.mxu0 0
    %2412 = vmatprep.subr.bf16.mxu0 0
    %2413 = vmatpush2.bf16.msra.mxu0 0
    %2414 = vmatprep.subr.bf16.mxu0 0
    %2415 = vmatpush2.bf16.msra.mxu0 0
    %2416 = vmatprep.subr.bf16.mxu0 0
    %2417 = vmatpush2.bf16.msra.mxu0 0
    %2418 = vmatprep.subr.bf16.mxu0 0
    %2419 = vmatpush2.bf16.msra.mxu0 0
    %2420 = vmatprep.subr.bf16.mxu0 0
    %2421 = vmatpush2.bf16.msra.mxu0 0
    %2422 = vmatprep.subr.bf16.mxu0 0
    %2423 = vmatpush2.bf16.msra.mxu0 0
    %2424 = vmatprep.subr.bf16.mxu0 0
    %2425 = vmatpush2.bf16.msra.mxu0 0
    %2426 = vmatprep.mubr.bf16.mxu0 0
    %2427 = vmatmul.mubr.bf16.gmra.mxu0 %v2392
    %v2428 = vpop.f32.mrf.mxu0
    %v2429 = vadd.f32 0.0, %v2428
    %v2430 = vpop.f32.mrf.mxu0
    %v2431 = vpop.f32.mrf.mxu0
    %v2432 = vpop.f32.mrf.mxu0
    %2433 = vdwg.mxu0
    %v2434 = vadd.f32 %v2386, %v2429
    %v2435 = vxor.u32 %v2434, 2147483648
    %v2436 = vmul.f32 %v2435, 1.442695
    %v2437 = vpow.pop %v2436
    %v2438 = vadd.f32 %v2437, 1.0
    %v2439 = vrcp.pop %v2438
    %v2440 = vmul.f32 1.0, %v2439
    %v2441 = vtanh.pop %v2434
    %v2442 = vmul.f32 %v2440, %v2296
    %2444 = vrot.lane.b32.xlu0 %v2441, 64
    %v2445 = vpop.permute.xlu0 %2444
    %v2447 = vmul.f32 %v2440, %v2445
    %2449 = vrot.lane.b32.xlu0 %v2447, 32
    %v2450 = vpop.permute.xlu0 %2449
    %v2452 = vadd.f32 %v2442, %v2450
    %v2453 = vtanh.pop %v2452
    %2455 = vrot.lane.b32.xlu0 %v2453, 64
    %v2456 = vpop.permute.xlu0 %2455
    %v2458 = vmul.f32 %v2440, %v2456
    %2460 = vrot.lane.b32.xlu0 %v2458, 32
    %v2461 = vpop.permute.xlu0 %2460
    %2463 = vst.msk [vmem:[#allocation5 + $0x20] sm:$0xff] %vm231, %v2461
    %v2464 = vld [vmem:[#allocation2 + $0x20] sm:$0xff]
    %v2465 = vpack.c.bf16 %v2380, %v2380
    %2467 = vrot.lane.b32.xlu0 %v2465, 32
    %v2468 = vpop.permute.xlu0 %2467
    %v2470 = vsel %vm231, %v2468, 0
    %2472 = vmatprep.subr.bf16.mxu0 0
    %2473 = vmatpush1.bf16.msra.mxu0 0
    %2474 = vmatprep.subr.bf16.mxu0 0
    %2475 = vmatpush1.bf16.msra.mxu0 0
    %2476 = vmatprep.subr.bf16.mxu0 0
    %2477 = vmatpush1.bf16.msra.mxu0 0
    %2478 = vmatprep.subr.bf16.mxu0 0
    %2479 = vmatpush1.bf16.msra.mxu0 0
    %2480 = vmatprep.subr.bf16.mxu0 0
    %2481 = vmatpush1.bf16.msra.mxu0 0
    %2482 = vmatprep.subr.bf16.mxu0 0
    %2483 = vmatpush1.bf16.msra.mxu0 0
    %2484 = vmatprep.subr.bf16.mxu0 0
    %2485 = vmatpush1.bf16.msra.mxu0 %v1847
    %2486 = vmatprep.subr.bf16.mxu0 0
    %2487 = vmatpush1.bf16.msra.mxu0 %v1846
    %2488 = vmatprep.subr.bf16.mxu0 0
    %2489 = vmatpush2.bf16.msra.mxu0 0
    %2490 = vmatprep.subr.bf16.mxu0 0
    %2491 = vmatpush2.bf16.msra.mxu0 0
    %2492 = vmatprep.subr.bf16.mxu0 0
    %2493 = vmatpush2.bf16.msra.mxu0 0
    %2494 = vmatprep.subr.bf16.mxu0 0
    %2495 = vmatpush2.bf16.msra.mxu0 0
    %2496 = vmatprep.subr.bf16.mxu0 0
    %2497 = vmatpush2.bf16.msra.mxu0 0
    %2498 = vmatprep.subr.bf16.mxu0 0
    %2499 = vmatpush2.bf16.msra.mxu0 0
    %2500 = vmatprep.subr.bf16.mxu0 0
    %2501 = vmatpush2.bf16.msra.mxu0 0
    %2502 = vmatprep.subr.bf16.mxu0 0
    %2503 = vmatpush2.bf16.msra.mxu0 0
    %2504 = vmatprep.mubr.bf16.mxu0 0
    %2505 = vmatmul.mubr.bf16.gmra.mxu0 %v2470
    %v2506 = vpop.f32.mrf.mxu0
    %v2507 = vadd.f32 0.0, %v2506
    %v2508 = vpop.f32.mrf.mxu0
    %v2509 = vpop.f32.mrf.mxu0
    %v2510 = vpop.f32.mrf.mxu0
    %2511 = vdwg.mxu0
    %v2512 = vadd.f32 %v2464, %v2507
    %v2513 = vxor.u32 %v2512, 2147483648
    %v2514 = vmul.f32 %v2513, 1.442695
    %v2515 = vpow.pop %v2514
    %v2516 = vadd.f32 %v2515, 1.0
    %v2517 = vrcp.pop %v2516
    %v2518 = vmul.f32 1.0, %v2517
    %v2519 = vtanh.pop %v2512
    %v2520 = vmul.f32 %v2518, %v2374
    %2522 = vrot.lane.b32.xlu0 %v2519, 64
    %v2523 = vpop.permute.xlu0 %2522
    %v2525 = vmul.f32 %v2518, %v2523
    %2527 = vrot.lane.b32.xlu0 %v2525, 32
    %v2528 = vpop.permute.xlu0 %2527
    %v2530 = vadd.f32 %v2520, %v2528
    %v2531 = vtanh.pop %v2530
    %2533 = vrot.lane.b32.xlu0 %v2531, 64
    %v2534 = vpop.permute.xlu0 %2533
    %v2536 = vmul.f32 %v2518, %v2534
    %2538 = vrot.lane.b32.xlu0 %v2536, 32
    %v2539 = vpop.permute.xlu0 %2538
    %2541 = vst.msk [vmem:[#allocation4 + $0x20] sm:$0xff] %vm231, %v2539
    %v2542 = vld [vmem:[#allocation3 + $0x18] sm:$0xff]
    %v2543 = vpack.c.bf16 %v2458, %v2458
    %2545 = vrot.lane.b32.xlu0 %v2543, 32
    %v2546 = vpop.permute.xlu0 %2545
    %v2548 = vsel %vm231, %v2546, 0
    %2550 = vmatprep.subr.bf16.mxu0 0
    %2551 = vmatpush1.bf16.msra.mxu0 0
    %2552 = vmatprep.subr.bf16.mxu0 0
    %2553 = vmatpush1.bf16.msra.mxu0 0
    %2554 = vmatprep.subr.bf16.mxu0 0
    %2555 = vmatpush1.bf16.msra.mxu0 0
    %2556 = vmatprep.subr.bf16.mxu0 0
    %2557 = vmatpush1.bf16.msra.mxu0 0
    %2558 = vmatprep.subr.bf16.mxu0 0
    %2559 = vmatpush1.bf16.msra.mxu0 0
    %2560 = vmatprep.subr.bf16.mxu0 0
    %2561 = vmatpush1.bf16.msra.mxu0 0
    %2562 = vmatprep.subr.bf16.mxu0 0
    %2563 = vmatpush1.bf16.msra.mxu0 %v1853
    %2564 = vmatprep.subr.bf16.mxu0 0
    %2565 = vmatpush1.bf16.msra.mxu0 %v1852
    %2566 = vmatprep.subr.bf16.mxu0 0
    %2567 = vmatpush2.bf16.msra.mxu0 0
    %2568 = vmatprep.subr.bf16.mxu0 0
    %2569 = vmatpush2.bf16.msra.mxu0 0
    %2570 = vmatprep.subr.bf16.mxu0 0
    %2571 = vmatpush2.bf16.msra.mxu0 0
    %2572 = vmatprep.subr.bf16.mxu0 0
    %2573 = vmatpush2.bf16.msra.mxu0 0
    %2574 = vmatprep.subr.bf16.mxu0 0
    %2575 = vmatpush2.bf16.msra.mxu0 0
    %2576 = vmatprep.subr.bf16.mxu0 0
    %2577 = vmatpush2.bf16.msra.mxu0 0
    %2578 = vmatprep.subr.bf16.mxu0 0
    %2579 = vmatpush2.bf16.msra.mxu0 0
    %2580 = vmatprep.subr.bf16.mxu0 0
    %2581 = vmatpush2.bf16.msra.mxu0 0
    %2582 = vmatprep.mubr.bf16.mxu0 0
    %2583 = vmatmul.mubr.bf16.gmra.mxu0 %v2548
    %v2584 = vpop.f32.mrf.mxu0
    %v2585 = vadd.f32 0.0, %v2584
    %v2586 = vpop.f32.mrf.mxu0
    %v2587 = vpop.f32.mrf.mxu0
    %v2588 = vpop.f32.mrf.mxu0
    %2589 = vdwg.mxu0
    %v2590 = vadd.f32 %v2542, %v2585
    %v2591 = vxor.u32 %v2590, 2147483648
    %v2592 = vmul.f32 %v2591, 1.442695
    %v2593 = vpow.pop %v2592
    %v2594 = vadd.f32 %v2593, 1.0
    %v2595 = vrcp.pop %v2594
    %v2596 = vmul.f32 1.0, %v2595
    %v2597 = vtanh.pop %v2590
    %v2598 = vmul.f32 %v2596, %v2452
    %2600 = vrot.lane.b32.xlu0 %v2597, 64
    %v2601 = vpop.permute.xlu0 %2600
    %v2603 = vmul.f32 %v2596, %v2601
    %2605 = vrot.lane.b32.xlu0 %v2603, 32
    %v2606 = vpop.permute.xlu0 %2605
    %v2608 = vadd.f32 %v2598, %v2606
    %v2609 = vtanh.pop %v2608
    %2611 = vrot.lane.b32.xlu0 %v2609, 64
    %v2612 = vpop.permute.xlu0 %2611
    %v2614 = vmul.f32 %v2596, %v2612
    %2616 = vrot.lane.b32.xlu0 %v2614, 32
    %v2617 = vpop.permute.xlu0 %2616
    %2619 = vst.msk [vmem:[#allocation5 + $0x18] sm:$0xff] %vm231, %v2617
    %v2620 = vld [vmem:[#allocation2 + $0x28] sm:$0xff]
    %v2621 = vpack.c.bf16 %v2536, %v2536
    %2623 = vrot.lane.b32.xlu0 %v2621, 32
    %v2624 = vpop.permute.xlu0 %2623
    %v2626 = vsel %vm231, %v2624, 0
    %2628 = vmatprep.subr.bf16.mxu0 0
    %2629 = vmatpush1.bf16.msra.mxu0 0
    %2630 = vmatprep.subr.bf16.mxu0 0
    %2631 = vmatpush1.bf16.msra.mxu0 0
    %2632 = vmatprep.subr.bf16.mxu0 0
    %2633 = vmatpush1.bf16.msra.mxu0 0
    %2634 = vmatprep.subr.bf16.mxu0 0
    %2635 = vmatpush1.bf16.msra.mxu0 0
    %2636 = vmatprep.subr.bf16.mxu0 0
    %2637 = vmatpush1.bf16.msra.mxu0 0
    %2638 = vmatprep.subr.bf16.mxu0 0
    %2639 = vmatpush1.bf16.msra.mxu0 0
    %2640 = vmatprep.subr.bf16.mxu0 0
    %2641 = vmatpush1.bf16.msra.mxu0 %v1847
    %2642 = vmatprep.subr.bf16.mxu0 0
    %2643 = vmatpush1.bf16.msra.mxu0 %v1846
    %2644 = vmatprep.subr.bf16.mxu0 0
    %2645 = vmatpush2.bf16.msra.mxu0 0
    %2646 = vmatprep.subr.bf16.mxu0 0
    %2647 = vmatpush2.bf16.msra.mxu0 0
    %2648 = vmatprep.subr.bf16.mxu0 0
    %2649 = vmatpush2.bf16.msra.mxu0 0
    %2650 = vmatprep.subr.bf16.mxu0 0
    %2651 = vmatpush2.bf16.msra.mxu0 0
    %2652 = vmatprep.subr.bf16.mxu0 0
    %2653 = vmatpush2.bf16.msra.mxu0 0
    %2654 = vmatprep.subr.bf16.mxu0 0
    %2655 = vmatpush2.bf16.msra.mxu0 0
    %2656 = vmatprep.subr.bf16.mxu0 0
    %2657 = vmatpush2.bf16.msra.mxu0 0
    %2658 = vmatprep.subr.bf16.mxu0 0
    %2659 = vmatpush2.bf16.msra.mxu0 0
    %2660 = vmatprep.mubr.bf16.mxu0 0
    %2661 = vmatmul.mubr.bf16.gmra.mxu0 %v2626
    %v2662 = vpop.f32.mrf.mxu0
    %v2663 = vadd.f32 0.0, %v2662
    %v2664 = vpop.f32.mrf.mxu0
    %v2665 = vpop.f32.mrf.mxu0
    %v2666 = vpop.f32.mrf.mxu0
    %2667 = vdwg.mxu0
    %v2668 = vadd.f32 %v2620, %v2663
    %v2669 = vxor.u32 %v2668, 2147483648
    %v2670 = vmul.f32 %v2669, 1.442695
    %v2671 = vpow.pop %v2670
    %v2672 = vadd.f32 %v2671, 1.0
    %v2673 = vrcp.pop %v2672
    %v2674 = vmul.f32 1.0, %v2673
    %v2675 = vtanh.pop %v2668
    %v2676 = vmul.f32 %v2674, %v2530
    %2678 = vrot.lane.b32.xlu0 %v2675, 64
    %v2679 = vpop.permute.xlu0 %2678
    %v2681 = vmul.f32 %v2674, %v2679
    %2683 = vrot.lane.b32.xlu0 %v2681, 32
    %v2684 = vpop.permute.xlu0 %2683
    %v2686 = vadd.f32 %v2676, %v2684
    %v2687 = vtanh.pop %v2686
    %2689 = vrot.lane.b32.xlu0 %v2687, 64
    %v2690 = vpop.permute.xlu0 %2689
    %v2692 = vmul.f32 %v2674, %v2690
    %2694 = vrot.lane.b32.xlu0 %v2692, 32
    %v2695 = vpop.permute.xlu0 %2694
    %2697 = vst.msk [vmem:[#allocation4 + $0x28] sm:$0xff] %vm231, %v2695
    %v2698 = vld [vmem:[#allocation3 + $0x10] sm:$0xff]
    %v2699 = vpack.c.bf16 %v2614, %v2614
    %2701 = vrot.lane.b32.xlu0 %v2699, 32
    %v2702 = vpop.permute.xlu0 %2701
    %v2704 = vsel %vm231, %v2702, 0
    %2706 = vmatprep.subr.bf16.mxu0 0
    %2707 = vmatpush1.bf16.msra.mxu0 0
    %2708 = vmatprep.subr.bf16.mxu0 0
    %2709 = vmatpush1.bf16.msra.mxu0 0
    %2710 = vmatprep.subr.bf16.mxu0 0
    %2711 = vmatpush1.bf16.msra.mxu0 0
    %2712 = vmatprep.subr.bf16.mxu0 0
    %2713 = vmatpush1.bf16.msra.mxu0 0
    %2714 = vmatprep.subr.bf16.mxu0 0
    %2715 = vmatpush1.bf16.msra.mxu0 0
    %2716 = vmatprep.subr.bf16.mxu0 0
    %2717 = vmatpush1.bf16.msra.mxu0 0
    %2718 = vmatprep.subr.bf16.mxu0 0
    %2719 = vmatpush1.bf16.msra.mxu0 %v1853
    %2720 = vmatprep.subr.bf16.mxu0 0
    %2721 = vmatpush1.bf16.msra.mxu0 %v1852
    %2722 = vmatprep.subr.bf16.mxu0 0
    %2723 = vmatpush2.bf16.msra.mxu0 0
    %2724 = vmatprep.subr.bf16.mxu0 0
    %2725 = vmatpush2.bf16.msra.mxu0 0
    %2726 = vmatprep.subr.bf16.mxu0 0
    %2727 = vmatpush2.bf16.msra.mxu0 0
    %2728 = vmatprep.subr.bf16.mxu0 0
    %2729 = vmatpush2.bf16.msra.mxu0 0
    %2730 = vmatprep.subr.bf16.mxu0 0
    %2731 = vmatpush2.bf16.msra.mxu0 0
    %2732 = vmatprep.subr.bf16.mxu0 0
    %2733 = vmatpush2.bf16.msra.mxu0 0
    %2734 = vmatprep.subr.bf16.mxu0 0
    %2735 = vmatpush2.bf16.msra.mxu0 0
    %2736 = vmatprep.subr.bf16.mxu0 0
    %2737 = vmatpush2.bf16.msra.mxu0 0
    %2738 = vmatprep.mubr.bf16.mxu0 0
    %2739 = vmatmul.mubr.bf16.gmra.mxu0 %v2704
    %v2740 = vpop.f32.mrf.mxu0
    %v2741 = vadd.f32 0.0, %v2740
    %v2742 = vpop.f32.mrf.mxu0
    %v2743 = vpop.f32.mrf.mxu0
    %v2744 = vpop.f32.mrf.mxu0
    %2745 = vdwg.mxu0
    %v2746 = vadd.f32 %v2698, %v2741
    %v2747 = vxor.u32 %v2746, 2147483648
    %v2748 = vmul.f32 %v2747, 1.442695
    %v2749 = vpow.pop %v2748
    %v2750 = vadd.f32 %v2749, 1.0
    %v2751 = vrcp.pop %v2750
    %v2752 = vmul.f32 1.0, %v2751
    %v2753 = vtanh.pop %v2746
    %v2754 = vmul.f32 %v2752, %v2608
    %2756 = vrot.lane.b32.xlu0 %v2753, 64
    %v2757 = vpop.permute.xlu0 %2756
    %v2759 = vmul.f32 %v2752, %v2757
    %2761 = vrot.lane.b32.xlu0 %v2759, 32
    %v2762 = vpop.permute.xlu0 %2761
    %v2764 = vadd.f32 %v2754, %v2762
    %v2765 = vtanh.pop %v2764
    %2767 = vrot.lane.b32.xlu0 %v2765, 64
    %v2768 = vpop.permute.xlu0 %2767
    %v2770 = vmul.f32 %v2752, %v2768
    %2772 = vrot.lane.b32.xlu0 %v2770, 32
    %v2773 = vpop.permute.xlu0 %2772
    %2775 = vst.msk [vmem:[#allocation5 + $0x10] sm:$0xff] %vm231, %v2773
    %v2776 = vld [vmem:[#allocation2 + $0x30] sm:$0xff]
    %v2777 = vpack.c.bf16 %v2692, %v2692
    %2779 = vrot.lane.b32.xlu0 %v2777, 32
    %v2780 = vpop.permute.xlu0 %2779
    %v2782 = vsel %vm231, %v2780, 0
    %2784 = vmatprep.subr.bf16.mxu0 0
    %2785 = vmatpush1.bf16.msra.mxu0 0
    %2786 = vmatprep.subr.bf16.mxu0 0
    %2787 = vmatpush1.bf16.msra.mxu0 0
    %2788 = vmatprep.subr.bf16.mxu0 0
    %2789 = vmatpush1.bf16.msra.mxu0 0
    %2790 = vmatprep.subr.bf16.mxu0 0
    %2791 = vmatpush1.bf16.msra.mxu0 0
    %2792 = vmatprep.subr.bf16.mxu0 0
    %2793 = vmatpush1.bf16.msra.mxu0 0
    %2794 = vmatprep.subr.bf16.mxu0 0
    %2795 = vmatpush1.bf16.msra.mxu0 0
    %2796 = vmatprep.subr.bf16.mxu0 0
    %2797 = vmatpush1.bf16.msra.mxu0 %v1847
    %2798 = vmatprep.subr.bf16.mxu0 0
    %2799 = vmatpush1.bf16.msra.mxu0 %v1846
    %2800 = vmatprep.subr.bf16.mxu0 0
    %2801 = vmatpush2.bf16.msra.mxu0 0
    %2802 = vmatprep.subr.bf16.mxu0 0
    %2803 = vmatpush2.bf16.msra.mxu0 0
    %2804 = vmatprep.subr.bf16.mxu0 0
    %2805 = vmatpush2.bf16.msra.mxu0 0
    %2806 = vmatprep.subr.bf16.mxu0 0
    %2807 = vmatpush2.bf16.msra.mxu0 0
    %2808 = vmatprep.subr.bf16.mxu0 0
    %2809 = vmatpush2.bf16.msra.mxu0 0
    %2810 = vmatprep.subr.bf16.mxu0 0
    %2811 = vmatpush2.bf16.msra.mxu0 0
    %2812 = vmatprep.subr.bf16.mxu0 0
    %2813 = vmatpush2.bf16.msra.mxu0 0
    %2814 = vmatprep.subr.bf16.mxu0 0
    %2815 = vmatpush2.bf16.msra.mxu0 0
    %2816 = vmatprep.mubr.bf16.mxu0 0
    %2817 = vmatmul.mubr.bf16.gmra.mxu0 %v2782
    %v2818 = vpop.f32.mrf.mxu0
    %v2819 = vadd.f32 0.0, %v2818
    %v2820 = vpop.f32.mrf.mxu0
    %v2821 = vpop.f32.mrf.mxu0
    %v2822 = vpop.f32.mrf.mxu0
    %2823 = vdwg.mxu0
    %v2824 = vadd.f32 %v2776, %v2819
    %v2825 = vxor.u32 %v2824, 2147483648
    %v2826 = vmul.f32 %v2825, 1.442695
    %v2827 = vpow.pop %v2826
    %v2828 = vadd.f32 %v2827, 1.0
    %v2829 = vrcp.pop %v2828
    %v2830 = vmul.f32 1.0, %v2829
    %v2831 = vtanh.pop %v2824
    %v2832 = vmul.f32 %v2830, %v2686
    %2834 = vrot.lane.b32.xlu0 %v2831, 64
    %v2835 = vpop.permute.xlu0 %2834
    %v2837 = vmul.f32 %v2830, %v2835
    %2839 = vrot.lane.b32.xlu0 %v2837, 32
    %v2840 = vpop.permute.xlu0 %2839
    %v2842 = vadd.f32 %v2832, %v2840
    %v2843 = vtanh.pop %v2842
    %2845 = vrot.lane.b32.xlu0 %v2843, 64
    %v2846 = vpop.permute.xlu0 %2845
    %v2848 = vmul.f32 %v2830, %v2846
    %2850 = vrot.lane.b32.xlu0 %v2848, 32
    %v2851 = vpop.permute.xlu0 %2850
    %2853 = vst.msk [vmem:[#allocation4 + $0x30] sm:$0xff] %vm231, %v2851
    %v2854 = vld [vmem:[#allocation3 + $0x8] sm:$0xff]
    %v2855 = vpack.c.bf16 %v2770, %v2770
    %2857 = vrot.lane.b32.xlu0 %v2855, 32
    %v2858 = vpop.permute.xlu0 %2857
    %v2860 = vsel %vm231, %v2858, 0
    %2862 = vmatprep.subr.bf16.mxu0 0
    %2863 = vmatpush1.bf16.msra.mxu0 0
    %2864 = vmatprep.subr.bf16.mxu0 0
    %2865 = vmatpush1.bf16.msra.mxu0 0
    %2866 = vmatprep.subr.bf16.mxu0 0
    %2867 = vmatpush1.bf16.msra.mxu0 0
    %2868 = vmatprep.subr.bf16.mxu0 0
    %2869 = vmatpush1.bf16.msra.mxu0 0
    %2870 = vmatprep.subr.bf16.mxu0 0
    %2871 = vmatpush1.bf16.msra.mxu0 0
    %2872 = vmatprep.subr.bf16.mxu0 0
    %2873 = vmatpush1.bf16.msra.mxu0 0
    %2874 = vmatprep.subr.bf16.mxu0 0
    %2875 = vmatpush1.bf16.msra.mxu0 %v1853
    %2876 = vmatprep.subr.bf16.mxu0 0
    %2877 = vmatpush1.bf16.msra.mxu0 %v1852
    %2878 = vmatprep.subr.bf16.mxu0 0
    %2879 = vmatpush2.bf16.msra.mxu0 0
    %2880 = vmatprep.subr.bf16.mxu0 0
    %2881 = vmatpush2.bf16.msra.mxu0 0
    %2882 = vmatprep.subr.bf16.mxu0 0
    %2883 = vmatpush2.bf16.msra.mxu0 0
    %2884 = vmatprep.subr.bf16.mxu0 0
    %2885 = vmatpush2.bf16.msra.mxu0 0
    %2886 = vmatprep.subr.bf16.mxu0 0
    %2887 = vmatpush2.bf16.msra.mxu0 0
    %2888 = vmatprep.subr.bf16.mxu0 0
    %2889 = vmatpush2.bf16.msra.mxu0 0
    %2890 = vmatprep.subr.bf16.mxu0 0
    %2891 = vmatpush2.bf16.msra.mxu0 0
    %2892 = vmatprep.subr.bf16.mxu0 0
    %2893 = vmatpush2.bf16.msra.mxu0 0
    %2894 = vmatprep.mubr.bf16.mxu0 0
    %2895 = vmatmul.mubr.bf16.gmra.mxu0 %v2860
    %v2896 = vpop.f32.mrf.mxu0
    %v2897 = vadd.f32 0.0, %v2896
    %v2898 = vpop.f32.mrf.mxu0
    %v2899 = vpop.f32.mrf.mxu0
    %v2900 = vpop.f32.mrf.mxu0
    %2901 = vdwg.mxu0
    %v2902 = vadd.f32 %v2854, %v2897
    %v2903 = vxor.u32 %v2902, 2147483648
    %v2904 = vmul.f32 %v2903, 1.442695
    %v2905 = vpow.pop %v2904
    %v2906 = vadd.f32 %v2905, 1.0
    %v2907 = vrcp.pop %v2906
    %v2908 = vmul.f32 1.0, %v2907
    %v2909 = vtanh.pop %v2902
    %v2910 = vmul.f32 %v2908, %v2764
    %2912 = vrot.lane.b32.xlu0 %v2909, 64
    %v2913 = vpop.permute.xlu0 %2912
    %v2915 = vmul.f32 %v2908, %v2913
    %2917 = vrot.lane.b32.xlu0 %v2915, 32
    %v2918 = vpop.permute.xlu0 %2917
    %v2920 = vadd.f32 %v2910, %v2918
    %v2921 = vtanh.pop %v2920
    %2923 = vrot.lane.b32.xlu0 %v2921, 64
    %v2924 = vpop.permute.xlu0 %2923
    %v2926 = vmul.f32 %v2908, %v2924
    %2928 = vrot.lane.b32.xlu0 %v2926, 32
    %v2929 = vpop.permute.xlu0 %2928
    %2931 = vst.msk [vmem:[#allocation5 + $0x8] sm:$0xff] %vm231, %v2929
    %v2932 = vld [vmem:[#allocation2 + $0x38] sm:$0xff]
    %v2933 = vpack.c.bf16 %v2848, %v2848
    %2935 = vrot.lane.b32.xlu0 %v2933, 32
    %v2936 = vpop.permute.xlu0 %2935
    %v2938 = vsel %vm231, %v2936, 0
    %2940 = vmatprep.subr.bf16.mxu0 0
    %2941 = vmatpush1.bf16.msra.mxu0 0
    %2942 = vmatprep.subr.bf16.mxu0 0
    %2943 = vmatpush1.bf16.msra.mxu0 0
    %2944 = vmatprep.subr.bf16.mxu0 0
    %2945 = vmatpush1.bf16.msra.mxu0 0
    %2946 = vmatprep.subr.bf16.mxu0 0
    %2947 = vmatpush1.bf16.msra.mxu0 0
    %2948 = vmatprep.subr.bf16.mxu0 0
    %2949 = vmatpush1.bf16.msra.mxu0 0
    %2950 = vmatprep.subr.bf16.mxu0 0
    %2951 = vmatpush1.bf16.msra.mxu0 0
    %2952 = vmatprep.subr.bf16.mxu0 0
    %2953 = vmatpush1.bf16.msra.mxu0 %v1847
    %2954 = vmatprep.subr.bf16.mxu0 0
    %2955 = vmatpush1.bf16.msra.mxu0 %v1846
    %2956 = vmatprep.subr.bf16.mxu0 0
    %2957 = vmatpush2.bf16.msra.mxu0 0
    %2958 = vmatprep.subr.bf16.mxu0 0
    %2959 = vmatpush2.bf16.msra.mxu0 0
    %2960 = vmatprep.subr.bf16.mxu0 0
    %2961 = vmatpush2.bf16.msra.mxu0 0
    %2962 = vmatprep.subr.bf16.mxu0 0
    %2963 = vmatpush2.bf16.msra.mxu0 0
    %2964 = vmatprep.subr.bf16.mxu0 0
    %2965 = vmatpush2.bf16.msra.mxu0 0
    %2966 = vmatprep.subr.bf16.mxu0 0
    %2967 = vmatpush2.bf16.msra.mxu0 0
    %2968 = vmatprep.subr.bf16.mxu0 0
    %2969 = vmatpush2.bf16.msra.mxu0 0
    %2970 = vmatprep.subr.bf16.mxu0 0
    %2971 = vmatpush2.bf16.msra.mxu0 0
    %2972 = vmatprep.mubr.bf16.mxu0 0
    %2973 = vmatmul.mubr.bf16.gmra.mxu0 %v2938
    %v2974 = vpop.f32.mrf.mxu0
    %v2975 = vadd.f32 0.0, %v2974
    %v2976 = vpop.f32.mrf.mxu0
    %v2977 = vpop.f32.mrf.mxu0
    %v2978 = vpop.f32.mrf.mxu0
    %2979 = vdwg.mxu0
    %v2980 = vadd.f32 %v2932, %v2975
    %v2981 = vxor.u32 %v2980, 2147483648
    %v2982 = vmul.f32 %v2981, 1.442695
    %v2983 = vpow.pop %v2982
    %v2984 = vadd.f32 %v2983, 1.0
    %v2985 = vrcp.pop %v2984
    %v2986 = vmul.f32 1.0, %v2985
    %v2987 = vtanh.pop %v2980
    %v2988 = vmul.f32 %v2986, %v2842
    %2990 = vrot.lane.b32.xlu0 %v2987, 64
    %v2991 = vpop.permute.xlu0 %2990
    %v2993 = vmul.f32 %v2986, %v2991
    %2995 = vrot.lane.b32.xlu0 %v2993, 32
    %v2996 = vpop.permute.xlu0 %2995
    %v2998 = vadd.f32 %v2988, %v2996
    %v2999 = vtanh.pop %v2998
    %3001 = vrot.lane.b32.xlu0 %v2999, 64
    %v3002 = vpop.permute.xlu0 %3001
    %v3004 = vmul.f32 %v2986, %v3002
    %3006 = vrot.lane.b32.xlu0 %v3004, 32
    %v3007 = vpop.permute.xlu0 %3006
    %3009 = vst.msk [vmem:[#allocation4 + $0x38] sm:$0xff] %vm231, %v3007
    %v3010 = vld [vmem:[#allocation3] sm:$0xff]
    %v3011 = vpack.c.bf16 %v2926, %v2926
    %3013 = vrot.lane.b32.xlu0 %v3011, 32
    %v3014 = vpop.permute.xlu0 %3013
    %v3016 = vsel %vm231, %v3014, 0
    %3018 = vmatprep.subr.bf16.mxu0 0
    %3019 = vmatpush1.bf16.msra.mxu0 0
    %3020 = vmatprep.subr.bf16.mxu0 0
    %3021 = vmatpush1.bf16.msra.mxu0 0
    %3022 = vmatprep.subr.bf16.mxu0 0
    %3023 = vmatpush1.bf16.msra.mxu0 0
    %3024 = vmatprep.subr.bf16.mxu0 0
    %3025 = vmatpush1.bf16.msra.mxu0 0
    %3026 = vmatprep.subr.bf16.mxu0 0
    %3027 = vmatpush1.bf16.msra.mxu0 0
    %3028 = vmatprep.subr.bf16.mxu0 0
    %3029 = vmatpush1.bf16.msra.mxu0 0
    %3030 = vmatprep.subr.bf16.mxu0 0
    %3031 = vmatpush1.bf16.msra.mxu0 %v1853
    %3032 = vmatprep.subr.bf16.mxu0 0
    %3033 = vmatpush1.bf16.msra.mxu0 %v1852
    %3034 = vmatprep.subr.bf16.mxu0 0
    %3035 = vmatpush2.bf16.msra.mxu0 0
    %3036 = vmatprep.subr.bf16.mxu0 0
    %3037 = vmatpush2.bf16.msra.mxu0 0
    %3038 = vmatprep.subr.bf16.mxu0 0
    %3039 = vmatpush2.bf16.msra.mxu0 0
    %3040 = vmatprep.subr.bf16.mxu0 0
    %3041 = vmatpush2.bf16.msra.mxu0 0
    %3042 = vmatprep.subr.bf16.mxu0 0
    %3043 = vmatpush2.bf16.msra.mxu0 0
    %3044 = vmatprep.subr.bf16.mxu0 0
    %3045 = vmatpush2.bf16.msra.mxu0 0
    %3046 = vmatprep.subr.bf16.mxu0 0
    %3047 = vmatpush2.bf16.msra.mxu0 0
    %3048 = vmatprep.subr.bf16.mxu0 0
    %3049 = vmatpush2.bf16.msra.mxu0 0
    %3050 = vmatprep.mubr.bf16.mxu0 0
    %3051 = vmatmul.mubr.bf16.gmra.mxu0 %v3016
    %v3052 = vpop.f32.mrf.mxu0
    %v3053 = vadd.f32 0.0, %v3052
    %v3054 = vpop.f32.mrf.mxu0
    %v3055 = vpop.f32.mrf.mxu0
    %v3056 = vpop.f32.mrf.mxu0
    %3057 = vdwg.mxu0
    %v3058 = vadd.f32 %v3010, %v3053
    %v3059 = vxor.u32 %v3058, 2147483648
    %v3060 = vmul.f32 %v3059, 1.442695
    %v3061 = vpow.pop %v3060
    %v3062 = vadd.f32 %v3061, 1.0
    %v3063 = vrcp.pop %v3062
    %v3064 = vmul.f32 1.0, %v3063
    %v3065 = vtanh.pop %v3058
    %v3066 = vmul.f32 %v3064, %v2920
    %3068 = vrot.lane.b32.xlu0 %v3065, 64
    %v3069 = vpop.permute.xlu0 %3068
    %v3071 = vmul.f32 %v3064, %v3069
    %3073 = vrot.lane.b32.xlu0 %v3071, 32
    %v3074 = vpop.permute.xlu0 %3073
    %v3076 = vadd.f32 %v3066, %v3074
    %v3077 = vtanh.pop %v3076
    %3079 = vrot.lane.b32.xlu0 %v3077, 64
    %v3080 = vpop.permute.xlu0 %3079
    %v3082 = vmul.f32 %v3064, %v3080
    %3084 = vrot.lane.b32.xlu0 %v3082, 32
    %v3085 = vpop.permute.xlu0 %3084
    %3087 = vst.msk [vmem:[#allocation5] sm:$0xff] %vm231, %v3085
    %v3088 = vld [vmem:[#allocation4] sm:$0xff]
    %v3089 = vld [vmem:[#allocation4 + $0x8] sm:$0xff]
    %v3090 = vld [vmem:[#allocation4 + $0x10] sm:$0xff]
    %v3091 = vld [vmem:[#allocation4 + $0x18] sm:$0xff]
    %v3092 = vld [vmem:[#allocation4 + $0x20] sm:$0xff]
    %v3093 = vld [vmem:[#allocation4 + $0x28] sm:$0xff]
    %v3094 = vld [vmem:[#allocation4 + $0x30] sm:$0xff]
    %v3095 = vld [vmem:[#allocation4 + $0x38] sm:$0xff]
    %v3096 = vld [vmem:[#allocation5] sm:$0xff]
    %v3097 = vld [vmem:[#allocation5 + $0x8] sm:$0xff]
    %v3098 = vld [vmem:[#allocation5 + $0x10] sm:$0xff]
    %v3099 = vld [vmem:[#allocation5 + $0x18] sm:$0xff]
    %v3100 = vld [vmem:[#allocation5 + $0x20] sm:$0xff]
    %v3101 = vld [vmem:[#allocation5 + $0x28] sm:$0xff]
    %v3102 = vld [vmem:[#allocation5 + $0x30] sm:$0xff]
    %v3103 = vld [vmem:[#allocation5 + $0x38] sm:$0xff]
    %v3104 = vpack.c.bf16 %v3089, %v3088
    %v3105 = vpack.c.bf16 %v3091, %v3090
    %v3106 = vpack.c.bf16 %v3093, %v3092
    %v3107 = vpack.c.bf16 %v3095, %v3094
    %v3108 = vld [vmem:[#allocation6 + $0x110] sm:$0xff]
    %v3109 = vld [vmem:[#allocation6 + $0x118] sm:$0xff]
    %v3110 = vld [vmem:[#allocation6 + $0x120] sm:$0xff]
    %v3111 = vld [vmem:[#allocation6 + $0x128] sm:$0xff]
    %v3112 = vpack.c.bf16 %v3109, %v3108
    %v3113 = vpack.c.bf16 %v3111, %v3110
    %v3114 = vpack.c.bf16 %v3097, %v3096
    %v3115 = vpack.c.bf16 %v3099, %v3098
    %v3116 = vpack.c.bf16 %v3101, %v3100
    %v3117 = vpack.c.bf16 %v3103, %v3102
    %v3118 = vld [vmem:[#allocation6 + $0x130] sm:$0xff]
    %v3119 = vld [vmem:[#allocation6 + $0x138] sm:$0xff]
    %v3120 = vld [vmem:[#allocation6 + $0x140] sm:$0xff]
    %v3121 = vld [vmem:[#allocation6 + $0x148] sm:$0xff]
    %v3122 = vpack.c.bf16 %v3119, %v3118
    %v3123 = vpack.c.bf16 %v3121, %v3120
    %v3125 = vsel %vm231, %v3114, 0
    %v3128 = vsel %vm231, %v3115, 0
    %v3131 = vsel %vm231, %v3116, 0
    %v3134 = vsel %vm231, %v3117, 0
    %3136 = vmatprep.subr.bf16.mxu0 0
    %3137 = vmatpush1.bf16.msra.mxu0 0
    %3138 = vmatprep.subr.bf16.mxu0 0
    %3139 = vmatpush1.bf16.msra.mxu0 0
    %3140 = vmatprep.subr.bf16.mxu0 0
    %3141 = vmatpush1.bf16.msra.mxu0 0
    %3142 = vmatprep.subr.bf16.mxu0 0
    %3143 = vmatpush1.bf16.msra.mxu0 0
    %3144 = vmatprep.subr.bf16.mxu0 0
    %3145 = vmatpush1.bf16.msra.mxu0 0
    %3146 = vmatprep.subr.bf16.mxu0 0
    %3147 = vmatpush1.bf16.msra.mxu0 0
    %3148 = vmatprep.subr.bf16.mxu0 0
    %3149 = vmatpush1.bf16.msra.mxu0 %v3123
    %3150 = vmatprep.subr.bf16.mxu0 0
    %3151 = vmatpush1.bf16.msra.mxu0 %v3122
    %3152 = vmatprep.subr.bf16.mxu0 0
    %3153 = vmatpush2.bf16.msra.mxu0 0
    %3154 = vmatprep.subr.bf16.mxu0 0
    %3155 = vmatpush2.bf16.msra.mxu0 0
    %3156 = vmatprep.subr.bf16.mxu0 0
    %3157 = vmatpush2.bf16.msra.mxu0 0
    %3158 = vmatprep.subr.bf16.mxu0 0
    %3159 = vmatpush2.bf16.msra.mxu0 0
    %3160 = vmatprep.subr.bf16.mxu0 0
    %3161 = vmatpush2.bf16.msra.mxu0 0
    %3162 = vmatprep.subr.bf16.mxu0 0
    %3163 = vmatpush2.bf16.msra.mxu0 0
    %3164 = vmatprep.subr.bf16.mxu0 0
    %3165 = vmatpush2.bf16.msra.mxu0 0
    %3166 = vmatprep.subr.bf16.mxu0 0
    %3167 = vmatpush2.bf16.msra.mxu0 0
    %3168 = vmatprep.mubr.bf16.mxu0 0
    %3169 = vmatmul.mubr.bf16.gmra.mxu0 %v3125
    %v3170 = vpop.f32.mrf.mxu0
    %v3171 = vadd.f32 0.0, %v3170
    %v3172 = vpop.f32.mrf.mxu0
    %v3173 = vpop.f32.mrf.mxu0
    %v3174 = vadd.f32 0.0, %v3173
    %v3175 = vpop.f32.mrf.mxu0
    %3176 = vmatprep.mubr.bf16.mxu0 0
    %3177 = vmatmul.mubr.bf16.gmra.mxu0 %v3128
    %v3178 = vpop.f32.mrf.mxu0
    %v3179 = vadd.f32 0.0, %v3178
    %v3180 = vpop.f32.mrf.mxu0
    %v3181 = vpop.f32.mrf.mxu0
    %v3182 = vadd.f32 0.0, %v3181
    %v3183 = vpop.f32.mrf.mxu0
    %3184 = vmatprep.mubr.bf16.mxu0 0
    %3185 = vmatmul.mubr.bf16.gmra.mxu0 %v3131
    %v3186 = vpop.f32.mrf.mxu0
    %v3187 = vadd.f32 0.0, %v3186
    %v3188 = vpop.f32.mrf.mxu0
    %v3189 = vpop.f32.mrf.mxu0
    %v3190 = vadd.f32 0.0, %v3189
    %v3191 = vpop.f32.mrf.mxu0
    %3192 = vmatprep.mubr.bf16.mxu0 0
    %3193 = vmatmul.mubr.bf16.gmra.mxu0 %v3134
    %v3194 = vpop.f32.mrf.mxu0
    %v3195 = vadd.f32 0.0, %v3194
    %v3196 = vpop.f32.mrf.mxu0
    %v3197 = vpop.f32.mrf.mxu0
    %v3198 = vadd.f32 0.0, %v3197
    %v3199 = vpop.f32.mrf.mxu0
    %3200 = vdwg.mxu0
    %v3202 = vsel %vm231, %v3104, 0
    %v3205 = vsel %vm231, %v3105, 0
    %v3208 = vsel %vm231, %v3106, 0
    %v3211 = vsel %vm231, %v3107, 0
    %3213 = vmatprep.subr.bf16.mxu0 0
    %3214 = vmatpush1.bf16.msra.mxu0 0
    %3215 = vmatprep.subr.bf16.mxu0 0
    %3216 = vmatpush1.bf16.msra.mxu0 0
    %3217 = vmatprep.subr.bf16.mxu0 0
    %3218 = vmatpush1.bf16.msra.mxu0 0
    %3219 = vmatprep.subr.bf16.mxu0 0
    %3220 = vmatpush1.bf16.msra.mxu0 0
    %3221 = vmatprep.subr.bf16.mxu0 0
    %3222 = vmatpush1.bf16.msra.mxu0 0
    %3223 = vmatprep.subr.bf16.mxu0 0
    %3224 = vmatpush1.bf16.msra.mxu0 0
    %3225 = vmatprep.subr.bf16.mxu0 0
    %3226 = vmatpush1.bf16.msra.mxu0 %v3113
    %3227 = vmatprep.subr.bf16.mxu0 0
    %3228 = vmatpush1.bf16.msra.mxu0 %v3112
    %3229 = vmatprep.subr.bf16.mxu0 0
    %3230 = vmatpush2.bf16.msra.mxu0 0
    %3231 = vmatprep.subr.bf16.mxu0 0
    %3232 = vmatpush2.bf16.msra.mxu0 0
    %3233 = vmatprep.subr.bf16.mxu0 0
    %3234 = vmatpush2.bf16.msra.mxu0 0
    %3235 = vmatprep.subr.bf16.mxu0 0
    %3236 = vmatpush2.bf16.msra.mxu0 0
    %3237 = vmatprep.subr.bf16.mxu0 0
    %3238 = vmatpush2.bf16.msra.mxu0 0
    %3239 = vmatprep.subr.bf16.mxu0 0
    %3240 = vmatpush2.bf16.msra.mxu0 0
    %3241 = vmatprep.subr.bf16.mxu0 0
    %3242 = vmatpush2.bf16.msra.mxu0 0
    %3243 = vmatprep.subr.bf16.mxu0 0
    %3244 = vmatpush2.bf16.msra.mxu0 0
    %3245 = vmatprep.mubr.bf16.mxu0 0
    %3246 = vmatmul.mubr.bf16.gmra.mxu0 %v3202
    %v3247 = vpop.f32.mrf.mxu0
    %v3248 = vadd.f32 %v3171, %v3247
    %v3249 = vpop.f32.mrf.mxu0
    %v3250 = vpop.f32.mrf.mxu0
    %v3251 = vadd.f32 %v3174, %v3250
    %v3252 = vpop.f32.mrf.mxu0
    %3253 = vmatprep.mubr.bf16.mxu0 0
    %3254 = vmatmul.mubr.bf16.gmra.mxu0 %v3205
    %v3255 = vpop.f32.mrf.mxu0
    %v3256 = vadd.f32 %v3179, %v3255
    %v3257 = vpop.f32.mrf.mxu0
    %v3258 = vpop.f32.mrf.mxu0
    %v3259 = vadd.f32 %v3182, %v3258
    %v3260 = vpop.f32.mrf.mxu0
    %3261 = vmatprep.mubr.bf16.mxu0 0
    %3262 = vmatmul.mubr.bf16.gmra.mxu0 %v3208
    %v3263 = vpop.f32.mrf.mxu0
    %v3264 = vadd.f32 %v3187, %v3263
    %v3265 = vpop.f32.mrf.mxu0
    %v3266 = vpop.f32.mrf.mxu0
    %v3267 = vadd.f32 %v3190, %v3266
    %v3268 = vpop.f32.mrf.mxu0
    %3269 = vmatprep.mubr.bf16.mxu0 0
    %3270 = vmatmul.mubr.bf16.gmra.mxu0 %v3211
    %v3271 = vpop.f32.mrf.mxu0
    %v3272 = vadd.f32 %v3195, %v3271
    %v3273 = vpop.f32.mrf.mxu0
    %v3274 = vpop.f32.mrf.mxu0
    %v3275 = vadd.f32 %v3198, %v3274
    %v3276 = vpop.f32.mrf.mxu0
    %3277 = vdwg.mxu0
    %v3278 = vld [vmem:[#allocation6 + $0x154] sm:$0x1]
    %v3279 = vlaneseq
    %v3280 = vshrl.u32 %v3279, 7
    %v3281 = vsub.s32 0, %v3280
    %v3282 = vrot.slane %v3278, %v3281
    %v3283 = vadd.f32 %v3248, %v3282
    %v3284 = vadd.f32 %v3251, %v3282
    %v3285 = vadd.f32 %v3256, %v3282
    %v3286 = vadd.f32 %v3259, %v3282
    %v3287 = vadd.f32 %v3264, %v3282
    %v3288 = vadd.f32 %v3267, %v3282
    %v3289 = vadd.f32 %v3272, %v3282
    %v3290 = vadd.f32 %v3275, %v3282
    %v3291 = vtanh.pop %v3283
    %v3292 = vtanh.pop %v3284
    %v3293 = vtanh.pop %v3285
    %v3294 = vtanh.pop %v3286
    %v3295 = vtanh.pop %v3287
    %v3296 = vtanh.pop %v3288
    %v3297 = vtanh.pop %v3289
    %v3298 = vtanh.pop %v3290
    %v3299 = vld [vmem:[#allocation6 + $0x155] sm:$0x1]
    %v3300 = vlaneseq
    %v3301 = vshrl.u32 %v3300, 7
    %v3302 = vsub.s32 0, %v3301
    %v3303 = vrot.slane %v3299, %v3302
    %v3304 = vmul.f32 %v3291, %v3303
    %v3305 = vmul.f32 %v3292, %v3303
    %v3306 = vmul.f32 %v3293, %v3303
    %v3307 = vmul.f32 %v3294, %v3303
    %v3308 = vmul.f32 %v3295, %v3303
    %v3309 = vmul.f32 %v3296, %v3303
    %v3310 = vmul.f32 %v3297, %v3303
    %v3311 = vmul.f32 %v3298, %v3303
    %3312 = vadd.xlane.f32.xlu0 %v3304
    %v3313 = vpop.xlane.xlu0 %3312
    %3314 = vadd.xlane.f32.xlu0 %v3305
    %v3315 = vpop.xlane.xlu0 %3314
    %3316 = vadd.xlane.f32.xlu0 %v3306
    %v3317 = vpop.xlane.xlu0 %3316
    %3318 = vadd.xlane.f32.xlu0 %v3307
    %v3319 = vpop.xlane.xlu0 %3318
    %3320 = vadd.xlane.f32.xlu0 %v3308
    %v3321 = vpop.xlane.xlu0 %3320
    %3322 = vadd.xlane.f32.xlu0 %v3309
    %v3323 = vpop.xlane.xlu0 %3322
    %3324 = vadd.xlane.f32.xlu0 %v3310
    %v3325 = vpop.xlane.xlu0 %3324
    %3326 = vadd.xlane.f32.xlu0 %v3311
    %v3327 = vpop.xlane.xlu0 %3326
    %v3328 = vmax.f32 %v3313, %v3315
    %v3329 = vmax.f32 %v3328, %v3317
    %v3330 = vmax.f32 %v3329, %v3319
    %v3331 = vmax.f32 %v3330, %v3321
    %v3332 = vmax.f32 %v3331, %v3323
    %v3333 = vmax.f32 %v3332, %v3325
    %v3334 = vmax.f32 %v3333, %v3327
    %v3335 = vsub.f32 %v3313, %v3334
    %v3336 = vmul.f32 %v3335, 1.442695
    %v3337 = vpow.pop %v3336
    %v3338 = vsub.f32 %v3315, %v3334
    %v3339 = vmul.f32 %v3338, 1.442695
    %v3340 = vpow.pop %v3339
    %v3341 = vsub.f32 %v3317, %v3334
    %v3342 = vmul.f32 %v3341, 1.442695
    %v3343 = vpow.pop %v3342
    %v3344 = vsub.f32 %v3319, %v3334
    %v3345 = vmul.f32 %v3344, 1.442695
    %v3346 = vpow.pop %v3345
    %v3347 = vsub.f32 %v3321, %v3334
    %v3348 = vmul.f32 %v3347, 1.442695
    %v3349 = vpow.pop %v3348
    %v3350 = vsub.f32 %v3323, %v3334
    %v3351 = vmul.f32 %v3350, 1.442695
    %v3352 = vpow.pop %v3351
    %v3353 = vsub.f32 %v3325, %v3334
    %v3354 = vmul.f32 %v3353, 1.442695
    %v3355 = vpow.pop %v3354
    %v3356 = vsub.f32 %v3327, %v3334
    %v3357 = vmul.f32 %v3356, 1.442695
    %v3358 = vpow.pop %v3357
    %v3359 = vadd.f32 %v3337, %v3340
    %v3360 = vadd.f32 %v3359, %v3343
    %v3361 = vadd.f32 %v3360, %v3346
    %v3362 = vadd.f32 %v3361, %v3349
    %v3363 = vadd.f32 %v3362, %v3352
    %v3364 = vadd.f32 %v3363, %v3355
    %v3365 = vadd.f32 %v3364, %v3358
    %v3366 = vrcp.pop %v3365
    %v3367 = vmul.f32 1.0, %v3366
    %v3368 = vmul.f32 %v3337, %v3088
    %v3369 = vmul.f32 %v3337, %v3096
    %v3370 = vmul.f32 %v3340, %v3089
    %v3371 = vadd.f32 %v3368, %v3370
    %v3372 = vmul.f32 %v3340, %v3097
    %v3373 = vadd.f32 %v3369, %v3372
    %v3374 = vmul.f32 %v3343, %v3090
    %v3375 = vadd.f32 %v3371, %v3374
    %v3376 = vmul.f32 %v3343, %v3098
    %v3377 = vadd.f32 %v3373, %v3376
    %v3378 = vmul.f32 %v3346, %v3091
    %v3379 = vadd.f32 %v3375, %v3378
    %v3380 = vmul.f32 %v3346, %v3099
    %v3381 = vadd.f32 %v3377, %v3380
    %v3382 = vmul.f32 %v3349, %v3092
    %v3383 = vadd.f32 %v3379, %v3382
    %v3384 = vmul.f32 %v3349, %v3100
    %v3385 = vadd.f32 %v3381, %v3384
    %v3386 = vmul.f32 %v3352, %v3093
    %v3387 = vadd.f32 %v3383, %v3386
    %v3388 = vmul.f32 %v3352, %v3101
    %v3389 = vadd.f32 %v3385, %v3388
    %v3390 = vmul.f32 %v3355, %v3094
    %v3391 = vadd.f32 %v3387, %v3390
    %v3392 = vmul.f32 %v3355, %v3102
    %v3393 = vadd.f32 %v3389, %v3392
    %v3394 = vmul.f32 %v3358, %v3095
    %v3395 = vadd.f32 %v3391, %v3394
    %v3396 = vmul.f32 %v3358, %v3103
    %v3397 = vadd.f32 %v3393, %v3396
    %v3398 = vmul.f32 %v3395, %v3367
    %v3399 = vmul.f32 %v3397, %v3367
    %v3400 = vld [vmem:[#allocation6 + $0x156] sm:$0x1]
    %v3401 = vld [vmem:[#allocation6 + $0x157] sm:$0x1]
    %v3402 = vlaneseq
    %v3403 = vshrl.u32 %v3402, 7
    %v3404 = vsub.s32 0, %v3403
    %v3405 = vrot.slane %v3400, %v3404
    %v3406 = vmul.f32 %v3398, %v3405
    %v3407 = vlaneseq
    %v3408 = vshrl.u32 %v3407, 7
    %v3409 = vsub.s32 0, %v3408
    %v3410 = vrot.slane %v3401, %v3409
    %v3411 = vmul.f32 %v3399, %v3410
    %v3412 = vadd.f32 %v3406, %v3411
    %v3413 = vsel %vm231, %v3412, 0.0
    %3414 = vadd.xlane.f32.xlu0 %v3413
    %v3415 = vpop.xlane.xlu0 %3414
    %v3416 = vld [vmem:[#allocation6 + $0x158] sm:$0x1]
    %v3417 = vlaneseq
    %v3418 = vshrl.u32 %v3417, 7
    %v3419 = vsub.s32 0, %v3418
    %v3420 = vrot.slane %v3416, %v3419
    %v3421 = vadd.f32 %v3415, %v3420
    %vm3422 = vcmask 7168
    %3423 = vst.msk [vmem:[%s2] sm:$0xff] %vm3422, %v3421
    // Predicated region
    $region14: #{crypto_lstm_forward.1} parent=1 // pred_check
      _
    $region15: #{crypto_lstm_forward.1} parent=1 // pred_check_branch
      %3425 = sbr.rel (0) target = $region17
    $region16: #{crypto_lstm_forward.1} parent=1 // pred_region
      _
    $region17: #{crypto_lstm_forward.1} parent=1 // pred_fallthru
      _
    // Predicated region
    $region18: #{crypto_lstm_forward.1} parent=1 // pred_check
      _
    $region19: #{crypto_lstm_forward.1} parent=1 // pred_check_branch
      %3427 = sbr.rel (0) target = $region21
    $region20: #{crypto_lstm_forward.1} parent=1 // pred_region
      _
    $region21: #{crypto_lstm_forward.1} parent=1 // pred_fallthru
      _
    %3428 = vsyncpa [#allocation7], 1

</llo_original>
